<compile_context>
chip_gen: v7x
topology: tpu7x:2x2x1
jax: 0.10.0
libtpu: 0.0.40
codegen_flags: <defaults>
</compile_context>

<pallas_src>
import functools

import jax
import jax.numpy as jnp
import numpy as np
from jax.experimental import pallas as pl


# ----------------------------------------------------------------------------
# Fused kernel: all AttentionBlocks + final NoisyLinear, whole batch at once.
# ----------------------------------------------------------------------------
def _fused_dqn_kernel(*refs, num_heads):
    num_blocks = len(num_heads)
    q_ref, k_ref, v_ref = refs[0], refs[1], refs[2]
    block_refs = [(refs[3 + 2 * i], refs[3 + 2 * i + 1]) for i in range(num_blocks)]
    wout_ref = refs[3 + 2 * num_blocks]     # (1, hidden_last)
    bout_ref = refs[4 + 2 * num_blocks]     # (1, 1)
    o_ref = refs[5 + 2 * num_blocks]        # (B, Sq)

    B, Sq, Dq = q_ref.shape
    _, Sk, _ = k_ref.shape

    # Flatten batch into rows once; the query is the same for every block.
    q2 = q_ref[...].reshape(B * Sq, Dq)     # (B*Sq, Dq), lane-dense
    key = k_ref[...]                        # (B, Sk, Dk)
    val = v_ref[...]                        # (B, Sk, Dv)

    for blk in range(num_blocks):
        w_ref, b_ref = block_refs[blk]
        nh = num_heads[blk]
        Dk = key.shape[2]
        Dv = val.shape[2]
        H = w_ref.shape[1]
        dh = H // nh

        # Static row slices out of the packed (Dq+Dk+Dv+H, H) weight tensor.
        wq = w_ref[0:Dq, :]
        wk = w_ref[Dq:Dq + Dk, :]
        wv = w_ref[Dq + Dk:Dq + Dk + Dv, :]
        wo = w_ref[Dq + Dk + Dv:Dq + Dk + Dv + H, :]
        bq = b_ref[0:1, :]
        bk = b_ref[1:2, :]
        bv = b_ref[2:3, :]
        bo = b_ref[3:4, :]

        # Unsplit, lane-dense input projections over the whole batch
        # (one MXU matmul per projection, f32 accumulation).
        key2 = key.reshape(B * Sk, Dk)
        val2 = val.reshape(B * Sk, Dv)
        Q = jnp.dot(q2, wq, preferred_element_type=jnp.float32) + bq    # (B*Sq, H)
        K = jnp.dot(key2, wk, preferred_element_type=jnp.float32) + bk  # (B*Sk, H)
        V = jnp.dot(val2, wv, preferred_element_type=jnp.float32) + bv  # (B*Sk, H)

        # Split into heads only for the attention einsums: (B*nh, S, dh).
        Qh = Q.reshape(B, Sq, nh, dh).transpose(0, 2, 1, 3).reshape(B * nh, Sq, dh)
        Kh = K.reshape(B, Sk, nh, dh).transpose(0, 2, 1, 3).reshape(B * nh, Sk, dh)
        Vh = V.reshape(B, Sk, nh, dh).transpose(0, 2, 1, 3).reshape(B * nh, Sk, dh)

        # Scaled dot-product attention, batched over B*nh in ONE dot_general
        # per step (scores and context).
        scale = 1.0 / np.sqrt(dh)
        scores = jnp.einsum("bqd,bkd->bqk", Qh, Kh,
                            preferred_element_type=jnp.float32) * scale
        m = jnp.max(scores, axis=-1, keepdims=True)
        p = jnp.exp(scores - m)
        denom = jnp.sum(p, axis=-1, keepdims=True)
        ctx = jnp.einsum("bqk,bkd->bqd", p, Vh,
                         preferred_element_type=jnp.float32)
        # Normalize after attn@V (Sq*dh elems instead of Sq*Sk); EUP reciprocal.
        ctx = ctx * pl.reciprocal(denom, approx=True)

        # Concat heads back to lane-dense (B*Sq, H); single output projection.
        ctx2 = ctx.reshape(B, nh, Sq, dh).transpose(0, 2, 1, 3).reshape(B * Sq, H)
        out = jnp.dot(ctx2, wo, preferred_element_type=jnp.float32) + bo  # (B*Sq, H)

        key = out.reshape(B, Sq, H)     # key   = block(query, key, value)
        val = key                       # value = key.clone()

    # Final NoisyLinear (eval mode): hidden -> 1 as broadcast-mul + lane reduce
    # (no N=1 MXU matmul); writes the squeezed (B, Sq) output directly.
    adv = jnp.sum(key * wout_ref[...], axis=-1) + bout_ref[...]   # (B, Sq)
    o_ref[...] = adv.astype(o_ref.dtype)


# ----------------------------------------------------------------------------
# Wrapper
# ----------------------------------------------------------------------------
def _full_spec(shape):
    nd = len(shape)
    return pl.BlockSpec(shape, lambda *_: (0,) * nd)


def dqn_advantage_forward(query, key, value, block_params, num_heads_list,
                          out_w, out_b):
    """Mirrors DQNAdvantage.forward with a single gridless pallas_call."""
    B, Sq, _ = query.shape

    # Host-side (layout-only) packing: one weight tensor and one bias tensor
    # per block -> 9 total operands instead of 21.
    packed = []
    for p in block_params:
        w_pack = jnp.concatenate([p["wq"], p["wk"], p["wv"], p["wo"]], axis=0)
        b_pack = jnp.concatenate([p["bq"], p["bk"], p["bv"], p["bo"]], axis=0)
        packed += [w_pack, b_pack]

    out_w_row = jnp.transpose(out_w)    # (hidden, 1) -> (1, hidden)  [bug fix]

    inputs = [query, key, value] + packed + [out_w_row, out_b]
    in_specs = [_full_spec(t.shape) for t in inputs]

    kernel = functools.partial(_fused_dqn_kernel,
                               num_heads=tuple(num_heads_list))

    return pl.pallas_call(
        kernel,
        out_shape=jax.ShapeDtypeStruct((B, Sq), jnp.float32),
        in_specs=in_specs,
        out_specs=_full_spec((B, Sq)),
    )(*inputs)


# ----------------------------------------------------------------------------
# Deterministic parameter init + reference check
# ----------------------------------------------------------------------------
def _init_linear(key, d_in, d_out):
    kw, kb = jax.random.split(key)
    bound = 1.0 / np.sqrt(d_in)
    w = jax.random.uniform(kw, (d_in, d_out), jnp.float32, -bound, bound)
    b = jax.random.uniform(kb, (1, d_out), jnp.float32, -bound, bound)
    return w, b


def _init_block(key, dq, dk, dv, hidden):
    ks = jax.random.split(key, 4)
    wq, bq = _init_linear(ks[0], dq, hidden)
    wk, bk = _init_linear(ks[1], dk, hidden)
    wv, bv = _init_linear(ks[2], dv, hidden)
    wo, bo = _init_linear(ks[3], hidden, hidden)
    return dict(wq=wq, bq=bq, wk=wk, bk=bk, wv=wv, bv=bv, wo=wo, bo=bo)


def _reference_block(q, k, v, p, nh):
    Q = q @ p["wq"] + p["bq"]
    K = k @ p["wk"] + p["bk"]
    V = v @ p["wv"] + p["bv"]
    H = Q.shape[-1]
    dh = H // nh
    outs = []
    for h in range(nh):
        Qh, Kh, Vh = (t[..., h * dh:(h + 1) * dh] for t in (Q, K, V))
        s = jnp.einsum("bqd,bkd->bqk", Qh, Kh) / np.sqrt(dh)
        a = jax.nn.softmax(s, axis=-1)
        outs.append(jnp.einsum("bqk,bkd->bqd", a, Vh))
    ctx = jnp.concatenate(outs, axis=-1)
    return ctx @ p["wo"] + p["bo"]


def _reference_forward(query, key, value, block_params, num_heads_list,
                       out_w, out_b):
    for p, nh in zip(block_params, num_heads_list):
        key = _reference_block(query, key, value, p, nh)
        value = key
    return (key @ out_w + out_b)[:, :, 0]


if __name__ == "__main__":
    # DQNAdvantageInfo(query_size=32, key_size=32, value_size=32,
    #                  hidden_sizes=[32, 32], num_heads=[4, 4], dropout=0.1)
    query_size = key_size = value_size = 32
    hidden_sizes = [32, 32]
    num_heads = [4, 4]
    B, Sq, Sk = 2, 8, 8

    root = jax.random.PRNGKey(0)
    k_q, k_k, k_v, k_b0, k_b1, k_out = jax.random.split(root, 6)

    query = jax.random.normal(k_q, (B, Sq, query_size), jnp.float32)
    key = jax.random.normal(k_k, (B, Sk, key_size), jnp.float32)
    value = jax.random.normal(k_v, (B, Sk, value_size), jnp.float32)

    block_params = [
        _init_block(k_b0, query_size, key_size, value_size, hidden_sizes[0]),
        _init_block(k_b1, query_size, hidden_sizes[0], hidden_sizes[0],
                    hidden_sizes[1]),
    ]
    out_w, out_b = _init_linear(k_out, hidden_sizes[-1], 1)

    out = dqn_advantage_forward(query, key, value, block_params, num_heads,
                                out_w, out_b)
    out = jax.block_until_ready(out)

    ref = _reference_forward(query, key, value, block_params, num_heads,
                             out_w, out_b)
    # Tolerance loosened for pl.reciprocal(approx=True) (~2^-12 relative).
    np.testing.assert_allclose(np.asarray(out), np.asarray(ref),
                               rtol=2e-3, atol=2e-3)
    assert out.shape == (B, Sq)
    print("KERNEL_OK")
</pallas_src>

<mosaic_0001>
module attributes {stable_mosaic.version = 11 : i64} {
  func.func @_fused_dqn_kernel(%arg0: memref<2x8x32xf32, #tpu.memory_space<vmem>>, %arg1: memref<2x8x32xf32, #tpu.memory_space<vmem>>, %arg2: memref<2x8x32xf32, #tpu.memory_space<vmem>>, %arg3: memref<128x32xf32, #tpu.memory_space<vmem>>, %arg4: memref<4x32xf32, #tpu.memory_space<vmem>>, %arg5: memref<128x32xf32, #tpu.memory_space<vmem>>, %arg6: memref<4x32xf32, #tpu.memory_space<vmem>>, %arg7: memref<1x32xf32, #tpu.memory_space<vmem>>, %arg8: memref<1x1xf32, #tpu.memory_space<vmem>>, %arg9: memref<2x8xf32, #tpu.memory_space<vmem>>) attributes {dimension_semantics = [], scalar_prefetch = 0 : i64, scratch_operands = 0 : i64, tpu.core_type = #tpu.core_type<tc>} {
    %c0 = arith.constant 0 : index
    %c0_0 = arith.constant 0 : index
    %c0_1 = arith.constant 0 : index
    %0 = vector.load %arg0[%c0, %c0_0, %c0_1] : memref<2x8x32xf32, #tpu.memory_space<vmem>>, vector<2x8x32xf32>
    %1 = vector.shape_cast %0 : vector<2x8x32xf32> to vector<16x32xf32>
    %c0_2 = arith.constant 0 : index
    %c0_3 = arith.constant 0 : index
    %c0_4 = arith.constant 0 : index
    %2 = vector.load %arg1[%c0_2, %c0_3, %c0_4] : memref<2x8x32xf32, #tpu.memory_space<vmem>>, vector<2x8x32xf32>
    %c0_5 = arith.constant 0 : index
    %c0_6 = arith.constant 0 : index
    %c0_7 = arith.constant 0 : index
    %3 = vector.load %arg2[%c0_5, %c0_6, %c0_7] : memref<2x8x32xf32, #tpu.memory_space<vmem>>, vector<2x8x32xf32>
    %c0_8 = arith.constant 0 : index
    %c0_9 = arith.constant 0 : index
    %4 = vector.load %arg3[%c0_8, %c0_9] : memref<128x32xf32, #tpu.memory_space<vmem>>, vector<32x32xf32>
    %c32 = arith.constant 32 : index
    %c0_10 = arith.constant 0 : index
    %5 = vector.load %arg3[%c32, %c0_10] : memref<128x32xf32, #tpu.memory_space<vmem>>, vector<32x32xf32>
    %c64 = arith.constant 64 : index
    %c0_11 = arith.constant 0 : index
    %6 = vector.load %arg3[%c64, %c0_11] : memref<128x32xf32, #tpu.memory_space<vmem>>, vector<32x32xf32>
    %c96 = arith.constant 96 : index
    %c0_12 = arith.constant 0 : index
    %7 = vector.load %arg3[%c96, %c0_12] : memref<128x32xf32, #tpu.memory_space<vmem>>, vector<32x32xf32>
    %c0_13 = arith.constant 0 : index
    %c0_14 = arith.constant 0 : index
    %8 = vector.load %arg4[%c0_13, %c0_14] : memref<4x32xf32, #tpu.memory_space<vmem>>, vector<1x32xf32>
    %c1 = arith.constant 1 : index
    %c0_15 = arith.constant 0 : index
    %9 = vector.load %arg4[%c1, %c0_15] : memref<4x32xf32, #tpu.memory_space<vmem>>, vector<1x32xf32>
    %c2 = arith.constant 2 : index
    %c0_16 = arith.constant 0 : index
    %10 = vector.load %arg4[%c2, %c0_16] : memref<4x32xf32, #tpu.memory_space<vmem>>, vector<1x32xf32>
    %c3 = arith.constant 3 : index
    %c0_17 = arith.constant 0 : index
    %11 = vector.load %arg4[%c3, %c0_17] : memref<4x32xf32, #tpu.memory_space<vmem>>, vector<1x32xf32>
    %12 = vector.shape_cast %2 : vector<2x8x32xf32> to vector<16x32xf32>
    %13 = vector.shape_cast %3 : vector<2x8x32xf32> to vector<16x32xf32>
    %cst = arith.constant dense<0.000000e+00> : vector<16x32xf32>
    %14 = tpu.matmul %1, %4, %cst {dimension_numbers = #tpu.dot_dimension_numbers<[1], [0], [0], [1], [0, 0, 1, 1], [], []>} : vector<16x32xf32>, vector<32x32xf32>, vector<16x32xf32> -> vector<16x32xf32>
    %15 = vector.broadcast %8 : vector<1x32xf32> to vector<16x32xf32>
    %16 = arith.addf %14, %15 : vector<16x32xf32>
    %cst_18 = arith.constant dense<0.000000e+00> : vector<16x32xf32>
    %17 = tpu.matmul %12, %5, %cst_18 {dimension_numbers = #tpu.dot_dimension_numbers<[1], [0], [0], [1], [0, 0, 1, 1], [], []>} : vector<16x32xf32>, vector<32x32xf32>, vector<16x32xf32> -> vector<16x32xf32>
    %18 = vector.broadcast %9 : vector<1x32xf32> to vector<16x32xf32>
    %19 = arith.addf %17, %18 : vector<16x32xf32>
    %cst_19 = arith.constant dense<0.000000e+00> : vector<16x32xf32>
    %20 = tpu.matmul %13, %6, %cst_19 {dimension_numbers = #tpu.dot_dimension_numbers<[1], [0], [0], [1], [0, 0, 1, 1], [], []>} : vector<16x32xf32>, vector<32x32xf32>, vector<16x32xf32> -> vector<16x32xf32>
    %21 = vector.broadcast %10 : vector<1x32xf32> to vector<16x32xf32>
    %22 = arith.addf %20, %21 : vector<16x32xf32>
    %23 = vector.shape_cast %16 : vector<16x32xf32> to vector<2x8x4x8xf32>
    %24 = tpu.transpose %23, [0, 2, 1, 3] : vector<2x8x4x8xf32> -> vector<2x4x8x8xf32>
    %25 = vector.shape_cast %24 : vector<2x4x8x8xf32> to vector<8x8x8xf32>
    %26 = vector.shape_cast %19 : vector<16x32xf32> to vector<2x8x4x8xf32>
    %27 = tpu.transpose %26, [0, 2, 1, 3] : vector<2x8x4x8xf32> -> vector<2x4x8x8xf32>
    %28 = vector.shape_cast %27 : vector<2x4x8x8xf32> to vector<8x8x8xf32>
    %29 = vector.shape_cast %22 : vector<16x32xf32> to vector<2x8x4x8xf32>
    %30 = tpu.transpose %29, [0, 2, 1, 3] : vector<2x8x4x8xf32> -> vector<2x4x8x8xf32>
    %31 = vector.shape_cast %30 : vector<2x4x8x8xf32> to vector<8x8x8xf32>
    "tpu.trace_start"() <{level = 10 : i32, message = "bqd,bkd->bqk"}> : () -> ()
    %cst_20 = arith.constant dense<0.000000e+00> : vector<8x8x8xf32>
    %32 = tpu.matmul %25, %28, %cst_20 {dimension_numbers = #tpu.dot_dimension_numbers<[2], [2], [1], [1], [0, 0, 0, 1, 1, 1], [0], [0]>} : vector<8x8x8xf32>, vector<8x8x8xf32>, vector<8x8x8xf32> -> vector<8x8x8xf32>
    "tpu.trace_stop"() : () -> ()
    %cst_21 = arith.constant 0.353553385 : f32
    %33 = vector.broadcast %cst_21 : f32 to vector<8x8x8xf32>
    %34 = arith.mulf %32, %33 : vector<8x8x8xf32>
    %cst_22 = arith.constant dense<0xFF800000> : vector<8x8xf32>
    %35 = vector.multi_reduction <maximumf>, %34, %cst_22 [2] : vector<8x8x8xf32> to vector<8x8xf32>
    %36 = vector.shape_cast %35 : vector<8x8xf32> to vector<8x8x1xf32>
    %37 = vector.broadcast %36 : vector<8x8x1xf32> to vector<8x8x8xf32>
    %38 = arith.subf %34, %37 : vector<8x8x8xf32>
    %39 = math.exp %38 : vector<8x8x8xf32>
    %cst_23 = arith.constant dense<0.000000e+00> : vector<8x8xf32>
    %40 = vector.multi_reduction <add>, %39, %cst_23 [2] : vector<8x8x8xf32> to vector<8x8xf32>
    %41 = vector.shape_cast %40 : vector<8x8xf32> to vector<8x8x1xf32>
    "tpu.trace_start"() <{level = 10 : i32, message = "bqk,bkd->bqd"}> : () -> ()
    %cst_24 = arith.constant dense<0.000000e+00> : vector<8x8x8xf32>
    %42 = tpu.matmul %39, %31, %cst_24 {dimension_numbers = #tpu.dot_dimension_numbers<[2], [1], [1], [2], [0, 0, 0, 1, 1, 2], [0], [0]>} : vector<8x8x8xf32>, vector<8x8x8xf32>, vector<8x8x8xf32> -> vector<8x8x8xf32>
    "tpu.trace_stop"() : () -> ()
    %43 = tpu.reciprocal %41 {approx = true} : vector<8x8x1xf32> -> vector<8x8x1xf32>
    %44 = vector.broadcast %43 : vector<8x8x1xf32> to vector<8x8x8xf32>
    %45 = arith.mulf %42, %44 : vector<8x8x8xf32>
    %46 = vector.shape_cast %45 : vector<8x8x8xf32> to vector<2x4x8x8xf32>
    %47 = tpu.transpose %46, [0, 2, 1, 3] : vector<2x4x8x8xf32> -> vector<2x8x4x8xf32>
    %48 = vector.shape_cast %47 : vector<2x8x4x8xf32> to vector<16x32xf32>
    %cst_25 = arith.constant dense<0.000000e+00> : vector<16x32xf32>
    %49 = tpu.matmul %48, %7, %cst_25 {dimension_numbers = #tpu.dot_dimension_numbers<[1], [0], [0], [1], [0, 0, 1, 1], [], []>} : vector<16x32xf32>, vector<32x32xf32>, vector<16x32xf32> -> vector<16x32xf32>
    %50 = vector.broadcast %11 : vector<1x32xf32> to vector<16x32xf32>
    %51 = arith.addf %49, %50 : vector<16x32xf32>
    %52 = vector.shape_cast %51 : vector<16x32xf32> to vector<2x8x32xf32>
    %c0_26 = arith.constant 0 : index
    %c0_27 = arith.constant 0 : index
    %53 = vector.load %arg5[%c0_26, %c0_27] : memref<128x32xf32, #tpu.memory_space<vmem>>, vector<32x32xf32>
    %c32_28 = arith.constant 32 : index
    %c0_29 = arith.constant 0 : index
    %54 = vector.load %arg5[%c32_28, %c0_29] : memref<128x32xf32, #tpu.memory_space<vmem>>, vector<32x32xf32>
    %c64_30 = arith.constant 64 : index
    %c0_31 = arith.constant 0 : index
    %55 = vector.load %arg5[%c64_30, %c0_31] : memref<128x32xf32, #tpu.memory_space<vmem>>, vector<32x32xf32>
    %c96_32 = arith.constant 96 : index
    %c0_33 = arith.constant 0 : index
    %56 = vector.load %arg5[%c96_32, %c0_33] : memref<128x32xf32, #tpu.memory_space<vmem>>, vector<32x32xf32>
    %c0_34 = arith.constant 0 : index
    %c0_35 = arith.constant 0 : index
    %57 = vector.load %arg6[%c0_34, %c0_35] : memref<4x32xf32, #tpu.memory_space<vmem>>, vector<1x32xf32>
    %c1_36 = arith.constant 1 : index
    %c0_37 = arith.constant 0 : index
    %58 = vector.load %arg6[%c1_36, %c0_37] : memref<4x32xf32, #tpu.memory_space<vmem>>, vector<1x32xf32>
    %c2_38 = arith.constant 2 : index
    %c0_39 = arith.constant 0 : index
    %59 = vector.load %arg6[%c2_38, %c0_39] : memref<4x32xf32, #tpu.memory_space<vmem>>, vector<1x32xf32>
    %c3_40 = arith.constant 3 : index
    %c0_41 = arith.constant 0 : index
    %60 = vector.load %arg6[%c3_40, %c0_41] : memref<4x32xf32, #tpu.memory_space<vmem>>, vector<1x32xf32>
    %61 = vector.shape_cast %52 : vector<2x8x32xf32> to vector<16x32xf32>
    %62 = vector.shape_cast %52 : vector<2x8x32xf32> to vector<16x32xf32>
    %cst_42 = arith.constant dense<0.000000e+00> : vector<16x32xf32>
    %63 = tpu.matmul %1, %53, %cst_42 {dimension_numbers = #tpu.dot_dimension_numbers<[1], [0], [0], [1], [0, 0, 1, 1], [], []>} : vector<16x32xf32>, vector<32x32xf32>, vector<16x32xf32> -> vector<16x32xf32>
    %64 = vector.broadcast %57 : vector<1x32xf32> to vector<16x32xf32>
    %65 = arith.addf %63, %64 : vector<16x32xf32>
    %cst_43 = arith.constant dense<0.000000e+00> : vector<16x32xf32>
    %66 = tpu.matmul %61, %54, %cst_43 {dimension_numbers = #tpu.dot_dimension_numbers<[1], [0], [0], [1], [0, 0, 1, 1], [], []>} : vector<16x32xf32>, vector<32x32xf32>, vector<16x32xf32> -> vector<16x32xf32>
    %67 = vector.broadcast %58 : vector<1x32xf32> to vector<16x32xf32>
    %68 = arith.addf %66, %67 : vector<16x32xf32>
    %cst_44 = arith.constant dense<0.000000e+00> : vector<16x32xf32>
    %69 = tpu.matmul %62, %55, %cst_44 {dimension_numbers = #tpu.dot_dimension_numbers<[1], [0], [0], [1], [0, 0, 1, 1], [], []>} : vector<16x32xf32>, vector<32x32xf32>, vector<16x32xf32> -> vector<16x32xf32>
    %70 = vector.broadcast %59 : vector<1x32xf32> to vector<16x32xf32>
    %71 = arith.addf %69, %70 : vector<16x32xf32>
    %72 = vector.shape_cast %65 : vector<16x32xf32> to vector<2x8x4x8xf32>
    %73 = tpu.transpose %72, [0, 2, 1, 3] : vector<2x8x4x8xf32> -> vector<2x4x8x8xf32>
    %74 = vector.shape_cast %73 : vector<2x4x8x8xf32> to vector<8x8x8xf32>
    %75 = vector.shape_cast %68 : vector<16x32xf32> to vector<2x8x4x8xf32>
    %76 = tpu.transpose %75, [0, 2, 1, 3] : vector<2x8x4x8xf32> -> vector<2x4x8x8xf32>
    %77 = vector.shape_cast %76 : vector<2x4x8x8xf32> to vector<8x8x8xf32>
    %78 = vector.shape_cast %71 : vector<16x32xf32> to vector<2x8x4x8xf32>
    %79 = tpu.transpose %78, [0, 2, 1, 3] : vector<2x8x4x8xf32> -> vector<2x4x8x8xf32>
    %80 = vector.shape_cast %79 : vector<2x4x8x8xf32> to vector<8x8x8xf32>
    "tpu.trace_start"() <{level = 10 : i32, message = "bqd,bkd->bqk"}> : () -> ()
    %cst_45 = arith.constant dense<0.000000e+00> : vector<8x8x8xf32>
    %81 = tpu.matmul %74, %77, %cst_45 {dimension_numbers = #tpu.dot_dimension_numbers<[2], [2], [1], [1], [0, 0, 0, 1, 1, 1], [0], [0]>} : vector<8x8x8xf32>, vector<8x8x8xf32>, vector<8x8x8xf32> -> vector<8x8x8xf32>
    "tpu.trace_stop"() : () -> ()
    %cst_46 = arith.constant 0.353553385 : f32
    %82 = vector.broadcast %cst_46 : f32 to vector<8x8x8xf32>
    %83 = arith.mulf %81, %82 : vector<8x8x8xf32>
    %cst_47 = arith.constant dense<0xFF800000> : vector<8x8xf32>
    %84 = vector.multi_reduction <maximumf>, %83, %cst_47 [2] : vector<8x8x8xf32> to vector<8x8xf32>
    %85 = vector.shape_cast %84 : vector<8x8xf32> to vector<8x8x1xf32>
    %86 = vector.broadcast %85 : vector<8x8x1xf32> to vector<8x8x8xf32>
    %87 = arith.subf %83, %86 : vector<8x8x8xf32>
    %88 = math.exp %87 : vector<8x8x8xf32>
    %cst_48 = arith.constant dense<0.000000e+00> : vector<8x8xf32>
    %89 = vector.multi_reduction <add>, %88, %cst_48 [2] : vector<8x8x8xf32> to vector<8x8xf32>
    %90 = vector.shape_cast %89 : vector<8x8xf32> to vector<8x8x1xf32>
    "tpu.trace_start"() <{level = 10 : i32, message = "bqk,bkd->bqd"}> : () -> ()
    %cst_49 = arith.constant dense<0.000000e+00> : vector<8x8x8xf32>
    %91 = tpu.matmul %88, %80, %cst_49 {dimension_numbers = #tpu.dot_dimension_numbers<[2], [1], [1], [2], [0, 0, 0, 1, 1, 2], [0], [0]>} : vector<8x8x8xf32>, vector<8x8x8xf32>, vector<8x8x8xf32> -> vector<8x8x8xf32>
    "tpu.trace_stop"() : () -> ()
    %92 = tpu.reciprocal %90 {approx = true} : vector<8x8x1xf32> -> vector<8x8x1xf32>
    %93 = vector.broadcast %92 : vector<8x8x1xf32> to vector<8x8x8xf32>
    %94 = arith.mulf %91, %93 : vector<8x8x8xf32>
    %95 = vector.shape_cast %94 : vector<8x8x8xf32> to vector<2x4x8x8xf32>
    %96 = tpu.transpose %95, [0, 2, 1, 3] : vector<2x4x8x8xf32> -> vector<2x8x4x8xf32>
    %97 = vector.shape_cast %96 : vector<2x8x4x8xf32> to vector<16x32xf32>
    %cst_50 = arith.constant dense<0.000000e+00> : vector<16x32xf32>
    %98 = tpu.matmul %97, %56, %cst_50 {dimension_numbers = #tpu.dot_dimension_numbers<[1], [0], [0], [1], [0, 0, 1, 1], [], []>} : vector<16x32xf32>, vector<32x32xf32>, vector<16x32xf32> -> vector<16x32xf32>
    %99 = vector.broadcast %60 : vector<1x32xf32> to vector<16x32xf32>
    %100 = arith.addf %98, %99 : vector<16x32xf32>
    %101 = vector.shape_cast %100 : vector<16x32xf32> to vector<2x8x32xf32>
    %c0_51 = arith.constant 0 : index
    %c0_52 = arith.constant 0 : index
    %102 = vector.load %arg7[%c0_51, %c0_52] : memref<1x32xf32, #tpu.memory_space<vmem>>, vector<1x32xf32>
    %103 = vector.shape_cast %102 : vector<1x32xf32> to vector<1x1x32xf32>
    %104 = vector.broadcast %103 : vector<1x1x32xf32> to vector<2x8x32xf32>
    %105 = arith.mulf %101, %104 : vector<2x8x32xf32>
    %cst_53 = arith.constant dense<0.000000e+00> : vector<2x8xf32>
    %106 = vector.multi_reduction <add>, %105, %cst_53 [2] : vector<2x8x32xf32> to vector<2x8xf32>
    %c0_54 = arith.constant 0 : index
    %c0_55 = arith.constant 0 : index
    %107 = vector.load %arg8[%c0_54, %c0_55] : memref<1x1xf32, #tpu.memory_space<vmem>>, vector<1x1xf32>
    %108 = vector.broadcast %107 : vector<1x1xf32> to vector<2x8xf32>
    %109 = arith.addf %106, %108 : vector<2x8xf32>
    %c0_56 = arith.constant 0 : index
    %c0_57 = arith.constant 0 : index
    %110 = vector.load %arg9[%c0_56, %c0_57] : memref<2x8xf32, #tpu.memory_space<vmem>>, vector<2x8xf32>
    tpu.vector_store %arg9[%c0_56, %c0_57], %109 {strides = array<i32>} : memref<2x8xf32, #tpu.memory_space<vmem>>, vector<2x8xf32>,
    return
  }
}

</mosaic_0001>

<llo_original>
// kernel: tpu_custom_call.1
$region0: #{tpu_custom_call.1}
  #allocation0 [shape = 'u32[]', space=smem, size = 0x4, offset = 0x4, fixed_abs, tag = 'smem constant byte address 0x4 - core index']
  #allocation1 [shape = 'u32[144,128]{1,0:T(1,128)}', space=vmem, size = 0x12000, scoped, tag = 'internal scratch']
  #allocation2 [shape = 'f32[1,1]{1,0:T(1,128)S(1)}', space=vmem, size = 0x200, scoped, tag = 'scoped memory for tpu_custom_call.1']
  %s0 = inlined_call_operand.vmem [shape: f32[2,8,32], index: 0, kind: input, shape index: {}]
  %s1 = inlined_call_operand.vmem [shape: f32[2,8,32], index: 1, kind: input, shape index: {}]
  %s2 = inlined_call_operand.vmem [shape: f32[2,8,32], index: 2, kind: input, shape index: {}]
  %s3 = inlined_call_operand.vmem [shape: f32[128,32], index: 3, kind: input, shape index: {}]
  %s4 = inlined_call_operand.vmem [shape: f32[4,32], index: 4, kind: input, shape index: {}]
  %s5 = inlined_call_operand.vmem [shape: f32[128,32], index: 5, kind: input, shape index: {}]
  %s6 = inlined_call_operand.vmem [shape: f32[4,32], index: 6, kind: input, shape index: {}]
  %s7 = inlined_call_operand.vmem [shape: f32[1,32], index: 7, kind: input, shape index: {}]
  %s8 = inlined_call_operand.<no memory space> [shape: f32[1,1], index: 8, kind: input, shape index: {}]
  %s9 = inlined_call_operand.hbm [shape: f32[2,8], index: 9, kind: output, shape index: {}]
  %s10 = sld [smem:[#allocation0]]
  $region46: #{tpu_custom_call.1} parent=0
    _
  %s12 = ssub.s32 1, %s10
  %s13 = scalar_select 0, %s12, %s10
  %v14 = vstv %s8
  %15 = vst [vmem:[#allocation2] sm:$0x1] %v14
  $region1: #{tpu_custom_call.1} parent=0
    #allocation3 [shape = 'u8[1024]{0}', space=vmem, size = 0x400, scoped, tag = 'output window, operand 0, single buffered']
    #allocation4 [shape = 's32[1]{0}', space=sflag, size = 0x4, scoped, tag = 'scoped memory for tpu_custom_call.1']
    %16 = vsyncpa [#allocation4], 0
    // Predicated region
    $region2: #{tpu_custom_call.1} parent=1 // pred_check
      _
    $region3: #{tpu_custom_call.1} parent=1 // pred_check_branch
      %18 = sbr.rel (0) target = $region5
    $region4: #{tpu_custom_call.1} parent=1 // pred_region
      _
    $region5: #{tpu_custom_call.1} parent=1 // pred_fallthru
      _
    // Predicated region
    $region6: #{tpu_custom_call.1} parent=1 // pred_check
      _
    $region7: #{tpu_custom_call.1} parent=1 // pred_check_branch
      %20 = sbr.rel (0) target = $region9
    $region8: #{tpu_custom_call.1} parent=1 // pred_region
      _
    $region9: #{tpu_custom_call.1} parent=1 // pred_fallthru
      _
    // Predicated region
    $region10: #{tpu_custom_call.1} parent=1 // pred_check
      _
    $region11: #{tpu_custom_call.1} parent=1 // pred_check_branch
      %22 = sbr.rel (0) target = $region13
    $region12: #{tpu_custom_call.1} parent=1 // pred_region
      _
    $region13: #{tpu_custom_call.1} parent=1 // pred_fallthru
      _
    // Predicated region
    $region14: #{tpu_custom_call.1} parent=1 // pred_check
      _
    $region15: #{tpu_custom_call.1} parent=1 // pred_check_branch
      %24 = sbr.rel (0) target = $region17
    $region16: #{tpu_custom_call.1} parent=1 // pred_region
      _
    $region17: #{tpu_custom_call.1} parent=1 // pred_fallthru
      _
    // Predicated region
    $region18: #{tpu_custom_call.1} parent=1 // pred_check
      _
    $region19: #{tpu_custom_call.1} parent=1 // pred_check_branch
      %26 = sbr.rel (0) target = $region21
    $region20: #{tpu_custom_call.1} parent=1 // pred_region
      _
    $region21: #{tpu_custom_call.1} parent=1 // pred_fallthru
      _
    // Predicated region
    $region22: #{tpu_custom_call.1} parent=1 // pred_check
      _
    $region23: #{tpu_custom_call.1} parent=1 // pred_check_branch
      %28 = sbr.rel (0) target = $region25
    $region24: #{tpu_custom_call.1} parent=1 // pred_region
      _
    $region25: #{tpu_custom_call.1} parent=1 // pred_fallthru
      _
    // Predicated region
    $region26: #{tpu_custom_call.1} parent=1 // pred_check
      _
    $region27: #{tpu_custom_call.1} parent=1 // pred_check_branch
      %30 = sbr.rel (0) target = $region29
    $region28: #{tpu_custom_call.1} parent=1 // pred_region
      _
    $region29: #{tpu_custom_call.1} parent=1 // pred_fallthru
      _
    // Predicated region
    $region30: #{tpu_custom_call.1} parent=1 // pred_check
      _
    $region31: #{tpu_custom_call.1} parent=1 // pred_check_branch
      %32 = sbr.rel (0) target = $region33
    $region32: #{tpu_custom_call.1} parent=1 // pred_region
      _
    $region33: #{tpu_custom_call.1} parent=1 // pred_fallthru
      _
    // Predicated region
    $region34: #{tpu_custom_call.1} parent=1 // pred_check
      _
    $region35: #{tpu_custom_call.1} parent=1 // pred_check_branch
      %34 = sbr.rel (0) target = $region37
    $region36: #{tpu_custom_call.1} parent=1 // pred_region
      _
    $region37: #{tpu_custom_call.1} parent=1 // pred_fallthru
      _
    %v35 = vld [vmem:[%s0] sm:$0xff]
    %v36 = vld [vmem:[%s0 + $0x8] sm:$0xff]
    %v37 = vld [vmem:[%s1] sm:$0xff]
    %v38 = vld [vmem:[%s1 + $0x8] sm:$0xff]
    %v39 = vld [vmem:[%s2] sm:$0xff]
    %v40 = vld [vmem:[%s2 + $0x8] sm:$0xff]
    %v41 = vld [vmem:[%s3] sm:$0xff]
    %v42 = vld [vmem:[%s3 + $0x8] sm:$0xff]
    %v43 = vld [vmem:[%s3 + $0x10] sm:$0xff]
    %v44 = vld [vmem:[%s3 + $0x18] sm:$0xff]
    %v45 = vld [vmem:[%s3 + $0x20] sm:$0xff]
    %v46 = vld [vmem:[%s3 + $0x28] sm:$0xff]
    %v47 = vld [vmem:[%s3 + $0x30] sm:$0xff]
    %v48 = vld [vmem:[%s3 + $0x38] sm:$0xff]
    %v49 = vld [vmem:[%s3 + $0x40] sm:$0xff]
    %v50 = vld [vmem:[%s3 + $0x48] sm:$0xff]
    %v51 = vld [vmem:[%s3 + $0x50] sm:$0xff]
    %v52 = vld [vmem:[%s3 + $0x58] sm:$0xff]
    %v53 = vld [vmem:[%s3 + $0x60] sm:$0xff]
    %v54 = vld [vmem:[%s3 + $0x68] sm:$0xff]
    %v55 = vld [vmem:[%s3 + $0x70] sm:$0xff]
    %v56 = vld [vmem:[%s3 + $0x78] sm:$0xff]
    %v57 = vld [vmem:[%s4] sm:$0x1]
    %v58 = vld [vmem:[%s4 + $0x1] sm:$0x1]
    %v59 = vld [vmem:[%s4 + $0x2] sm:$0x1]
    %v60 = vld [vmem:[%s4 + $0x3] sm:$0x1]
    %v61 = vlaneseq
    %v62 = vshrl.u32 %v61, 7
    %v63 = vsub.s32 0, %v62
    %v64 = vrot.slane %v57, %v63
    %vm65 = vcmask 261120
    %v67 = vsel %vm65, %v35, 0
    %v70 = vsel %vm65, %v36, 0
    %72 = vmatprep.subr.mxu0 0.0
    %73 = vmatpush1.msra.mxu0 %v41
    %74 = vmatprep.subr.mxu0 0.0
    %75 = vmatpush1.msra.mxu0 %v42
    %76 = vmatprep.subr.mxu0 0.0
    %77 = vmatpush1.msra.mxu0 %v43
    %78 = vmatprep.subr.mxu0 0.0
    %79 = vmatpush1.msra.mxu0 %v44
    %80 = vmatprep.subr.mxu0 0.0
    %81 = vmatpush1.msra.mxu0 0.0
    %82 = vmatprep.subr.mxu0 0.0
    %83 = vmatpush1.msra.mxu0 0.0
    %84 = vmatprep.subr.mxu0 0.0
    %85 = vmatpush1.msra.mxu0 0.0
    %86 = vmatprep.subr.mxu0 0.0
    %87 = vmatpush1.msra.mxu0 0.0
    %88 = vmatprep.subr.mxu0 0.0
    %89 = vmatpush1.msra.mxu0 0.0
    %90 = vmatprep.subr.mxu0 0.0
    %91 = vmatpush1.msra.mxu0 0.0
    %92 = vmatprep.subr.mxu0 0.0
    %93 = vmatpush1.msra.mxu0 0.0
    %94 = vmatprep.subr.mxu0 0.0
    %95 = vmatpush1.msra.mxu0 0.0
    %96 = vmatprep.subr.mxu0 0.0
    %97 = vmatpush1.msra.mxu0 0.0
    %98 = vmatprep.subr.mxu0 0.0
    %99 = vmatpush1.msra.mxu0 0.0
    %100 = vmatprep.subr.mxu0 0.0
    %101 = vmatpush1.msra.mxu0 0.0
    %102 = vmatprep.subr.mxu0 0.0
    %103 = vmatpush1.msra.mxu0 0.0
    %104 = vmatprep.subr.mxu0 0.0
    %105 = vmatpush1.msra.mxu0 0.0
    %106 = vmatprep.subr.mxu0 0.0
    %107 = vmatpush1.msra.mxu0 0.0
    %108 = vmatprep.subr.mxu0 0.0
    %109 = vmatpush1.msra.mxu0 0.0
    %110 = vmatprep.subr.mxu0 0.0
    %111 = vmatpush1.msra.mxu0 0.0
    %112 = vmatprep.subr.mxu0 0.0
    %113 = vmatpush1.msra.mxu0 0.0
    %114 = vmatprep.subr.mxu0 0.0
    %115 = vmatpush1.msra.mxu0 0.0
    %116 = vmatprep.subr.mxu0 0.0
    %117 = vmatpush1.msra.mxu0 0.0
    %118 = vmatprep.subr.mxu0 0.0
    %119 = vmatpush1.msra.mxu0 0.0
    %120 = vmatprep.subr.mxu0 0.0
    %121 = vmatpush1.msra.mxu0 0.0
    %122 = vmatprep.subr.mxu0 0.0
    %123 = vmatpush1.msra.mxu0 0.0
    %124 = vmatprep.subr.mxu0 0.0
    %125 = vmatpush1.msra.mxu0 0.0
    %126 = vmatprep.subr.mxu0 0.0
    %127 = vmatpush1.msra.mxu0 0.0
    %128 = vmatprep.subr.mxu0 0.0
    %129 = vmatpush1.msra.mxu0 0.0
    %130 = vmatprep.subr.mxu0 0.0
    %131 = vmatpush1.msra.mxu0 0.0
    %132 = vmatprep.subr.mxu0 0.0
    %133 = vmatpush1.msra.mxu0 0.0
    %134 = vmatprep.subr.mxu0 0.0
    %135 = vmatpush1.msra.mxu0 0.0
    %136 = vmatprep.mubr.f32.mxu0 0.0
    %137 = vmatmul.mubr.f32.gmra.mrb[0].mxu0 %v67
    %v138 = vpop.f32.mrb[0].mxu0
    %v139 = vadd.f32 %v64, %v138
    %v140 = vpop.f32.mrb[0].mxu0
    %141 = vmatprep.mubr.f32.mxu0 0.0
    %142 = vmatmul.mubr.f32.gmra.mrb[0].mxu0 %v70
    %v143 = vpop.f32.mrb[0].mxu0
    %v144 = vadd.f32 %v64, %v143
    %v145 = vpop.f32.mrb[0].mxu0
    %146 = vdwg.mxu0
    %v147 = vlaneseq
    %v148 = vshrl.u32 %v147, 7
    %v149 = vsub.s32 0, %v148
    %v150 = vrot.slane %v58, %v149
    %v152 = vsel %vm65, %v37, 0
    %v155 = vsel %vm65, %v38, 0
    %157 = vmatprep.subr.mxu0 0.0
    %158 = vmatpush1.msra.mxu0 %v45
    %159 = vmatprep.subr.mxu0 0.0
    %160 = vmatpush1.msra.mxu0 %v46
    %161 = vmatprep.subr.mxu0 0.0
    %162 = vmatpush1.msra.mxu0 %v47
    %163 = vmatprep.subr.mxu0 0.0
    %164 = vmatpush1.msra.mxu0 %v48
    %165 = vmatprep.subr.mxu0 0.0
    %166 = vmatpush1.msra.mxu0 0.0
    %167 = vmatprep.subr.mxu0 0.0
    %168 = vmatpush1.msra.mxu0 0.0
    %169 = vmatprep.subr.mxu0 0.0
    %170 = vmatpush1.msra.mxu0 0.0
    %171 = vmatprep.subr.mxu0 0.0
    %172 = vmatpush1.msra.mxu0 0.0
    %173 = vmatprep.subr.mxu0 0.0
    %174 = vmatpush1.msra.mxu0 0.0
    %175 = vmatprep.subr.mxu0 0.0
    %176 = vmatpush1.msra.mxu0 0.0
    %177 = vmatprep.subr.mxu0 0.0
    %178 = vmatpush1.msra.mxu0 0.0
    %179 = vmatprep.subr.mxu0 0.0
    %180 = vmatpush1.msra.mxu0 0.0
    %181 = vmatprep.subr.mxu0 0.0
    %182 = vmatpush1.msra.mxu0 0.0
    %183 = vmatprep.subr.mxu0 0.0
    %184 = vmatpush1.msra.mxu0 0.0
    %185 = vmatprep.subr.mxu0 0.0
    %186 = vmatpush1.msra.mxu0 0.0
    %187 = vmatprep.subr.mxu0 0.0
    %188 = vmatpush1.msra.mxu0 0.0
    %189 = vmatprep.subr.mxu0 0.0
    %190 = vmatpush1.msra.mxu0 0.0
    %191 = vmatprep.subr.mxu0 0.0
    %192 = vmatpush1.msra.mxu0 0.0
    %193 = vmatprep.subr.mxu0 0.0
    %194 = vmatpush1.msra.mxu0 0.0
    %195 = vmatprep.subr.mxu0 0.0
    %196 = vmatpush1.msra.mxu0 0.0
    %197 = vmatprep.subr.mxu0 0.0
    %198 = vmatpush1.msra.mxu0 0.0
    %199 = vmatprep.subr.mxu0 0.0
    %200 = vmatpush1.msra.mxu0 0.0
    %201 = vmatprep.subr.mxu0 0.0
    %202 = vmatpush1.msra.mxu0 0.0
    %203 = vmatprep.subr.mxu0 0.0
    %204 = vmatpush1.msra.mxu0 0.0
    %205 = vmatprep.subr.mxu0 0.0
    %206 = vmatpush1.msra.mxu0 0.0
    %207 = vmatprep.subr.mxu0 0.0
    %208 = vmatpush1.msra.mxu0 0.0
    %209 = vmatprep.subr.mxu0 0.0
    %210 = vmatpush1.msra.mxu0 0.0
    %211 = vmatprep.subr.mxu0 0.0
    %212 = vmatpush1.msra.mxu0 0.0
    %213 = vmatprep.subr.mxu0 0.0
    %214 = vmatpush1.msra.mxu0 0.0
    %215 = vmatprep.subr.mxu0 0.0
    %216 = vmatpush1.msra.mxu0 0.0
    %217 = vmatprep.subr.mxu0 0.0
    %218 = vmatpush1.msra.mxu0 0.0
    %219 = vmatprep.subr.mxu0 0.0
    %220 = vmatpush1.msra.mxu0 0.0
    %221 = vmatprep.mubr.f32.mxu0 0.0
    %222 = vmatmul.mubr.f32.gmra.mrb[0].mxu0 %v152
    %v223 = vpop.f32.mrb[0].mxu0
    %v224 = vadd.f32 %v150, %v223
    %v225 = vpop.f32.mrb[0].mxu0
    %226 = vmatprep.mubr.f32.mxu0 0.0
    %227 = vmatmul.mubr.f32.gmra.mrb[0].mxu0 %v155
    %v228 = vpop.f32.mrb[0].mxu0
    %v229 = vadd.f32 %v150, %v228
    %v230 = vpop.f32.mrb[0].mxu0
    %231 = vdwg.mxu0
    %v232 = vlaneseq
    %v233 = vshrl.u32 %v232, 7
    %v234 = vsub.s32 0, %v233
    %v235 = vrot.slane %v59, %v234
    %v237 = vsel %vm65, %v39, 0
    %v240 = vsel %vm65, %v40, 0
    %242 = vmatprep.subr.mxu0 0.0
    %243 = vmatpush1.msra.mxu0 %v49
    %244 = vmatprep.subr.mxu0 0.0
    %245 = vmatpush1.msra.mxu0 %v50
    %246 = vmatprep.subr.mxu0 0.0
    %247 = vmatpush1.msra.mxu0 %v51
    %248 = vmatprep.subr.mxu0 0.0
    %249 = vmatpush1.msra.mxu0 %v52
    %250 = vmatprep.subr.mxu0 0.0
    %251 = vmatpush1.msra.mxu0 0.0
    %252 = vmatprep.subr.mxu0 0.0
    %253 = vmatpush1.msra.mxu0 0.0
    %254 = vmatprep.subr.mxu0 0.0
    %255 = vmatpush1.msra.mxu0 0.0
    %256 = vmatprep.subr.mxu0 0.0
    %257 = vmatpush1.msra.mxu0 0.0
    %258 = vmatprep.subr.mxu0 0.0
    %259 = vmatpush1.msra.mxu0 0.0
    %260 = vmatprep.subr.mxu0 0.0
    %261 = vmatpush1.msra.mxu0 0.0
    %262 = vmatprep.subr.mxu0 0.0
    %263 = vmatpush1.msra.mxu0 0.0
    %264 = vmatprep.subr.mxu0 0.0
    %265 = vmatpush1.msra.mxu0 0.0
    %266 = vmatprep.subr.mxu0 0.0
    %267 = vmatpush1.msra.mxu0 0.0
    %268 = vmatprep.subr.mxu0 0.0
    %269 = vmatpush1.msra.mxu0 0.0
    %270 = vmatprep.subr.mxu0 0.0
    %271 = vmatpush1.msra.mxu0 0.0
    %272 = vmatprep.subr.mxu0 0.0
    %273 = vmatpush1.msra.mxu0 0.0
    %274 = vmatprep.subr.mxu0 0.0
    %275 = vmatpush1.msra.mxu0 0.0
    %276 = vmatprep.subr.mxu0 0.0
    %277 = vmatpush1.msra.mxu0 0.0
    %278 = vmatprep.subr.mxu0 0.0
    %279 = vmatpush1.msra.mxu0 0.0
    %280 = vmatprep.subr.mxu0 0.0
    %281 = vmatpush1.msra.mxu0 0.0
    %282 = vmatprep.subr.mxu0 0.0
    %283 = vmatpush1.msra.mxu0 0.0
    %284 = vmatprep.subr.mxu0 0.0
    %285 = vmatpush1.msra.mxu0 0.0
    %286 = vmatprep.subr.mxu0 0.0
    %287 = vmatpush1.msra.mxu0 0.0
    %288 = vmatprep.subr.mxu0 0.0
    %289 = vmatpush1.msra.mxu0 0.0
    %290 = vmatprep.subr.mxu0 0.0
    %291 = vmatpush1.msra.mxu0 0.0
    %292 = vmatprep.subr.mxu0 0.0
    %293 = vmatpush1.msra.mxu0 0.0
    %294 = vmatprep.subr.mxu0 0.0
    %295 = vmatpush1.msra.mxu0 0.0
    %296 = vmatprep.subr.mxu0 0.0
    %297 = vmatpush1.msra.mxu0 0.0
    %298 = vmatprep.subr.mxu0 0.0
    %299 = vmatpush1.msra.mxu0 0.0
    %300 = vmatprep.subr.mxu0 0.0
    %301 = vmatpush1.msra.mxu0 0.0
    %302 = vmatprep.subr.mxu0 0.0
    %303 = vmatpush1.msra.mxu0 0.0
    %304 = vmatprep.subr.mxu0 0.0
    %305 = vmatpush1.msra.mxu0 0.0
    %306 = vmatprep.mubr.f32.mxu0 0.0
    %307 = vmatmul.mubr.f32.gmra.mrb[0].mxu0 %v237
    %v308 = vpop.f32.mrb[0].mxu0
    %v309 = vadd.f32 %v235, %v308
    %v310 = vpop.f32.mrb[0].mxu0
    %311 = vmatprep.mubr.f32.mxu0 0.0
    %312 = vmatmul.mubr.f32.gmra.mrb[0].mxu0 %v240
    %v313 = vpop.f32.mrb[0].mxu0
    %v314 = vadd.f32 %v235, %v313
    %v315 = vpop.f32.mrb[0].mxu0
    %316 = vdwg.mxu0
    %319 = vrot.lane.b32.xlu0 %v139, 120
    %v320 = vpop.permute.xlu0 %319
    %321 = vrot.lane.b32.xlu0 %v144, 120
    %v322 = vpop.permute.xlu0 %321
    %325 = vrot.lane.b32.xlu0 %v139, 112
    %v326 = vpop.permute.xlu0 %325
    %327 = vrot.lane.b32.xlu0 %v144, 112
    %v328 = vpop.permute.xlu0 %327
    %331 = vrot.lane.b32.xlu0 %v139, 104
    %v332 = vpop.permute.xlu0 %331
    %333 = vrot.lane.b32.xlu0 %v144, 104
    %v334 = vpop.permute.xlu0 %333
    %v337 = vcombine.low %v139, %v326
    %v338 = vcombine.high %v139, %v326
    %v340 = vunpack.c.l.s4 1983009808
    %v341 = vunpack.c.0.s8 %v340
    %v342 = vlaneseq
    %v343 = vshrl.u32 %v342, 7
    %v344 = vsub.s32 %v341, %v343
    %v345 = vrot.slane %v337, %v344
    %v347 = vunpack.c.l.s4 1983009808
    %v348 = vunpack.c.0.s8 %v347
    %v349 = vlaneseq
    %v350 = vshrl.u32 %v349, 7
    %v351 = vsub.s32 %v348, %v350
    %v352 = vrot.slane %v338, %v351
    %v353 = vcombine.low %v320, %v332
    %v354 = vcombine.high %v320, %v332
    %v356 = vunpack.c.l.s4 1983009808
    %v357 = vunpack.c.0.s8 %v356
    %v358 = vlaneseq
    %v359 = vshrl.u32 %v358, 7
    %v360 = vsub.s32 %v357, %v359
    %v361 = vrot.slane %v353, %v360
    %v363 = vunpack.c.l.s4 1983009808
    %v364 = vunpack.c.0.s8 %v363
    %v365 = vlaneseq
    %v366 = vshrl.u32 %v365, 7
    %v367 = vsub.s32 %v364, %v366
    %v368 = vrot.slane %v354, %v367
    %v369 = vcombine.low %v345, %v361
    %v370 = vcombine.high %v345, %v361
    %v372 = vunpack.c.l.s4 1934713408
    %v373 = vunpack.c.0.s8 %v372
    %v374 = vlaneseq
    %v375 = vshrl.u32 %v374, 7
    %v376 = vsub.s32 %v373, %v375
    %v377 = vrot.slane %v369, %v376
    %v379 = vunpack.c.l.s4 1934713408
    %v380 = vunpack.c.0.s8 %v379
    %v381 = vlaneseq
    %v382 = vshrl.u32 %v381, 7
    %v383 = vsub.s32 %v380, %v382
    %v384 = vrot.slane %v370, %v383
    %v385 = vcombine.low %v352, %v368
    %v386 = vcombine.high %v352, %v368
    %v388 = vunpack.c.l.s4 1934713408
    %v389 = vunpack.c.0.s8 %v388
    %v390 = vlaneseq
    %v391 = vshrl.u32 %v390, 7
    %v392 = vsub.s32 %v389, %v391
    %v393 = vrot.slane %v385, %v392
    %v395 = vunpack.c.l.s4 1934713408
    %v396 = vunpack.c.0.s8 %v395
    %v397 = vlaneseq
    %v398 = vshrl.u32 %v397, 7
    %v399 = vsub.s32 %v396, %v398
    %v400 = vrot.slane %v386, %v399
    %v401 = vcombine.high %v377, 0.0
    %v402 = vcombine.high %v384, 0.0
    %v403 = vcombine.high %v393, 0.0
    %v404 = vcombine.high %v400, 0.0
    %v405 = vcombine.low %v144, %v328
    %v406 = vcombine.high %v144, %v328
    %v408 = vunpack.c.l.s4 1983009808
    %v409 = vunpack.c.0.s8 %v408
    %v410 = vlaneseq
    %v411 = vshrl.u32 %v410, 7
    %v412 = vsub.s32 %v409, %v411
    %v413 = vrot.slane %v405, %v412
    %v415 = vunpack.c.l.s4 1983009808
    %v416 = vunpack.c.0.s8 %v415
    %v417 = vlaneseq
    %v418 = vshrl.u32 %v417, 7
    %v419 = vsub.s32 %v416, %v418
    %v420 = vrot.slane %v406, %v419
    %v421 = vcombine.low %v322, %v334
    %v422 = vcombine.high %v322, %v334
    %v424 = vunpack.c.l.s4 1983009808
    %v425 = vunpack.c.0.s8 %v424
    %v426 = vlaneseq
    %v427 = vshrl.u32 %v426, 7
    %v428 = vsub.s32 %v425, %v427
    %v429 = vrot.slane %v421, %v428
    %v431 = vunpack.c.l.s4 1983009808
    %v432 = vunpack.c.0.s8 %v431
    %v433 = vlaneseq
    %v434 = vshrl.u32 %v433, 7
    %v435 = vsub.s32 %v432, %v434
    %v436 = vrot.slane %v422, %v435
    %v437 = vcombine.low %v413, %v429
    %v438 = vcombine.high %v413, %v429
    %v440 = vunpack.c.l.s4 1934713408
    %v441 = vunpack.c.0.s8 %v440
    %v442 = vlaneseq
    %v443 = vshrl.u32 %v442, 7
    %v444 = vsub.s32 %v441, %v443
    %v445 = vrot.slane %v437, %v444
    %v447 = vunpack.c.l.s4 1934713408
    %v448 = vunpack.c.0.s8 %v447
    %v449 = vlaneseq
    %v450 = vshrl.u32 %v449, 7
    %v451 = vsub.s32 %v448, %v450
    %v452 = vrot.slane %v438, %v451
    %v453 = vcombine.low %v420, %v436
    %v454 = vcombine.high %v420, %v436
    %v456 = vunpack.c.l.s4 1934713408
    %v457 = vunpack.c.0.s8 %v456
    %v458 = vlaneseq
    %v459 = vshrl.u32 %v458, 7
    %v460 = vsub.s32 %v457, %v459
    %v461 = vrot.slane %v453, %v460
    %v463 = vunpack.c.l.s4 1934713408
    %v464 = vunpack.c.0.s8 %v463
    %v465 = vlaneseq
    %v466 = vshrl.u32 %v465, 7
    %v467 = vsub.s32 %v464, %v466
    %v468 = vrot.slane %v454, %v467
    %v469 = vcombine.high %v445, 0.0
    %v470 = vcombine.high %v452, 0.0
    %v471 = vcombine.high %v461, 0.0
    %v472 = vcombine.high %v468, 0.0
    %v473 = vcombine.low %v377, %v384
    %v475 = vunpack.c.l.s4 1983009808
    %v476 = vunpack.c.0.s8 %v475
    %v477 = vlaneseq
    %v478 = vshrl.u32 %v477, 7
    %v479 = vsub.s32 %v476, %v478
    %v480 = vrot.slane %v473, %v479
    %v481 = vcombine.low %v401, %v402
    %v483 = vunpack.c.l.s4 1983009808
    %v484 = vunpack.c.0.s8 %v483
    %v485 = vlaneseq
    %v486 = vshrl.u32 %v485, 7
    %v487 = vsub.s32 %v484, %v486
    %v488 = vrot.slane %v481, %v487
    %v489 = vcombine.low %v393, %v400
    %v491 = vunpack.c.l.s4 1983009808
    %v492 = vunpack.c.0.s8 %v491
    %v493 = vlaneseq
    %v494 = vshrl.u32 %v493, 7
    %v495 = vsub.s32 %v492, %v494
    %v496 = vrot.slane %v489, %v495
    %v497 = vcombine.low %v403, %v404
    %v499 = vunpack.c.l.s4 1983009808
    %v500 = vunpack.c.0.s8 %v499
    %v501 = vlaneseq
    %v502 = vshrl.u32 %v501, 7
    %v503 = vsub.s32 %v500, %v502
    %v504 = vrot.slane %v497, %v503
    %v505 = vcombine.low %v480, %v488
    %v506 = vcombine.high %v480, %v488
    %v508 = vunpack.c.l.s4 1934713408
    %v509 = vunpack.c.0.s8 %v508
    %v510 = vlaneseq
    %v511 = vshrl.u32 %v510, 7
    %v512 = vsub.s32 %v509, %v511
    %v513 = vrot.slane %v505, %v512
    %v515 = vunpack.c.l.s4 1934713408
    %v516 = vunpack.c.0.s8 %v515
    %v517 = vlaneseq
    %v518 = vshrl.u32 %v517, 7
    %v519 = vsub.s32 %v516, %v518
    %v520 = vrot.slane %v506, %v519
    %v521 = vcombine.low %v496, %v504
    %v522 = vcombine.high %v496, %v504
    %v524 = vunpack.c.l.s4 1934713408
    %v525 = vunpack.c.0.s8 %v524
    %v526 = vlaneseq
    %v527 = vshrl.u32 %v526, 7
    %v528 = vsub.s32 %v525, %v527
    %v529 = vrot.slane %v521, %v528
    %v531 = vunpack.c.l.s4 1934713408
    %v532 = vunpack.c.0.s8 %v531
    %v533 = vlaneseq
    %v534 = vshrl.u32 %v533, 7
    %v535 = vsub.s32 %v532, %v534
    %v536 = vrot.slane %v522, %v535
    %v537 = vcombine.low %v513, %v529
    %v538 = vcombine.high %v513, %v529
    %v539 = vcombine.low %v520, %v536
    %v540 = vcombine.high %v520, %v536
    %v541 = vcombine.low %v445, %v452
    %v543 = vunpack.c.l.s4 1983009808
    %v544 = vunpack.c.0.s8 %v543
    %v545 = vlaneseq
    %v546 = vshrl.u32 %v545, 7
    %v547 = vsub.s32 %v544, %v546
    %v548 = vrot.slane %v541, %v547
    %v549 = vcombine.low %v469, %v470
    %v551 = vunpack.c.l.s4 1983009808
    %v552 = vunpack.c.0.s8 %v551
    %v553 = vlaneseq
    %v554 = vshrl.u32 %v553, 7
    %v555 = vsub.s32 %v552, %v554
    %v556 = vrot.slane %v549, %v555
    %v557 = vcombine.low %v461, %v468
    %v559 = vunpack.c.l.s4 1983009808
    %v560 = vunpack.c.0.s8 %v559
    %v561 = vlaneseq
    %v562 = vshrl.u32 %v561, 7
    %v563 = vsub.s32 %v560, %v562
    %v564 = vrot.slane %v557, %v563
    %v565 = vcombine.low %v471, %v472
    %v567 = vunpack.c.l.s4 1983009808
    %v568 = vunpack.c.0.s8 %v567
    %v569 = vlaneseq
    %v570 = vshrl.u32 %v569, 7
    %v571 = vsub.s32 %v568, %v570
    %v572 = vrot.slane %v565, %v571
    %v573 = vcombine.low %v548, %v556
    %v574 = vcombine.high %v548, %v556
    %v576 = vunpack.c.l.s4 1934713408
    %v577 = vunpack.c.0.s8 %v576
    %v578 = vlaneseq
    %v579 = vshrl.u32 %v578, 7
    %v580 = vsub.s32 %v577, %v579
    %v581 = vrot.slane %v573, %v580
    %v583 = vunpack.c.l.s4 1934713408
    %v584 = vunpack.c.0.s8 %v583
    %v585 = vlaneseq
    %v586 = vshrl.u32 %v585, 7
    %v587 = vsub.s32 %v584, %v586
    %v588 = vrot.slane %v574, %v587
    %v589 = vcombine.low %v564, %v572
    %v590 = vcombine.high %v564, %v572
    %v592 = vunpack.c.l.s4 1934713408
    %v593 = vunpack.c.0.s8 %v592
    %v594 = vlaneseq
    %v595 = vshrl.u32 %v594, 7
    %v596 = vsub.s32 %v593, %v595
    %v597 = vrot.slane %v589, %v596
    %v599 = vunpack.c.l.s4 1934713408
    %v600 = vunpack.c.0.s8 %v599
    %v601 = vlaneseq
    %v602 = vshrl.u32 %v601, 7
    %v603 = vsub.s32 %v600, %v602
    %v604 = vrot.slane %v590, %v603
    %v605 = vcombine.low %v581, %v597
    %v606 = vcombine.high %v581, %v597
    %v607 = vcombine.low %v588, %v604
    %v608 = vcombine.high %v588, %v604
    %611 = vrot.lane.b32.xlu0 %v224, 120
    %v612 = vpop.permute.xlu0 %611
    %613 = vrot.lane.b32.xlu0 %v229, 120
    %v614 = vpop.permute.xlu0 %613
    %617 = vrot.lane.b32.xlu0 %v224, 112
    %v618 = vpop.permute.xlu0 %617
    %619 = vrot.lane.b32.xlu0 %v229, 112
    %v620 = vpop.permute.xlu0 %619
    %623 = vrot.lane.b32.xlu0 %v224, 104
    %v624 = vpop.permute.xlu0 %623
    %625 = vrot.lane.b32.xlu0 %v229, 104
    %v626 = vpop.permute.xlu0 %625
    %v629 = vcombine.low %v224, %v618
    %v630 = vcombine.high %v224, %v618
    %v632 = vunpack.c.l.s4 1983009808
    %v633 = vunpack.c.0.s8 %v632
    %v634 = vlaneseq
    %v635 = vshrl.u32 %v634, 7
    %v636 = vsub.s32 %v633, %v635
    %v637 = vrot.slane %v629, %v636
    %v639 = vunpack.c.l.s4 1983009808
    %v640 = vunpack.c.0.s8 %v639
    %v641 = vlaneseq
    %v642 = vshrl.u32 %v641, 7
    %v643 = vsub.s32 %v640, %v642
    %v644 = vrot.slane %v630, %v643
    %v645 = vcombine.low %v612, %v624
    %v646 = vcombine.high %v612, %v624
    %v648 = vunpack.c.l.s4 1983009808
    %v649 = vunpack.c.0.s8 %v648
    %v650 = vlaneseq
    %v651 = vshrl.u32 %v650, 7
    %v652 = vsub.s32 %v649, %v651
    %v653 = vrot.slane %v645, %v652
    %v655 = vunpack.c.l.s4 1983009808
    %v656 = vunpack.c.0.s8 %v655
    %v657 = vlaneseq
    %v658 = vshrl.u32 %v657, 7
    %v659 = vsub.s32 %v656, %v658
    %v660 = vrot.slane %v646, %v659
    %v661 = vcombine.low %v637, %v653
    %v662 = vcombine.high %v637, %v653
    %v664 = vunpack.c.l.s4 1934713408
    %v665 = vunpack.c.0.s8 %v664
    %v666 = vlaneseq
    %v667 = vshrl.u32 %v666, 7
    %v668 = vsub.s32 %v665, %v667
    %v669 = vrot.slane %v661, %v668
    %v671 = vunpack.c.l.s4 1934713408
    %v672 = vunpack.c.0.s8 %v671
    %v673 = vlaneseq
    %v674 = vshrl.u32 %v673, 7
    %v675 = vsub.s32 %v672, %v674
    %v676 = vrot.slane %v662, %v675
    %v677 = vcombine.low %v644, %v660
    %v678 = vcombine.high %v644, %v660
    %v680 = vunpack.c.l.s4 1934713408
    %v681 = vunpack.c.0.s8 %v680
    %v682 = vlaneseq
    %v683 = vshrl.u32 %v682, 7
    %v684 = vsub.s32 %v681, %v683
    %v685 = vrot.slane %v677, %v684
    %v687 = vunpack.c.l.s4 1934713408
    %v688 = vunpack.c.0.s8 %v687
    %v689 = vlaneseq
    %v690 = vshrl.u32 %v689, 7
    %v691 = vsub.s32 %v688, %v690
    %v692 = vrot.slane %v678, %v691
    %v693 = vcombine.high %v669, 0.0
    %v694 = vcombine.high %v676, 0.0
    %v695 = vcombine.high %v685, 0.0
    %v696 = vcombine.high %v692, 0.0
    %v697 = vcombine.low %v229, %v620
    %v698 = vcombine.high %v229, %v620
    %v700 = vunpack.c.l.s4 1983009808
    %v701 = vunpack.c.0.s8 %v700
    %v702 = vlaneseq
    %v703 = vshrl.u32 %v702, 7
    %v704 = vsub.s32 %v701, %v703
    %v705 = vrot.slane %v697, %v704
    %v707 = vunpack.c.l.s4 1983009808
    %v708 = vunpack.c.0.s8 %v707
    %v709 = vlaneseq
    %v710 = vshrl.u32 %v709, 7
    %v711 = vsub.s32 %v708, %v710
    %v712 = vrot.slane %v698, %v711
    %v713 = vcombine.low %v614, %v626
    %v714 = vcombine.high %v614, %v626
    %v716 = vunpack.c.l.s4 1983009808
    %v717 = vunpack.c.0.s8 %v716
    %v718 = vlaneseq
    %v719 = vshrl.u32 %v718, 7
    %v720 = vsub.s32 %v717, %v719
    %v721 = vrot.slane %v713, %v720
    %v723 = vunpack.c.l.s4 1983009808
    %v724 = vunpack.c.0.s8 %v723
    %v725 = vlaneseq
    %v726 = vshrl.u32 %v725, 7
    %v727 = vsub.s32 %v724, %v726
    %v728 = vrot.slane %v714, %v727
    %v729 = vcombine.low %v705, %v721
    %v730 = vcombine.high %v705, %v721
    %v732 = vunpack.c.l.s4 1934713408
    %v733 = vunpack.c.0.s8 %v732
    %v734 = vlaneseq
    %v735 = vshrl.u32 %v734, 7
    %v736 = vsub.s32 %v733, %v735
    %v737 = vrot.slane %v729, %v736
    %v739 = vunpack.c.l.s4 1934713408
    %v740 = vunpack.c.0.s8 %v739
    %v741 = vlaneseq
    %v742 = vshrl.u32 %v741, 7
    %v743 = vsub.s32 %v740, %v742
    %v744 = vrot.slane %v730, %v743
    %v745 = vcombine.low %v712, %v728
    %v746 = vcombine.high %v712, %v728
    %v748 = vunpack.c.l.s4 1934713408
    %v749 = vunpack.c.0.s8 %v748
    %v750 = vlaneseq
    %v751 = vshrl.u32 %v750, 7
    %v752 = vsub.s32 %v749, %v751
    %v753 = vrot.slane %v745, %v752
    %v755 = vunpack.c.l.s4 1934713408
    %v756 = vunpack.c.0.s8 %v755
    %v757 = vlaneseq
    %v758 = vshrl.u32 %v757, 7
    %v759 = vsub.s32 %v756, %v758
    %v760 = vrot.slane %v746, %v759
    %v761 = vcombine.high %v737, 0.0
    %v762 = vcombine.high %v744, 0.0
    %v763 = vcombine.high %v753, 0.0
    %v764 = vcombine.high %v760, 0.0
    %v765 = vcombine.low %v669, %v676
    %v767 = vunpack.c.l.s4 1983009808
    %v768 = vunpack.c.0.s8 %v767
    %v769 = vlaneseq
    %v770 = vshrl.u32 %v769, 7
    %v771 = vsub.s32 %v768, %v770
    %v772 = vrot.slane %v765, %v771
    %v773 = vcombine.low %v693, %v694
    %v775 = vunpack.c.l.s4 1983009808
    %v776 = vunpack.c.0.s8 %v775
    %v777 = vlaneseq
    %v778 = vshrl.u32 %v777, 7
    %v779 = vsub.s32 %v776, %v778
    %v780 = vrot.slane %v773, %v779
    %v781 = vcombine.low %v685, %v692
    %v783 = vunpack.c.l.s4 1983009808
    %v784 = vunpack.c.0.s8 %v783
    %v785 = vlaneseq
    %v786 = vshrl.u32 %v785, 7
    %v787 = vsub.s32 %v784, %v786
    %v788 = vrot.slane %v781, %v787
    %v789 = vcombine.low %v695, %v696
    %v791 = vunpack.c.l.s4 1983009808
    %v792 = vunpack.c.0.s8 %v791
    %v793 = vlaneseq
    %v794 = vshrl.u32 %v793, 7
    %v795 = vsub.s32 %v792, %v794
    %v796 = vrot.slane %v789, %v795
    %v797 = vcombine.low %v772, %v780
    %v798 = vcombine.high %v772, %v780
    %v800 = vunpack.c.l.s4 1934713408
    %v801 = vunpack.c.0.s8 %v800
    %v802 = vlaneseq
    %v803 = vshrl.u32 %v802, 7
    %v804 = vsub.s32 %v801, %v803
    %v805 = vrot.slane %v797, %v804
    %v807 = vunpack.c.l.s4 1934713408
    %v808 = vunpack.c.0.s8 %v807
    %v809 = vlaneseq
    %v810 = vshrl.u32 %v809, 7
    %v811 = vsub.s32 %v808, %v810
    %v812 = vrot.slane %v798, %v811
    %v813 = vcombine.low %v788, %v796
    %v814 = vcombine.high %v788, %v796
    %v816 = vunpack.c.l.s4 1934713408
    %v817 = vunpack.c.0.s8 %v816
    %v818 = vlaneseq
    %v819 = vshrl.u32 %v818, 7
    %v820 = vsub.s32 %v817, %v819
    %v821 = vrot.slane %v813, %v820
    %v823 = vunpack.c.l.s4 1934713408
    %v824 = vunpack.c.0.s8 %v823
    %v825 = vlaneseq
    %v826 = vshrl.u32 %v825, 7
    %v827 = vsub.s32 %v824, %v826
    %v828 = vrot.slane %v814, %v827
    %v829 = vcombine.low %v805, %v821
    %v830 = vcombine.high %v805, %v821
    %v831 = vcombine.low %v812, %v828
    %v832 = vcombine.high %v812, %v828
    %v833 = vcombine.low %v737, %v744
    %v835 = vunpack.c.l.s4 1983009808
    %v836 = vunpack.c.0.s8 %v835
    %v837 = vlaneseq
    %v838 = vshrl.u32 %v837, 7
    %v839 = vsub.s32 %v836, %v838
    %v840 = vrot.slane %v833, %v839
    %v841 = vcombine.low %v761, %v762
    %v843 = vunpack.c.l.s4 1983009808
    %v844 = vunpack.c.0.s8 %v843
    %v845 = vlaneseq
    %v846 = vshrl.u32 %v845, 7
    %v847 = vsub.s32 %v844, %v846
    %v848 = vrot.slane %v841, %v847
    %v849 = vcombine.low %v753, %v760
    %v851 = vunpack.c.l.s4 1983009808
    %v852 = vunpack.c.0.s8 %v851
    %v853 = vlaneseq
    %v854 = vshrl.u32 %v853, 7
    %v855 = vsub.s32 %v852, %v854
    %v856 = vrot.slane %v849, %v855
    %v857 = vcombine.low %v763, %v764
    %v859 = vunpack.c.l.s4 1983009808
    %v860 = vunpack.c.0.s8 %v859
    %v861 = vlaneseq
    %v862 = vshrl.u32 %v861, 7
    %v863 = vsub.s32 %v860, %v862
    %v864 = vrot.slane %v857, %v863
    %v865 = vcombine.low %v840, %v848
    %v866 = vcombine.high %v840, %v848
    %v868 = vunpack.c.l.s4 1934713408
    %v869 = vunpack.c.0.s8 %v868
    %v870 = vlaneseq
    %v871 = vshrl.u32 %v870, 7
    %v872 = vsub.s32 %v869, %v871
    %v873 = vrot.slane %v865, %v872
    %v875 = vunpack.c.l.s4 1934713408
    %v876 = vunpack.c.0.s8 %v875
    %v877 = vlaneseq
    %v878 = vshrl.u32 %v877, 7
    %v879 = vsub.s32 %v876, %v878
    %v880 = vrot.slane %v866, %v879
    %v881 = vcombine.low %v856, %v864
    %v882 = vcombine.high %v856, %v864
    %v884 = vunpack.c.l.s4 1934713408
    %v885 = vunpack.c.0.s8 %v884
    %v886 = vlaneseq
    %v887 = vshrl.u32 %v886, 7
    %v888 = vsub.s32 %v885, %v887
    %v889 = vrot.slane %v881, %v888
    %v891 = vunpack.c.l.s4 1934713408
    %v892 = vunpack.c.0.s8 %v891
    %v893 = vlaneseq
    %v894 = vshrl.u32 %v893, 7
    %v895 = vsub.s32 %v892, %v894
    %v896 = vrot.slane %v882, %v895
    %v897 = vcombine.low %v873, %v889
    %v898 = vcombine.high %v873, %v889
    %v899 = vcombine.low %v880, %v896
    %v900 = vcombine.high %v880, %v896
    %903 = vrot.lane.b32.xlu0 %v309, 120
    %v904 = vpop.permute.xlu0 %903
    %905 = vrot.lane.b32.xlu0 %v314, 120
    %v906 = vpop.permute.xlu0 %905
    %909 = vrot.lane.b32.xlu0 %v309, 112
    %v910 = vpop.permute.xlu0 %909
    %911 = vrot.lane.b32.xlu0 %v314, 112
    %v912 = vpop.permute.xlu0 %911
    %915 = vrot.lane.b32.xlu0 %v309, 104
    %v916 = vpop.permute.xlu0 %915
    %917 = vrot.lane.b32.xlu0 %v314, 104
    %v918 = vpop.permute.xlu0 %917
    %v921 = vcombine.low %v309, %v910
    %v922 = vcombine.high %v309, %v910
    %v924 = vunpack.c.l.s4 1983009808
    %v925 = vunpack.c.0.s8 %v924
    %v926 = vlaneseq
    %v927 = vshrl.u32 %v926, 7
    %v928 = vsub.s32 %v925, %v927
    %v929 = vrot.slane %v921, %v928
    %v931 = vunpack.c.l.s4 1983009808
    %v932 = vunpack.c.0.s8 %v931
    %v933 = vlaneseq
    %v934 = vshrl.u32 %v933, 7
    %v935 = vsub.s32 %v932, %v934
    %v936 = vrot.slane %v922, %v935
    %v937 = vcombine.low %v904, %v916
    %v938 = vcombine.high %v904, %v916
    %v940 = vunpack.c.l.s4 1983009808
    %v941 = vunpack.c.0.s8 %v940
    %v942 = vlaneseq
    %v943 = vshrl.u32 %v942, 7
    %v944 = vsub.s32 %v941, %v943
    %v945 = vrot.slane %v937, %v944
    %v947 = vunpack.c.l.s4 1983009808
    %v948 = vunpack.c.0.s8 %v947
    %v949 = vlaneseq
    %v950 = vshrl.u32 %v949, 7
    %v951 = vsub.s32 %v948, %v950
    %v952 = vrot.slane %v938, %v951
    %v953 = vcombine.low %v929, %v945
    %v954 = vcombine.high %v929, %v945
    %v956 = vunpack.c.l.s4 1934713408
    %v957 = vunpack.c.0.s8 %v956
    %v958 = vlaneseq
    %v959 = vshrl.u32 %v958, 7
    %v960 = vsub.s32 %v957, %v959
    %v961 = vrot.slane %v953, %v960
    %v963 = vunpack.c.l.s4 1934713408
    %v964 = vunpack.c.0.s8 %v963
    %v965 = vlaneseq
    %v966 = vshrl.u32 %v965, 7
    %v967 = vsub.s32 %v964, %v966
    %v968 = vrot.slane %v954, %v967
    %v969 = vcombine.low %v936, %v952
    %v970 = vcombine.high %v936, %v952
    %v972 = vunpack.c.l.s4 1934713408
    %v973 = vunpack.c.0.s8 %v972
    %v974 = vlaneseq
    %v975 = vshrl.u32 %v974, 7
    %v976 = vsub.s32 %v973, %v975
    %v977 = vrot.slane %v969, %v976
    %v979 = vunpack.c.l.s4 1934713408
    %v980 = vunpack.c.0.s8 %v979
    %v981 = vlaneseq
    %v982 = vshrl.u32 %v981, 7
    %v983 = vsub.s32 %v980, %v982
    %v984 = vrot.slane %v970, %v983
    %v985 = vcombine.high %v961, 0.0
    %v986 = vcombine.high %v968, 0.0
    %v987 = vcombine.high %v977, 0.0
    %v988 = vcombine.high %v984, 0.0
    %v989 = vcombine.low %v314, %v912
    %v990 = vcombine.high %v314, %v912
    %v992 = vunpack.c.l.s4 1983009808
    %v993 = vunpack.c.0.s8 %v992
    %v994 = vlaneseq
    %v995 = vshrl.u32 %v994, 7
    %v996 = vsub.s32 %v993, %v995
    %v997 = vrot.slane %v989, %v996
    %v999 = vunpack.c.l.s4 1983009808
    %v1000 = vunpack.c.0.s8 %v999
    %v1001 = vlaneseq
    %v1002 = vshrl.u32 %v1001, 7
    %v1003 = vsub.s32 %v1000, %v1002
    %v1004 = vrot.slane %v990, %v1003
    %v1005 = vcombine.low %v906, %v918
    %v1006 = vcombine.high %v906, %v918
    %v1008 = vunpack.c.l.s4 1983009808
    %v1009 = vunpack.c.0.s8 %v1008
    %v1010 = vlaneseq
    %v1011 = vshrl.u32 %v1010, 7
    %v1012 = vsub.s32 %v1009, %v1011
    %v1013 = vrot.slane %v1005, %v1012
    %v1015 = vunpack.c.l.s4 1983009808
    %v1016 = vunpack.c.0.s8 %v1015
    %v1017 = vlaneseq
    %v1018 = vshrl.u32 %v1017, 7
    %v1019 = vsub.s32 %v1016, %v1018
    %v1020 = vrot.slane %v1006, %v1019
    %v1021 = vcombine.low %v997, %v1013
    %v1022 = vcombine.high %v997, %v1013
    %v1024 = vunpack.c.l.s4 1934713408
    %v1025 = vunpack.c.0.s8 %v1024
    %v1026 = vlaneseq
    %v1027 = vshrl.u32 %v1026, 7
    %v1028 = vsub.s32 %v1025, %v1027
    %v1029 = vrot.slane %v1021, %v1028
    %v1031 = vunpack.c.l.s4 1934713408
    %v1032 = vunpack.c.0.s8 %v1031
    %v1033 = vlaneseq
    %v1034 = vshrl.u32 %v1033, 7
    %v1035 = vsub.s32 %v1032, %v1034
    %v1036 = vrot.slane %v1022, %v1035
    %v1037 = vcombine.low %v1004, %v1020
    %v1038 = vcombine.high %v1004, %v1020
    %v1040 = vunpack.c.l.s4 1934713408
    %v1041 = vunpack.c.0.s8 %v1040
    %v1042 = vlaneseq
    %v1043 = vshrl.u32 %v1042, 7
    %v1044 = vsub.s32 %v1041, %v1043
    %v1045 = vrot.slane %v1037, %v1044
    %v1047 = vunpack.c.l.s4 1934713408
    %v1048 = vunpack.c.0.s8 %v1047
    %v1049 = vlaneseq
    %v1050 = vshrl.u32 %v1049, 7
    %v1051 = vsub.s32 %v1048, %v1050
    %v1052 = vrot.slane %v1038, %v1051
    %v1053 = vcombine.high %v1029, 0.0
    %v1054 = vcombine.high %v1036, 0.0
    %v1055 = vcombine.high %v1045, 0.0
    %v1056 = vcombine.high %v1052, 0.0
    %v1057 = vcombine.low %v961, %v968
    %v1059 = vunpack.c.l.s4 1983009808
    %v1060 = vunpack.c.0.s8 %v1059
    %v1061 = vlaneseq
    %v1062 = vshrl.u32 %v1061, 7
    %v1063 = vsub.s32 %v1060, %v1062
    %v1064 = vrot.slane %v1057, %v1063
    %v1065 = vcombine.low %v985, %v986
    %v1067 = vunpack.c.l.s4 1983009808
    %v1068 = vunpack.c.0.s8 %v1067
    %v1069 = vlaneseq
    %v1070 = vshrl.u32 %v1069, 7
    %v1071 = vsub.s32 %v1068, %v1070
    %v1072 = vrot.slane %v1065, %v1071
    %v1073 = vcombine.low %v977, %v984
    %v1075 = vunpack.c.l.s4 1983009808
    %v1076 = vunpack.c.0.s8 %v1075
    %v1077 = vlaneseq
    %v1078 = vshrl.u32 %v1077, 7
    %v1079 = vsub.s32 %v1076, %v1078
    %v1080 = vrot.slane %v1073, %v1079
    %v1081 = vcombine.low %v987, %v988
    %v1083 = vunpack.c.l.s4 1983009808
    %v1084 = vunpack.c.0.s8 %v1083
    %v1085 = vlaneseq
    %v1086 = vshrl.u32 %v1085, 7
    %v1087 = vsub.s32 %v1084, %v1086
    %v1088 = vrot.slane %v1081, %v1087
    %v1089 = vcombine.low %v1064, %v1072
    %v1090 = vcombine.high %v1064, %v1072
    %v1092 = vunpack.c.l.s4 1934713408
    %v1093 = vunpack.c.0.s8 %v1092
    %v1094 = vlaneseq
    %v1095 = vshrl.u32 %v1094, 7
    %v1096 = vsub.s32 %v1093, %v1095
    %v1097 = vrot.slane %v1089, %v1096
    %v1099 = vunpack.c.l.s4 1934713408
    %v1100 = vunpack.c.0.s8 %v1099
    %v1101 = vlaneseq
    %v1102 = vshrl.u32 %v1101, 7
    %v1103 = vsub.s32 %v1100, %v1102
    %v1104 = vrot.slane %v1090, %v1103
    %v1105 = vcombine.low %v1080, %v1088
    %v1106 = vcombine.high %v1080, %v1088
    %v1108 = vunpack.c.l.s4 1934713408
    %v1109 = vunpack.c.0.s8 %v1108
    %v1110 = vlaneseq
    %v1111 = vshrl.u32 %v1110, 7
    %v1112 = vsub.s32 %v1109, %v1111
    %v1113 = vrot.slane %v1105, %v1112
    %v1115 = vunpack.c.l.s4 1934713408
    %v1116 = vunpack.c.0.s8 %v1115
    %v1117 = vlaneseq
    %v1118 = vshrl.u32 %v1117, 7
    %v1119 = vsub.s32 %v1116, %v1118
    %v1120 = vrot.slane %v1106, %v1119
    %v1121 = vcombine.low %v1097, %v1113
    %v1122 = vcombine.high %v1097, %v1113
    %v1123 = vcombine.low %v1104, %v1120
    %v1124 = vcombine.high %v1104, %v1120
    %v1125 = vcombine.low %v1029, %v1036
    %v1127 = vunpack.c.l.s4 1983009808
    %v1128 = vunpack.c.0.s8 %v1127
    %v1129 = vlaneseq
    %v1130 = vshrl.u32 %v1129, 7
    %v1131 = vsub.s32 %v1128, %v1130
    %v1132 = vrot.slane %v1125, %v1131
    %v1133 = vcombine.low %v1053, %v1054
    %v1135 = vunpack.c.l.s4 1983009808
    %v1136 = vunpack.c.0.s8 %v1135
    %v1137 = vlaneseq
    %v1138 = vshrl.u32 %v1137, 7
    %v1139 = vsub.s32 %v1136, %v1138
    %v1140 = vrot.slane %v1133, %v1139
    %v1141 = vcombine.low %v1045, %v1052
    %v1143 = vunpack.c.l.s4 1983009808
    %v1144 = vunpack.c.0.s8 %v1143
    %v1145 = vlaneseq
    %v1146 = vshrl.u32 %v1145, 7
    %v1147 = vsub.s32 %v1144, %v1146
    %v1148 = vrot.slane %v1141, %v1147
    %v1149 = vcombine.low %v1055, %v1056
    %v1151 = vunpack.c.l.s4 1983009808
    %v1152 = vunpack.c.0.s8 %v1151
    %v1153 = vlaneseq
    %v1154 = vshrl.u32 %v1153, 7
    %v1155 = vsub.s32 %v1152, %v1154
    %v1156 = vrot.slane %v1149, %v1155
    %v1157 = vcombine.low %v1132, %v1140
    %v1158 = vcombine.high %v1132, %v1140
    %v1160 = vunpack.c.l.s4 1934713408
    %v1161 = vunpack.c.0.s8 %v1160
    %v1162 = vlaneseq
    %v1163 = vshrl.u32 %v1162, 7
    %v1164 = vsub.s32 %v1161, %v1163
    %v1165 = vrot.slane %v1157, %v1164
    %v1167 = vunpack.c.l.s4 1934713408
    %v1168 = vunpack.c.0.s8 %v1167
    %v1169 = vlaneseq
    %v1170 = vshrl.u32 %v1169, 7
    %v1171 = vsub.s32 %v1168, %v1170
    %v1172 = vrot.slane %v1158, %v1171
    %v1173 = vcombine.low %v1148, %v1156
    %v1174 = vcombine.high %v1148, %v1156
    %v1176 = vunpack.c.l.s4 1934713408
    %v1177 = vunpack.c.0.s8 %v1176
    %v1178 = vlaneseq
    %v1179 = vshrl.u32 %v1178, 7
    %v1180 = vsub.s32 %v1177, %v1179
    %v1181 = vrot.slane %v1173, %v1180
    %v1183 = vunpack.c.l.s4 1934713408
    %v1184 = vunpack.c.0.s8 %v1183
    %v1185 = vlaneseq
    %v1186 = vshrl.u32 %v1185, 7
    %v1187 = vsub.s32 %v1184, %v1186
    %v1188 = vrot.slane %v1174, %v1187
    %v1189 = vcombine.low %v1165, %v1181
    %v1190 = vcombine.high %v1165, %v1181
    %v1191 = vcombine.low %v1172, %v1188
    %v1192 = vcombine.high %v1172, %v1188
    %vm1193 = vcmask 64512
    %v1195 = vsel %vm1193, %v537, 0
    %v1198 = vsel %vm1193, %v829, 0
    %1200 = vmatprep.subr.mxu0 0.0
    %1201 = vmatpush1.xpose.msra.mxu0 %v1198
    %1202 = vmatprep.subr.mxu0 0.0
    %1203 = vmatpush1.xpose.msra.mxu0 0.0
    %1204 = vmatprep.subr.mxu0 0.0
    %1205 = vmatpush1.xpose.msra.mxu0 0.0
    %1206 = vmatprep.subr.mxu0 0.0
    %1207 = vmatpush1.xpose.msra.mxu0 0.0
    %1208 = vmatprep.subr.mxu0 0.0
    %1209 = vmatpush1.xpose.msra.mxu0 0.0
    %1210 = vmatprep.subr.mxu0 0.0
    %1211 = vmatpush1.xpose.msra.mxu0 0.0
    %1212 = vmatprep.subr.mxu0 0.0
    %1213 = vmatpush1.xpose.msra.mxu0 0.0
    %1214 = vmatprep.subr.mxu0 0.0
    %1215 = vmatpush1.xpose.msra.mxu0 0.0
    %1216 = vmatprep.subr.mxu0 0.0
    %1217 = vmatpush1.xpose.msra.mxu0 0.0
    %1218 = vmatprep.subr.mxu0 0.0
    %1219 = vmatpush1.xpose.msra.mxu0 0.0
    %1220 = vmatprep.subr.mxu0 0.0
    %1221 = vmatpush1.xpose.msra.mxu0 0.0
    %1222 = vmatprep.subr.mxu0 0.0
    %1223 = vmatpush1.xpose.msra.mxu0 0.0
    %1224 = vmatprep.subr.mxu0 0.0
    %1225 = vmatpush1.xpose.msra.mxu0 0.0
    %1226 = vmatprep.subr.mxu0 0.0
    %1227 = vmatpush1.xpose.msra.mxu0 0.0
    %1228 = vmatprep.subr.mxu0 0.0
    %1229 = vmatpush1.xpose.msra.mxu0 0.0
    %1230 = vmatprep.subr.mxu0 0.0
    %1231 = vmatpush1.xpose.msra.mxu0 0.0
    %1232 = vmatprep.subr.mxu0 0.0
    %1233 = vmatpush1.xpose.msra.mxu0 0.0
    %1234 = vmatprep.subr.mxu0 0.0
    %1235 = vmatpush1.xpose.msra.mxu0 0.0
    %1236 = vmatprep.subr.mxu0 0.0
    %1237 = vmatpush1.xpose.msra.mxu0 0.0
    %1238 = vmatprep.subr.mxu0 0.0
    %1239 = vmatpush1.xpose.msra.mxu0 0.0
    %1240 = vmatprep.subr.mxu0 0.0
    %1241 = vmatpush1.xpose.msra.mxu0 0.0
    %1242 = vmatprep.subr.mxu0 0.0
    %1243 = vmatpush1.xpose.msra.mxu0 0.0
    %1244 = vmatprep.subr.mxu0 0.0
    %1245 = vmatpush1.xpose.msra.mxu0 0.0
    %1246 = vmatprep.subr.mxu0 0.0
    %1247 = vmatpush1.xpose.msra.mxu0 0.0
    %1248 = vmatprep.subr.mxu0 0.0
    %1249 = vmatpush1.xpose.msra.mxu0 0.0
    %1250 = vmatprep.subr.mxu0 0.0
    %1251 = vmatpush1.xpose.msra.mxu0 0.0
    %1252 = vmatprep.subr.mxu0 0.0
    %1253 = vmatpush1.xpose.msra.mxu0 0.0
    %1254 = vmatprep.subr.mxu0 0.0
    %1255 = vmatpush1.xpose.msra.mxu0 0.0
    %1256 = vmatprep.subr.mxu0 0.0
    %1257 = vmatpush1.xpose.msra.mxu0 0.0
    %1258 = vmatprep.subr.mxu0 0.0
    %1259 = vmatpush1.xpose.msra.mxu0 0.0
    %1260 = vmatprep.subr.mxu0 0.0
    %1261 = vmatpush1.xpose.msra.mxu0 0.0
    %1262 = vmatprep.subr.mxu0 0.0
    %1263 = vmatpush1.xpose.msra.mxu0 0.0
    %1264 = vmatprep.mubr.f32.mxu0 0.0
    %1265 = vmatmul.mubr.f32.gmra.mrb[0].mxu0 %v1195
    %v1266 = vpop.f32.mrb[0].mxu0
    %v1267 = vadd.f32 0.0, %v1266
    %v1268 = vpop.f32.mrb[0].mxu0
    %1269 = vdwg.mxu0
    %v1271 = vsel %vm1193, %v538, 0
    %v1274 = vsel %vm1193, %v830, 0
    %1276 = vmatprep.subr.mxu0 0.0
    %1277 = vmatpush1.xpose.msra.mxu0 %v1274
    %1278 = vmatprep.subr.mxu0 0.0
    %1279 = vmatpush1.xpose.msra.mxu0 0.0
    %1280 = vmatprep.subr.mxu0 0.0
    %1281 = vmatpush1.xpose.msra.mxu0 0.0
    %1282 = vmatprep.subr.mxu0 0.0
    %1283 = vmatpush1.xpose.msra.mxu0 0.0
    %1284 = vmatprep.subr.mxu0 0.0
    %1285 = vmatpush1.xpose.msra.mxu0 0.0
    %1286 = vmatprep.subr.mxu0 0.0
    %1287 = vmatpush1.xpose.msra.mxu0 0.0
    %1288 = vmatprep.subr.mxu0 0.0
    %1289 = vmatpush1.xpose.msra.mxu0 0.0
    %1290 = vmatprep.subr.mxu0 0.0
    %1291 = vmatpush1.xpose.msra.mxu0 0.0
    %1292 = vmatprep.subr.mxu0 0.0
    %1293 = vmatpush1.xpose.msra.mxu0 0.0
    %1294 = vmatprep.subr.mxu0 0.0
    %1295 = vmatpush1.xpose.msra.mxu0 0.0
    %1296 = vmatprep.subr.mxu0 0.0
    %1297 = vmatpush1.xpose.msra.mxu0 0.0
    %1298 = vmatprep.subr.mxu0 0.0
    %1299 = vmatpush1.xpose.msra.mxu0 0.0
    %1300 = vmatprep.subr.mxu0 0.0
    %1301 = vmatpush1.xpose.msra.mxu0 0.0
    %1302 = vmatprep.subr.mxu0 0.0
    %1303 = vmatpush1.xpose.msra.mxu0 0.0
    %1304 = vmatprep.subr.mxu0 0.0
    %1305 = vmatpush1.xpose.msra.mxu0 0.0
    %1306 = vmatprep.subr.mxu0 0.0
    %1307 = vmatpush1.xpose.msra.mxu0 0.0
    %1308 = vmatprep.subr.mxu0 0.0
    %1309 = vmatpush1.xpose.msra.mxu0 0.0
    %1310 = vmatprep.subr.mxu0 0.0
    %1311 = vmatpush1.xpose.msra.mxu0 0.0
    %1312 = vmatprep.subr.mxu0 0.0
    %1313 = vmatpush1.xpose.msra.mxu0 0.0
    %1314 = vmatprep.subr.mxu0 0.0
    %1315 = vmatpush1.xpose.msra.mxu0 0.0
    %1316 = vmatprep.subr.mxu0 0.0
    %1317 = vmatpush1.xpose.msra.mxu0 0.0
    %1318 = vmatprep.subr.mxu0 0.0
    %1319 = vmatpush1.xpose.msra.mxu0 0.0
    %1320 = vmatprep.subr.mxu0 0.0
    %1321 = vmatpush1.xpose.msra.mxu0 0.0
    %1322 = vmatprep.subr.mxu0 0.0
    %1323 = vmatpush1.xpose.msra.mxu0 0.0
    %1324 = vmatprep.subr.mxu0 0.0
    %1325 = vmatpush1.xpose.msra.mxu0 0.0
    %1326 = vmatprep.subr.mxu0 0.0
    %1327 = vmatpush1.xpose.msra.mxu0 0.0
    %1328 = vmatprep.subr.mxu0 0.0
    %1329 = vmatpush1.xpose.msra.mxu0 0.0
    %1330 = vmatprep.subr.mxu0 0.0
    %1331 = vmatpush1.xpose.msra.mxu0 0.0
    %1332 = vmatprep.subr.mxu0 0.0
    %1333 = vmatpush1.xpose.msra.mxu0 0.0
    %1334 = vmatprep.subr.mxu0 0.0
    %1335 = vmatpush1.xpose.msra.mxu0 0.0
    %1336 = vmatprep.subr.mxu0 0.0
    %1337 = vmatpush1.xpose.msra.mxu0 0.0
    %1338 = vmatprep.subr.mxu0 0.0
    %1339 = vmatpush1.xpose.msra.mxu0 0.0
    %1340 = vmatprep.mubr.f32.mxu0 0.0
    %1341 = vmatmul.mubr.f32.gmra.mrb[0].mxu0 %v1271
    %v1342 = vpop.f32.mrb[0].mxu0
    %v1343 = vadd.f32 0.0, %v1342
    %v1344 = vpop.f32.mrb[0].mxu0
    %1345 = vdwg.mxu0
    %v1347 = vsel %vm1193, %v539, 0
    %v1350 = vsel %vm1193, %v831, 0
    %1352 = vmatprep.subr.mxu0 0.0
    %1353 = vmatpush1.xpose.msra.mxu0 %v1350
    %1354 = vmatprep.subr.mxu0 0.0
    %1355 = vmatpush1.xpose.msra.mxu0 0.0
    %1356 = vmatprep.subr.mxu0 0.0
    %1357 = vmatpush1.xpose.msra.mxu0 0.0
    %1358 = vmatprep.subr.mxu0 0.0
    %1359 = vmatpush1.xpose.msra.mxu0 0.0
    %1360 = vmatprep.subr.mxu0 0.0
    %1361 = vmatpush1.xpose.msra.mxu0 0.0
    %1362 = vmatprep.subr.mxu0 0.0
    %1363 = vmatpush1.xpose.msra.mxu0 0.0
    %1364 = vmatprep.subr.mxu0 0.0
    %1365 = vmatpush1.xpose.msra.mxu0 0.0
    %1366 = vmatprep.subr.mxu0 0.0
    %1367 = vmatpush1.xpose.msra.mxu0 0.0
    %1368 = vmatprep.subr.mxu0 0.0
    %1369 = vmatpush1.xpose.msra.mxu0 0.0
    %1370 = vmatprep.subr.mxu0 0.0
    %1371 = vmatpush1.xpose.msra.mxu0 0.0
    %1372 = vmatprep.subr.mxu0 0.0
    %1373 = vmatpush1.xpose.msra.mxu0 0.0
    %1374 = vmatprep.subr.mxu0 0.0
    %1375 = vmatpush1.xpose.msra.mxu0 0.0
    %1376 = vmatprep.subr.mxu0 0.0
    %1377 = vmatpush1.xpose.msra.mxu0 0.0
    %1378 = vmatprep.subr.mxu0 0.0
    %1379 = vmatpush1.xpose.msra.mxu0 0.0
    %1380 = vmatprep.subr.mxu0 0.0
    %1381 = vmatpush1.xpose.msra.mxu0 0.0
    %1382 = vmatprep.subr.mxu0 0.0
    %1383 = vmatpush1.xpose.msra.mxu0 0.0
    %1384 = vmatprep.subr.mxu0 0.0
    %1385 = vmatpush1.xpose.msra.mxu0 0.0
    %1386 = vmatprep.subr.mxu0 0.0
    %1387 = vmatpush1.xpose.msra.mxu0 0.0
    %1388 = vmatprep.subr.mxu0 0.0
    %1389 = vmatpush1.xpose.msra.mxu0 0.0
    %1390 = vmatprep.subr.mxu0 0.0
    %1391 = vmatpush1.xpose.msra.mxu0 0.0
    %1392 = vmatprep.subr.mxu0 0.0
    %1393 = vmatpush1.xpose.msra.mxu0 0.0
    %1394 = vmatprep.subr.mxu0 0.0
    %1395 = vmatpush1.xpose.msra.mxu0 0.0
    %1396 = vmatprep.subr.mxu0 0.0
    %1397 = vmatpush1.xpose.msra.mxu0 0.0
    %1398 = vmatprep.subr.mxu0 0.0
    %1399 = vmatpush1.xpose.msra.mxu0 0.0
    %1400 = vmatprep.subr.mxu0 0.0
    %1401 = vmatpush1.xpose.msra.mxu0 0.0
    %1402 = vmatprep.subr.mxu0 0.0
    %1403 = vmatpush1.xpose.msra.mxu0 0.0
    %1404 = vmatprep.subr.mxu0 0.0
    %1405 = vmatpush1.xpose.msra.mxu0 0.0
    %1406 = vmatprep.subr.mxu0 0.0
    %1407 = vmatpush1.xpose.msra.mxu0 0.0
    %1408 = vmatprep.subr.mxu0 0.0
    %1409 = vmatpush1.xpose.msra.mxu0 0.0
    %1410 = vmatprep.subr.mxu0 0.0
    %1411 = vmatpush1.xpose.msra.mxu0 0.0
    %1412 = vmatprep.subr.mxu0 0.0
    %1413 = vmatpush1.xpose.msra.mxu0 0.0
    %1414 = vmatprep.subr.mxu0 0.0
    %1415 = vmatpush1.xpose.msra.mxu0 0.0
    %1416 = vmatprep.mubr.f32.mxu0 0.0
    %1417 = vmatmul.mubr.f32.gmra.mrb[0].mxu0 %v1347
    %v1418 = vpop.f32.mrb[0].mxu0
    %v1419 = vadd.f32 0.0, %v1418
    %v1420 = vpop.f32.mrb[0].mxu0
    %1421 = vdwg.mxu0
    %v1423 = vsel %vm1193, %v540, 0
    %v1426 = vsel %vm1193, %v832, 0
    %1428 = vmatprep.subr.mxu0 0.0
    %1429 = vmatpush1.xpose.msra.mxu0 %v1426
    %1430 = vmatprep.subr.mxu0 0.0
    %1431 = vmatpush1.xpose.msra.mxu0 0.0
    %1432 = vmatprep.subr.mxu0 0.0
    %1433 = vmatpush1.xpose.msra.mxu0 0.0
    %1434 = vmatprep.subr.mxu0 0.0
    %1435 = vmatpush1.xpose.msra.mxu0 0.0
    %1436 = vmatprep.subr.mxu0 0.0
    %1437 = vmatpush1.xpose.msra.mxu0 0.0
    %1438 = vmatprep.subr.mxu0 0.0
    %1439 = vmatpush1.xpose.msra.mxu0 0.0
    %1440 = vmatprep.subr.mxu0 0.0
    %1441 = vmatpush1.xpose.msra.mxu0 0.0
    %1442 = vmatprep.subr.mxu0 0.0
    %1443 = vmatpush1.xpose.msra.mxu0 0.0
    %1444 = vmatprep.subr.mxu0 0.0
    %1445 = vmatpush1.xpose.msra.mxu0 0.0
    %1446 = vmatprep.subr.mxu0 0.0
    %1447 = vmatpush1.xpose.msra.mxu0 0.0
    %1448 = vmatprep.subr.mxu0 0.0
    %1449 = vmatpush1.xpose.msra.mxu0 0.0
    %1450 = vmatprep.subr.mxu0 0.0
    %1451 = vmatpush1.xpose.msra.mxu0 0.0
    %1452 = vmatprep.subr.mxu0 0.0
    %1453 = vmatpush1.xpose.msra.mxu0 0.0
    %1454 = vmatprep.subr.mxu0 0.0
    %1455 = vmatpush1.xpose.msra.mxu0 0.0
    %1456 = vmatprep.subr.mxu0 0.0
    %1457 = vmatpush1.xpose.msra.mxu0 0.0
    %1458 = vmatprep.subr.mxu0 0.0
    %1459 = vmatpush1.xpose.msra.mxu0 0.0
    %1460 = vmatprep.subr.mxu0 0.0
    %1461 = vmatpush1.xpose.msra.mxu0 0.0
    %1462 = vmatprep.subr.mxu0 0.0
    %1463 = vmatpush1.xpose.msra.mxu0 0.0
    %1464 = vmatprep.subr.mxu0 0.0
    %1465 = vmatpush1.xpose.msra.mxu0 0.0
    %1466 = vmatprep.subr.mxu0 0.0
    %1467 = vmatpush1.xpose.msra.mxu0 0.0
    %1468 = vmatprep.subr.mxu0 0.0
    %1469 = vmatpush1.xpose.msra.mxu0 0.0
    %1470 = vmatprep.subr.mxu0 0.0
    %1471 = vmatpush1.xpose.msra.mxu0 0.0
    %1472 = vmatprep.subr.mxu0 0.0
    %1473 = vmatpush1.xpose.msra.mxu0 0.0
    %1474 = vmatprep.subr.mxu0 0.0
    %1475 = vmatpush1.xpose.msra.mxu0 0.0
    %1476 = vmatprep.subr.mxu0 0.0
    %1477 = vmatpush1.xpose.msra.mxu0 0.0
    %1478 = vmatprep.subr.mxu0 0.0
    %1479 = vmatpush1.xpose.msra.mxu0 0.0
    %1480 = vmatprep.subr.mxu0 0.0
    %1481 = vmatpush1.xpose.msra.mxu0 0.0
    %1482 = vmatprep.subr.mxu0 0.0
    %1483 = vmatpush1.xpose.msra.mxu0 0.0
    %1484 = vmatprep.subr.mxu0 0.0
    %1485 = vmatpush1.xpose.msra.mxu0 0.0
    %1486 = vmatprep.subr.mxu0 0.0
    %1487 = vmatpush1.xpose.msra.mxu0 0.0
    %1488 = vmatprep.subr.mxu0 0.0
    %1489 = vmatpush1.xpose.msra.mxu0 0.0
    %1490 = vmatprep.subr.mxu0 0.0
    %1491 = vmatpush1.xpose.msra.mxu0 0.0
    %1492 = vmatprep.mubr.f32.mxu0 0.0
    %1493 = vmatmul.mubr.f32.gmra.mrb[0].mxu0 %v1423
    %v1494 = vpop.f32.mrb[0].mxu0
    %v1495 = vadd.f32 0.0, %v1494
    %v1496 = vpop.f32.mrb[0].mxu0
    %1497 = vdwg.mxu0
    %v1499 = vsel %vm1193, %v605, 0
    %v1502 = vsel %vm1193, %v897, 0
    %1504 = vmatprep.subr.mxu0 0.0
    %1505 = vmatpush1.xpose.msra.mxu0 %v1502
    %1506 = vmatprep.subr.mxu0 0.0
    %1507 = vmatpush1.xpose.msra.mxu0 0.0
    %1508 = vmatprep.subr.mxu0 0.0
    %1509 = vmatpush1.xpose.msra.mxu0 0.0
    %1510 = vmatprep.subr.mxu0 0.0
    %1511 = vmatpush1.xpose.msra.mxu0 0.0
    %1512 = vmatprep.subr.mxu0 0.0
    %1513 = vmatpush1.xpose.msra.mxu0 0.0
    %1514 = vmatprep.subr.mxu0 0.0
    %1515 = vmatpush1.xpose.msra.mxu0 0.0
    %1516 = vmatprep.subr.mxu0 0.0
    %1517 = vmatpush1.xpose.msra.mxu0 0.0
    %1518 = vmatprep.subr.mxu0 0.0
    %1519 = vmatpush1.xpose.msra.mxu0 0.0
    %1520 = vmatprep.subr.mxu0 0.0
    %1521 = vmatpush1.xpose.msra.mxu0 0.0
    %1522 = vmatprep.subr.mxu0 0.0
    %1523 = vmatpush1.xpose.msra.mxu0 0.0
    %1524 = vmatprep.subr.mxu0 0.0
    %1525 = vmatpush1.xpose.msra.mxu0 0.0
    %1526 = vmatprep.subr.mxu0 0.0
    %1527 = vmatpush1.xpose.msra.mxu0 0.0
    %1528 = vmatprep.subr.mxu0 0.0
    %1529 = vmatpush1.xpose.msra.mxu0 0.0
    %1530 = vmatprep.subr.mxu0 0.0
    %1531 = vmatpush1.xpose.msra.mxu0 0.0
    %1532 = vmatprep.subr.mxu0 0.0
    %1533 = vmatpush1.xpose.msra.mxu0 0.0
    %1534 = vmatprep.subr.mxu0 0.0
    %1535 = vmatpush1.xpose.msra.mxu0 0.0
    %1536 = vmatprep.subr.mxu0 0.0
    %1537 = vmatpush1.xpose.msra.mxu0 0.0
    %1538 = vmatprep.subr.mxu0 0.0
    %1539 = vmatpush1.xpose.msra.mxu0 0.0
    %1540 = vmatprep.subr.mxu0 0.0
    %1541 = vmatpush1.xpose.msra.mxu0 0.0
    %1542 = vmatprep.subr.mxu0 0.0
    %1543 = vmatpush1.xpose.msra.mxu0 0.0
    %1544 = vmatprep.subr.mxu0 0.0
    %1545 = vmatpush1.xpose.msra.mxu0 0.0
    %1546 = vmatprep.subr.mxu0 0.0
    %1547 = vmatpush1.xpose.msra.mxu0 0.0
    %1548 = vmatprep.subr.mxu0 0.0
    %1549 = vmatpush1.xpose.msra.mxu0 0.0
    %1550 = vmatprep.subr.mxu0 0.0
    %1551 = vmatpush1.xpose.msra.mxu0 0.0
    %1552 = vmatprep.subr.mxu0 0.0
    %1553 = vmatpush1.xpose.msra.mxu0 0.0
    %1554 = vmatprep.subr.mxu0 0.0
    %1555 = vmatpush1.xpose.msra.mxu0 0.0
    %1556 = vmatprep.subr.mxu0 0.0
    %1557 = vmatpush1.xpose.msra.mxu0 0.0
    %1558 = vmatprep.subr.mxu0 0.0
    %1559 = vmatpush1.xpose.msra.mxu0 0.0
    %1560 = vmatprep.subr.mxu0 0.0
    %1561 = vmatpush1.xpose.msra.mxu0 0.0
    %1562 = vmatprep.subr.mxu0 0.0
    %1563 = vmatpush1.xpose.msra.mxu0 0.0
    %1564 = vmatprep.subr.mxu0 0.0
    %1565 = vmatpush1.xpose.msra.mxu0 0.0
    %1566 = vmatprep.subr.mxu0 0.0
    %1567 = vmatpush1.xpose.msra.mxu0 0.0
    %1568 = vmatprep.mubr.f32.mxu0 0.0
    %1569 = vmatmul.mubr.f32.gmra.mrb[0].mxu0 %v1499
    %v1570 = vpop.f32.mrb[0].mxu0
    %v1571 = vadd.f32 0.0, %v1570
    %v1572 = vpop.f32.mrb[0].mxu0
    %1573 = vdwg.mxu0
    %v1575 = vsel %vm1193, %v606, 0
    %v1578 = vsel %vm1193, %v898, 0
    %1580 = vmatprep.subr.mxu0 0.0
    %1581 = vmatpush1.xpose.msra.mxu0 %v1578
    %1582 = vmatprep.subr.mxu0 0.0
    %1583 = vmatpush1.xpose.msra.mxu0 0.0
    %1584 = vmatprep.subr.mxu0 0.0
    %1585 = vmatpush1.xpose.msra.mxu0 0.0
    %1586 = vmatprep.subr.mxu0 0.0
    %1587 = vmatpush1.xpose.msra.mxu0 0.0
    %1588 = vmatprep.subr.mxu0 0.0
    %1589 = vmatpush1.xpose.msra.mxu0 0.0
    %1590 = vmatprep.subr.mxu0 0.0
    %1591 = vmatpush1.xpose.msra.mxu0 0.0
    %1592 = vmatprep.subr.mxu0 0.0
    %1593 = vmatpush1.xpose.msra.mxu0 0.0
    %1594 = vmatprep.subr.mxu0 0.0
    %1595 = vmatpush1.xpose.msra.mxu0 0.0
    %1596 = vmatprep.subr.mxu0 0.0
    %1597 = vmatpush1.xpose.msra.mxu0 0.0
    %1598 = vmatprep.subr.mxu0 0.0
    %1599 = vmatpush1.xpose.msra.mxu0 0.0
    %1600 = vmatprep.subr.mxu0 0.0
    %1601 = vmatpush1.xpose.msra.mxu0 0.0
    %1602 = vmatprep.subr.mxu0 0.0
    %1603 = vmatpush1.xpose.msra.mxu0 0.0
    %1604 = vmatprep.subr.mxu0 0.0
    %1605 = vmatpush1.xpose.msra.mxu0 0.0
    %1606 = vmatprep.subr.mxu0 0.0
    %1607 = vmatpush1.xpose.msra.mxu0 0.0
    %1608 = vmatprep.subr.mxu0 0.0
    %1609 = vmatpush1.xpose.msra.mxu0 0.0
    %1610 = vmatprep.subr.mxu0 0.0
    %1611 = vmatpush1.xpose.msra.mxu0 0.0
    %1612 = vmatprep.subr.mxu0 0.0
    %1613 = vmatpush1.xpose.msra.mxu0 0.0
    %1614 = vmatprep.subr.mxu0 0.0
    %1615 = vmatpush1.xpose.msra.mxu0 0.0
    %1616 = vmatprep.subr.mxu0 0.0
    %1617 = vmatpush1.xpose.msra.mxu0 0.0
    %1618 = vmatprep.subr.mxu0 0.0
    %1619 = vmatpush1.xpose.msra.mxu0 0.0
    %1620 = vmatprep.subr.mxu0 0.0
    %1621 = vmatpush1.xpose.msra.mxu0 0.0
    %1622 = vmatprep.subr.mxu0 0.0
    %1623 = vmatpush1.xpose.msra.mxu0 0.0
    %1624 = vmatprep.subr.mxu0 0.0
    %1625 = vmatpush1.xpose.msra.mxu0 0.0
    %1626 = vmatprep.subr.mxu0 0.0
    %1627 = vmatpush1.xpose.msra.mxu0 0.0
    %1628 = vmatprep.subr.mxu0 0.0
    %1629 = vmatpush1.xpose.msra.mxu0 0.0
    %1630 = vmatprep.subr.mxu0 0.0
    %1631 = vmatpush1.xpose.msra.mxu0 0.0
    %1632 = vmatprep.subr.mxu0 0.0
    %1633 = vmatpush1.xpose.msra.mxu0 0.0
    %1634 = vmatprep.subr.mxu0 0.0
    %1635 = vmatpush1.xpose.msra.mxu0 0.0
    %1636 = vmatprep.subr.mxu0 0.0
    %1637 = vmatpush1.xpose.msra.mxu0 0.0
    %1638 = vmatprep.subr.mxu0 0.0
    %1639 = vmatpush1.xpose.msra.mxu0 0.0
    %1640 = vmatprep.subr.mxu0 0.0
    %1641 = vmatpush1.xpose.msra.mxu0 0.0
    %1642 = vmatprep.subr.mxu0 0.0
    %1643 = vmatpush1.xpose.msra.mxu0 0.0
    %1644 = vmatprep.mubr.f32.mxu0 0.0
    %1645 = vmatmul.mubr.f32.gmra.mrb[0].mxu0 %v1575
    %v1646 = vpop.f32.mrb[0].mxu0
    %v1647 = vadd.f32 0.0, %v1646
    %v1648 = vpop.f32.mrb[0].mxu0
    %1649 = vdwg.mxu0
    %v1651 = vsel %vm1193, %v607, 0
    %v1654 = vsel %vm1193, %v899, 0
    %1656 = vmatprep.subr.mxu0 0.0
    %1657 = vmatpush1.xpose.msra.mxu0 %v1654
    %1658 = vmatprep.subr.mxu0 0.0
    %1659 = vmatpush1.xpose.msra.mxu0 0.0
    %1660 = vmatprep.subr.mxu0 0.0
    %1661 = vmatpush1.xpose.msra.mxu0 0.0
    %1662 = vmatprep.subr.mxu0 0.0
    %1663 = vmatpush1.xpose.msra.mxu0 0.0
    %1664 = vmatprep.subr.mxu0 0.0
    %1665 = vmatpush1.xpose.msra.mxu0 0.0
    %1666 = vmatprep.subr.mxu0 0.0
    %1667 = vmatpush1.xpose.msra.mxu0 0.0
    %1668 = vmatprep.subr.mxu0 0.0
    %1669 = vmatpush1.xpose.msra.mxu0 0.0
    %1670 = vmatprep.subr.mxu0 0.0
    %1671 = vmatpush1.xpose.msra.mxu0 0.0
    %1672 = vmatprep.subr.mxu0 0.0
    %1673 = vmatpush1.xpose.msra.mxu0 0.0
    %1674 = vmatprep.subr.mxu0 0.0
    %1675 = vmatpush1.xpose.msra.mxu0 0.0
    %1676 = vmatprep.subr.mxu0 0.0
    %1677 = vmatpush1.xpose.msra.mxu0 0.0
    %1678 = vmatprep.subr.mxu0 0.0
    %1679 = vmatpush1.xpose.msra.mxu0 0.0
    %1680 = vmatprep.subr.mxu0 0.0
    %1681 = vmatpush1.xpose.msra.mxu0 0.0
    %1682 = vmatprep.subr.mxu0 0.0
    %1683 = vmatpush1.xpose.msra.mxu0 0.0
    %1684 = vmatprep.subr.mxu0 0.0
    %1685 = vmatpush1.xpose.msra.mxu0 0.0
    %1686 = vmatprep.subr.mxu0 0.0
    %1687 = vmatpush1.xpose.msra.mxu0 0.0
    %1688 = vmatprep.subr.mxu0 0.0
    %1689 = vmatpush1.xpose.msra.mxu0 0.0
    %1690 = vmatprep.subr.mxu0 0.0
    %1691 = vmatpush1.xpose.msra.mxu0 0.0
    %1692 = vmatprep.subr.mxu0 0.0
    %1693 = vmatpush1.xpose.msra.mxu0 0.0
    %1694 = vmatprep.subr.mxu0 0.0
    %1695 = vmatpush1.xpose.msra.mxu0 0.0
    %1696 = vmatprep.subr.mxu0 0.0
    %1697 = vmatpush1.xpose.msra.mxu0 0.0
    %1698 = vmatprep.subr.mxu0 0.0
    %1699 = vmatpush1.xpose.msra.mxu0 0.0
    %1700 = vmatprep.subr.mxu0 0.0
    %1701 = vmatpush1.xpose.msra.mxu0 0.0
    %1702 = vmatprep.subr.mxu0 0.0
    %1703 = vmatpush1.xpose.msra.mxu0 0.0
    %1704 = vmatprep.subr.mxu0 0.0
    %1705 = vmatpush1.xpose.msra.mxu0 0.0
    %1706 = vmatprep.subr.mxu0 0.0
    %1707 = vmatpush1.xpose.msra.mxu0 0.0
    %1708 = vmatprep.subr.mxu0 0.0
    %1709 = vmatpush1.xpose.msra.mxu0 0.0
    %1710 = vmatprep.subr.mxu0 0.0
    %1711 = vmatpush1.xpose.msra.mxu0 0.0
    %1712 = vmatprep.subr.mxu0 0.0
    %1713 = vmatpush1.xpose.msra.mxu0 0.0
    %1714 = vmatprep.subr.mxu0 0.0
    %1715 = vmatpush1.xpose.msra.mxu0 0.0
    %1716 = vmatprep.subr.mxu0 0.0
    %1717 = vmatpush1.xpose.msra.mxu0 0.0
    %1718 = vmatprep.subr.mxu0 0.0
    %1719 = vmatpush1.xpose.msra.mxu0 0.0
    %1720 = vmatprep.mubr.f32.mxu0 0.0
    %1721 = vmatmul.mubr.f32.gmra.mrb[0].mxu0 %v1651
    %v1722 = vpop.f32.mrb[0].mxu0
    %v1723 = vadd.f32 0.0, %v1722
    %v1724 = vpop.f32.mrb[0].mxu0
    %1725 = vdwg.mxu0
    %v1727 = vsel %vm1193, %v608, 0
    %v1730 = vsel %vm1193, %v900, 0
    %1732 = vmatprep.subr.mxu0 0.0
    %1733 = vmatpush1.xpose.msra.mxu0 %v1730
    %1734 = vmatprep.subr.mxu0 0.0
    %1735 = vmatpush1.xpose.msra.mxu0 0.0
    %1736 = vmatprep.subr.mxu0 0.0
    %1737 = vmatpush1.xpose.msra.mxu0 0.0
    %1738 = vmatprep.subr.mxu0 0.0
    %1739 = vmatpush1.xpose.msra.mxu0 0.0
    %1740 = vmatprep.subr.mxu0 0.0
    %1741 = vmatpush1.xpose.msra.mxu0 0.0
    %1742 = vmatprep.subr.mxu0 0.0
    %1743 = vmatpush1.xpose.msra.mxu0 0.0
    %1744 = vmatprep.subr.mxu0 0.0
    %1745 = vmatpush1.xpose.msra.mxu0 0.0
    %1746 = vmatprep.subr.mxu0 0.0
    %1747 = vmatpush1.xpose.msra.mxu0 0.0
    %1748 = vmatprep.subr.mxu0 0.0
    %1749 = vmatpush1.xpose.msra.mxu0 0.0
    %1750 = vmatprep.subr.mxu0 0.0
    %1751 = vmatpush1.xpose.msra.mxu0 0.0
    %1752 = vmatprep.subr.mxu0 0.0
    %1753 = vmatpush1.xpose.msra.mxu0 0.0
    %1754 = vmatprep.subr.mxu0 0.0
    %1755 = vmatpush1.xpose.msra.mxu0 0.0
    %1756 = vmatprep.subr.mxu0 0.0
    %1757 = vmatpush1.xpose.msra.mxu0 0.0
    %1758 = vmatprep.subr.mxu0 0.0
    %1759 = vmatpush1.xpose.msra.mxu0 0.0
    %1760 = vmatprep.subr.mxu0 0.0
    %1761 = vmatpush1.xpose.msra.mxu0 0.0
    %1762 = vmatprep.subr.mxu0 0.0
    %1763 = vmatpush1.xpose.msra.mxu0 0.0
    %1764 = vmatprep.subr.mxu0 0.0
    %1765 = vmatpush1.xpose.msra.mxu0 0.0
    %1766 = vmatprep.subr.mxu0 0.0
    %1767 = vmatpush1.xpose.msra.mxu0 0.0
    %1768 = vmatprep.subr.mxu0 0.0
    %1769 = vmatpush1.xpose.msra.mxu0 0.0
    %1770 = vmatprep.subr.mxu0 0.0
    %1771 = vmatpush1.xpose.msra.mxu0 0.0
    %1772 = vmatprep.subr.mxu0 0.0
    %1773 = vmatpush1.xpose.msra.mxu0 0.0
    %1774 = vmatprep.subr.mxu0 0.0
    %1775 = vmatpush1.xpose.msra.mxu0 0.0
    %1776 = vmatprep.subr.mxu0 0.0
    %1777 = vmatpush1.xpose.msra.mxu0 0.0
    %1778 = vmatprep.subr.mxu0 0.0
    %1779 = vmatpush1.xpose.msra.mxu0 0.0
    %1780 = vmatprep.subr.mxu0 0.0
    %1781 = vmatpush1.xpose.msra.mxu0 0.0
    %1782 = vmatprep.subr.mxu0 0.0
    %1783 = vmatpush1.xpose.msra.mxu0 0.0
    %1784 = vmatprep.subr.mxu0 0.0
    %1785 = vmatpush1.xpose.msra.mxu0 0.0
    %1786 = vmatprep.subr.mxu0 0.0
    %1787 = vmatpush1.xpose.msra.mxu0 0.0
    %1788 = vmatprep.subr.mxu0 0.0
    %1789 = vmatpush1.xpose.msra.mxu0 0.0
    %1790 = vmatprep.subr.mxu0 0.0
    %1791 = vmatpush1.xpose.msra.mxu0 0.0
    %1792 = vmatprep.subr.mxu0 0.0
    %1793 = vmatpush1.xpose.msra.mxu0 0.0
    %1794 = vmatprep.subr.mxu0 0.0
    %1795 = vmatpush1.xpose.msra.mxu0 0.0
    %1796 = vmatprep.mubr.f32.mxu0 0.0
    %1797 = vmatmul.mubr.f32.gmra.mrb[0].mxu0 %v1727
    %v1798 = vpop.f32.mrb[0].mxu0
    %v1799 = vadd.f32 0.0, %v1798
    %v1800 = vpop.f32.mrb[0].mxu0
    %1801 = vdwg.mxu0
    %v1802 = vmul.f32 %v1267, 0.35355338
    %v1803 = vmul.f32 %v1343, 0.35355338
    %v1804 = vmul.f32 %v1419, 0.35355338
    %v1805 = vmul.f32 %v1495, 0.35355338
    %v1806 = vmul.f32 %v1571, 0.35355338
    %v1807 = vmul.f32 %v1647, 0.35355338
    %v1808 = vmul.f32 %v1723, 0.35355338
    %v1809 = vmul.f32 %v1799, 0.35355338
    %v1810 = vsel %vm1193, %v1802, -inf
    %1811 = vmax.xlane.f32.xlu0 %v1810
    %v1812 = vpop.xlane.xlu0 %1811
    %v1813 = vsel %vm1193, %v1803, -inf
    %1814 = vmax.xlane.f32.xlu0 %v1813
    %v1815 = vpop.xlane.xlu0 %1814
    %v1816 = vsel %vm1193, %v1804, -inf
    %1817 = vmax.xlane.f32.xlu0 %v1816
    %v1818 = vpop.xlane.xlu0 %1817
    %v1819 = vsel %vm1193, %v1805, -inf
    %1820 = vmax.xlane.f32.xlu0 %v1819
    %v1821 = vpop.xlane.xlu0 %1820
    %v1822 = vsel %vm1193, %v1806, -inf
    %1823 = vmax.xlane.f32.xlu0 %v1822
    %v1824 = vpop.xlane.xlu0 %1823
    %v1825 = vsel %vm1193, %v1807, -inf
    %1826 = vmax.xlane.f32.xlu0 %v1825
    %v1827 = vpop.xlane.xlu0 %1826
    %v1828 = vsel %vm1193, %v1808, -inf
    %1829 = vmax.xlane.f32.xlu0 %v1828
    %v1830 = vpop.xlane.xlu0 %1829
    %v1831 = vsel %vm1193, %v1809, -inf
    %1832 = vmax.xlane.f32.xlu0 %v1831
    %v1833 = vpop.xlane.xlu0 %1832
    %v1834 = vsub.f32 %v1802, %v1812
    %v1835 = vsub.f32 %v1803, %v1815
    %v1836 = vsub.f32 %v1804, %v1818
    %v1837 = vsub.f32 %v1805, %v1821
    %v1838 = vsub.f32 %v1806, %v1824
    %v1839 = vsub.f32 %v1807, %v1827
    %v1840 = vsub.f32 %v1808, %v1830
    %v1841 = vsub.f32 %v1809, %v1833
    %v1842 = vmul.f32 %v1834, 1.442695
    %v1843 = vpow.pop %v1842
    %v1844 = vmul.f32 %v1835, 1.442695
    %v1845 = vpow.pop %v1844
    %v1846 = vmul.f32 %v1836, 1.442695
    %v1847 = vpow.pop %v1846
    %v1848 = vmul.f32 %v1837, 1.442695
    %v1849 = vpow.pop %v1848
    %v1850 = vmul.f32 %v1838, 1.442695
    %v1851 = vpow.pop %v1850
    %v1852 = vmul.f32 %v1839, 1.442695
    %v1853 = vpow.pop %v1852
    %v1854 = vmul.f32 %v1840, 1.442695
    %v1855 = vpow.pop %v1854
    %v1856 = vmul.f32 %v1841, 1.442695
    %v1857 = vpow.pop %v1856
    %v1858 = vsel %vm1193, %v1843, 0.0
    %1859 = vadd.xlane.f32.xlu0 %v1858
    %v1860 = vpop.xlane.xlu0 %1859
    %v1861 = vsel %vm1193, %v1845, 0.0
    %1862 = vadd.xlane.f32.xlu0 %v1861
    %v1863 = vpop.xlane.xlu0 %1862
    %v1864 = vsel %vm1193, %v1847, 0.0
    %1865 = vadd.xlane.f32.xlu0 %v1864
    %v1866 = vpop.xlane.xlu0 %1865
    %v1867 = vsel %vm1193, %v1849, 0.0
    %1868 = vadd.xlane.f32.xlu0 %v1867
    %v1869 = vpop.xlane.xlu0 %1868
    %v1870 = vsel %vm1193, %v1851, 0.0
    %1871 = vadd.xlane.f32.xlu0 %v1870
    %v1872 = vpop.xlane.xlu0 %1871
    %v1873 = vsel %vm1193, %v1853, 0.0
    %1874 = vadd.xlane.f32.xlu0 %v1873
    %v1875 = vpop.xlane.xlu0 %1874
    %v1876 = vsel %vm1193, %v1855, 0.0
    %1877 = vadd.xlane.f32.xlu0 %v1876
    %v1878 = vpop.xlane.xlu0 %1877
    %v1879 = vsel %vm1193, %v1857, 0.0
    %1880 = vadd.xlane.f32.xlu0 %v1879
    %v1881 = vpop.xlane.xlu0 %1880
    %v1883 = vsel %vm1193, %v1843, 0
    %1885 = vmatprep.subr.mxu0 0.0
    %1886 = vmatpush1.msra.mxu0 %v1121
    %1887 = vmatprep.subr.mxu0 0.0
    %1888 = vmatpush1.msra.mxu0 0.0
    %1889 = vmatprep.subr.mxu0 0.0
    %1890 = vmatpush1.msra.mxu0 0.0
    %1891 = vmatprep.subr.mxu0 0.0
    %1892 = vmatpush1.msra.mxu0 0.0
    %1893 = vmatprep.subr.mxu0 0.0
    %1894 = vmatpush1.msra.mxu0 0.0
    %1895 = vmatprep.subr.mxu0 0.0
    %1896 = vmatpush1.msra.mxu0 0.0
    %1897 = vmatprep.subr.mxu0 0.0
    %1898 = vmatpush1.msra.mxu0 0.0
    %1899 = vmatprep.subr.mxu0 0.0
    %1900 = vmatpush1.msra.mxu0 0.0
    %1901 = vmatprep.subr.mxu0 0.0
    %1902 = vmatpush1.msra.mxu0 0.0
    %1903 = vmatprep.subr.mxu0 0.0
    %1904 = vmatpush1.msra.mxu0 0.0
    %1905 = vmatprep.subr.mxu0 0.0
    %1906 = vmatpush1.msra.mxu0 0.0
    %1907 = vmatprep.subr.mxu0 0.0
    %1908 = vmatpush1.msra.mxu0 0.0
    %1909 = vmatprep.subr.mxu0 0.0
    %1910 = vmatpush1.msra.mxu0 0.0
    %1911 = vmatprep.subr.mxu0 0.0
    %1912 = vmatpush1.msra.mxu0 0.0
    %1913 = vmatprep.subr.mxu0 0.0
    %1914 = vmatpush1.msra.mxu0 0.0
    %1915 = vmatprep.subr.mxu0 0.0
    %1916 = vmatpush1.msra.mxu0 0.0
    %1917 = vmatprep.subr.mxu0 0.0
    %1918 = vmatpush1.msra.mxu0 0.0
    %1919 = vmatprep.subr.mxu0 0.0
    %1920 = vmatpush1.msra.mxu0 0.0
    %1921 = vmatprep.subr.mxu0 0.0
    %1922 = vmatpush1.msra.mxu0 0.0
    %1923 = vmatprep.subr.mxu0 0.0
    %1924 = vmatpush1.msra.mxu0 0.0
    %1925 = vmatprep.subr.mxu0 0.0
    %1926 = vmatpush1.msra.mxu0 0.0
    %1927 = vmatprep.subr.mxu0 0.0
    %1928 = vmatpush1.msra.mxu0 0.0
    %1929 = vmatprep.subr.mxu0 0.0
    %1930 = vmatpush1.msra.mxu0 0.0
    %1931 = vmatprep.subr.mxu0 0.0
    %1932 = vmatpush1.msra.mxu0 0.0
    %1933 = vmatprep.subr.mxu0 0.0
    %1934 = vmatpush1.msra.mxu0 0.0
    %1935 = vmatprep.subr.mxu0 0.0
    %1936 = vmatpush1.msra.mxu0 0.0
    %1937 = vmatprep.subr.mxu0 0.0
    %1938 = vmatpush1.msra.mxu0 0.0
    %1939 = vmatprep.subr.mxu0 0.0
    %1940 = vmatpush1.msra.mxu0 0.0
    %1941 = vmatprep.subr.mxu0 0.0
    %1942 = vmatpush1.msra.mxu0 0.0
    %1943 = vmatprep.subr.mxu0 0.0
    %1944 = vmatpush1.msra.mxu0 0.0
    %1945 = vmatprep.subr.mxu0 0.0
    %1946 = vmatpush1.msra.mxu0 0.0
    %1947 = vmatprep.subr.mxu0 0.0
    %1948 = vmatpush1.msra.mxu0 0.0
    %1949 = vmatprep.mubr.f32.mxu0 0.0
    %1950 = vmatmul.mubr.f32.gmra.mrb[0].mxu0 %v1883
    %v1951 = vpop.f32.mrb[0].mxu0
    %v1952 = vadd.f32 0.0, %v1951
    %v1953 = vpop.f32.mrb[0].mxu0
    %1954 = vdwg.mxu0
    %v1956 = vsel %vm1193, %v1845, 0
    %1958 = vmatprep.subr.mxu0 0.0
    %1959 = vmatpush1.msra.mxu0 %v1122
    %1960 = vmatprep.subr.mxu0 0.0
    %1961 = vmatpush1.msra.mxu0 0.0
    %1962 = vmatprep.subr.mxu0 0.0
    %1963 = vmatpush1.msra.mxu0 0.0
    %1964 = vmatprep.subr.mxu0 0.0
    %1965 = vmatpush1.msra.mxu0 0.0
    %1966 = vmatprep.subr.mxu0 0.0
    %1967 = vmatpush1.msra.mxu0 0.0
    %1968 = vmatprep.subr.mxu0 0.0
    %1969 = vmatpush1.msra.mxu0 0.0
    %1970 = vmatprep.subr.mxu0 0.0
    %1971 = vmatpush1.msra.mxu0 0.0
    %1972 = vmatprep.subr.mxu0 0.0
    %1973 = vmatpush1.msra.mxu0 0.0
    %1974 = vmatprep.subr.mxu0 0.0
    %1975 = vmatpush1.msra.mxu0 0.0
    %1976 = vmatprep.subr.mxu0 0.0
    %1977 = vmatpush1.msra.mxu0 0.0
    %1978 = vmatprep.subr.mxu0 0.0
    %1979 = vmatpush1.msra.mxu0 0.0
    %1980 = vmatprep.subr.mxu0 0.0
    %1981 = vmatpush1.msra.mxu0 0.0
    %1982 = vmatprep.subr.mxu0 0.0
    %1983 = vmatpush1.msra.mxu0 0.0
    %1984 = vmatprep.subr.mxu0 0.0
    %1985 = vmatpush1.msra.mxu0 0.0
    %1986 = vmatprep.subr.mxu0 0.0
    %1987 = vmatpush1.msra.mxu0 0.0
    %1988 = vmatprep.subr.mxu0 0.0
    %1989 = vmatpush1.msra.mxu0 0.0
    %1990 = vmatprep.subr.mxu0 0.0
    %1991 = vmatpush1.msra.mxu0 0.0
    %1992 = vmatprep.subr.mxu0 0.0
    %1993 = vmatpush1.msra.mxu0 0.0
    %1994 = vmatprep.subr.mxu0 0.0
    %1995 = vmatpush1.msra.mxu0 0.0
    %1996 = vmatprep.subr.mxu0 0.0
    %1997 = vmatpush1.msra.mxu0 0.0
    %1998 = vmatprep.subr.mxu0 0.0
    %1999 = vmatpush1.msra.mxu0 0.0
    %2000 = vmatprep.subr.mxu0 0.0
    %2001 = vmatpush1.msra.mxu0 0.0
    %2002 = vmatprep.subr.mxu0 0.0
    %2003 = vmatpush1.msra.mxu0 0.0
    %2004 = vmatprep.subr.mxu0 0.0
    %2005 = vmatpush1.msra.mxu0 0.0
    %2006 = vmatprep.subr.mxu0 0.0
    %2007 = vmatpush1.msra.mxu0 0.0
    %2008 = vmatprep.subr.mxu0 0.0
    %2009 = vmatpush1.msra.mxu0 0.0
    %2010 = vmatprep.subr.mxu0 0.0
    %2011 = vmatpush1.msra.mxu0 0.0
    %2012 = vmatprep.subr.mxu0 0.0
    %2013 = vmatpush1.msra.mxu0 0.0
    %2014 = vmatprep.subr.mxu0 0.0
    %2015 = vmatpush1.msra.mxu0 0.0
    %2016 = vmatprep.subr.mxu0 0.0
    %2017 = vmatpush1.msra.mxu0 0.0
    %2018 = vmatprep.subr.mxu0 0.0
    %2019 = vmatpush1.msra.mxu0 0.0
    %2020 = vmatprep.subr.mxu0 0.0
    %2021 = vmatpush1.msra.mxu0 0.0
    %2022 = vmatprep.mubr.f32.mxu0 0.0
    %2023 = vmatmul.mubr.f32.gmra.mrb[0].mxu0 %v1956
    %v2024 = vpop.f32.mrb[0].mxu0
    %v2025 = vadd.f32 0.0, %v2024
    %v2026 = vpop.f32.mrb[0].mxu0
    %2027 = vdwg.mxu0
    %v2029 = vsel %vm1193, %v1847, 0
    %2031 = vmatprep.subr.mxu0 0.0
    %2032 = vmatpush1.msra.mxu0 %v1123
    %2033 = vmatprep.subr.mxu0 0.0
    %2034 = vmatpush1.msra.mxu0 0.0
    %2035 = vmatprep.subr.mxu0 0.0
    %2036 = vmatpush1.msra.mxu0 0.0
    %2037 = vmatprep.subr.mxu0 0.0
    %2038 = vmatpush1.msra.mxu0 0.0
    %2039 = vmatprep.subr.mxu0 0.0
    %2040 = vmatpush1.msra.mxu0 0.0
    %2041 = vmatprep.subr.mxu0 0.0
    %2042 = vmatpush1.msra.mxu0 0.0
    %2043 = vmatprep.subr.mxu0 0.0
    %2044 = vmatpush1.msra.mxu0 0.0
    %2045 = vmatprep.subr.mxu0 0.0
    %2046 = vmatpush1.msra.mxu0 0.0
    %2047 = vmatprep.subr.mxu0 0.0
    %2048 = vmatpush1.msra.mxu0 0.0
    %2049 = vmatprep.subr.mxu0 0.0
    %2050 = vmatpush1.msra.mxu0 0.0
    %2051 = vmatprep.subr.mxu0 0.0
    %2052 = vmatpush1.msra.mxu0 0.0
    %2053 = vmatprep.subr.mxu0 0.0
    %2054 = vmatpush1.msra.mxu0 0.0
    %2055 = vmatprep.subr.mxu0 0.0
    %2056 = vmatpush1.msra.mxu0 0.0
    %2057 = vmatprep.subr.mxu0 0.0
    %2058 = vmatpush1.msra.mxu0 0.0
    %2059 = vmatprep.subr.mxu0 0.0
    %2060 = vmatpush1.msra.mxu0 0.0
    %2061 = vmatprep.subr.mxu0 0.0
    %2062 = vmatpush1.msra.mxu0 0.0
    %2063 = vmatprep.subr.mxu0 0.0
    %2064 = vmatpush1.msra.mxu0 0.0
    %2065 = vmatprep.subr.mxu0 0.0
    %2066 = vmatpush1.msra.mxu0 0.0
    %2067 = vmatprep.subr.mxu0 0.0
    %2068 = vmatpush1.msra.mxu0 0.0
    %2069 = vmatprep.subr.mxu0 0.0
    %2070 = vmatpush1.msra.mxu0 0.0
    %2071 = vmatprep.subr.mxu0 0.0
    %2072 = vmatpush1.msra.mxu0 0.0
    %2073 = vmatprep.subr.mxu0 0.0
    %2074 = vmatpush1.msra.mxu0 0.0
    %2075 = vmatprep.subr.mxu0 0.0
    %2076 = vmatpush1.msra.mxu0 0.0
    %2077 = vmatprep.subr.mxu0 0.0
    %2078 = vmatpush1.msra.mxu0 0.0
    %2079 = vmatprep.subr.mxu0 0.0
    %2080 = vmatpush1.msra.mxu0 0.0
    %2081 = vmatprep.subr.mxu0 0.0
    %2082 = vmatpush1.msra.mxu0 0.0
    %2083 = vmatprep.subr.mxu0 0.0
    %2084 = vmatpush1.msra.mxu0 0.0
    %2085 = vmatprep.subr.mxu0 0.0
    %2086 = vmatpush1.msra.mxu0 0.0
    %2087 = vmatprep.subr.mxu0 0.0
    %2088 = vmatpush1.msra.mxu0 0.0
    %2089 = vmatprep.subr.mxu0 0.0
    %2090 = vmatpush1.msra.mxu0 0.0
    %2091 = vmatprep.subr.mxu0 0.0
    %2092 = vmatpush1.msra.mxu0 0.0
    %2093 = vmatprep.subr.mxu0 0.0
    %2094 = vmatpush1.msra.mxu0 0.0
    %2095 = vmatprep.mubr.f32.mxu0 0.0
    %2096 = vmatmul.mubr.f32.gmra.mrb[0].mxu0 %v2029
    %v2097 = vpop.f32.mrb[0].mxu0
    %v2098 = vadd.f32 0.0, %v2097
    %v2099 = vpop.f32.mrb[0].mxu0
    %2100 = vdwg.mxu0
    %v2102 = vsel %vm1193, %v1849, 0
    %2104 = vmatprep.subr.mxu0 0.0
    %2105 = vmatpush1.msra.mxu0 %v1124
    %2106 = vmatprep.subr.mxu0 0.0
    %2107 = vmatpush1.msra.mxu0 0.0
    %2108 = vmatprep.subr.mxu0 0.0
    %2109 = vmatpush1.msra.mxu0 0.0
    %2110 = vmatprep.subr.mxu0 0.0
    %2111 = vmatpush1.msra.mxu0 0.0
    %2112 = vmatprep.subr.mxu0 0.0
    %2113 = vmatpush1.msra.mxu0 0.0
    %2114 = vmatprep.subr.mxu0 0.0
    %2115 = vmatpush1.msra.mxu0 0.0
    %2116 = vmatprep.subr.mxu0 0.0
    %2117 = vmatpush1.msra.mxu0 0.0
    %2118 = vmatprep.subr.mxu0 0.0
    %2119 = vmatpush1.msra.mxu0 0.0
    %2120 = vmatprep.subr.mxu0 0.0
    %2121 = vmatpush1.msra.mxu0 0.0
    %2122 = vmatprep.subr.mxu0 0.0
    %2123 = vmatpush1.msra.mxu0 0.0
    %2124 = vmatprep.subr.mxu0 0.0
    %2125 = vmatpush1.msra.mxu0 0.0
    %2126 = vmatprep.subr.mxu0 0.0
    %2127 = vmatpush1.msra.mxu0 0.0
    %2128 = vmatprep.subr.mxu0 0.0
    %2129 = vmatpush1.msra.mxu0 0.0
    %2130 = vmatprep.subr.mxu0 0.0
    %2131 = vmatpush1.msra.mxu0 0.0
    %2132 = vmatprep.subr.mxu0 0.0
    %2133 = vmatpush1.msra.mxu0 0.0
    %2134 = vmatprep.subr.mxu0 0.0
    %2135 = vmatpush1.msra.mxu0 0.0
    %2136 = vmatprep.subr.mxu0 0.0
    %2137 = vmatpush1.msra.mxu0 0.0
    %2138 = vmatprep.subr.mxu0 0.0
    %2139 = vmatpush1.msra.mxu0 0.0
    %2140 = vmatprep.subr.mxu0 0.0
    %2141 = vmatpush1.msra.mxu0 0.0
    %2142 = vmatprep.subr.mxu0 0.0
    %2143 = vmatpush1.msra.mxu0 0.0
    %2144 = vmatprep.subr.mxu0 0.0
    %2145 = vmatpush1.msra.mxu0 0.0
    %2146 = vmatprep.subr.mxu0 0.0
    %2147 = vmatpush1.msra.mxu0 0.0
    %2148 = vmatprep.subr.mxu0 0.0
    %2149 = vmatpush1.msra.mxu0 0.0
    %2150 = vmatprep.subr.mxu0 0.0
    %2151 = vmatpush1.msra.mxu0 0.0
    %2152 = vmatprep.subr.mxu0 0.0
    %2153 = vmatpush1.msra.mxu0 0.0
    %2154 = vmatprep.subr.mxu0 0.0
    %2155 = vmatpush1.msra.mxu0 0.0
    %2156 = vmatprep.subr.mxu0 0.0
    %2157 = vmatpush1.msra.mxu0 0.0
    %2158 = vmatprep.subr.mxu0 0.0
    %2159 = vmatpush1.msra.mxu0 0.0
    %2160 = vmatprep.subr.mxu0 0.0
    %2161 = vmatpush1.msra.mxu0 0.0
    %2162 = vmatprep.subr.mxu0 0.0
    %2163 = vmatpush1.msra.mxu0 0.0
    %2164 = vmatprep.subr.mxu0 0.0
    %2165 = vmatpush1.msra.mxu0 0.0
    %2166 = vmatprep.subr.mxu0 0.0
    %2167 = vmatpush1.msra.mxu0 0.0
    %2168 = vmatprep.mubr.f32.mxu0 0.0
    %2169 = vmatmul.mubr.f32.gmra.mrb[0].mxu0 %v2102
    %v2170 = vpop.f32.mrb[0].mxu0
    %v2171 = vadd.f32 0.0, %v2170
    %v2172 = vpop.f32.mrb[0].mxu0
    %2173 = vdwg.mxu0
    %v2175 = vsel %vm1193, %v1851, 0
    %2177 = vmatprep.subr.mxu0 0.0
    %2178 = vmatpush1.msra.mxu0 %v1189
    %2179 = vmatprep.subr.mxu0 0.0
    %2180 = vmatpush1.msra.mxu0 0.0
    %2181 = vmatprep.subr.mxu0 0.0
    %2182 = vmatpush1.msra.mxu0 0.0
    %2183 = vmatprep.subr.mxu0 0.0
    %2184 = vmatpush1.msra.mxu0 0.0
    %2185 = vmatprep.subr.mxu0 0.0
    %2186 = vmatpush1.msra.mxu0 0.0
    %2187 = vmatprep.subr.mxu0 0.0
    %2188 = vmatpush1.msra.mxu0 0.0
    %2189 = vmatprep.subr.mxu0 0.0
    %2190 = vmatpush1.msra.mxu0 0.0
    %2191 = vmatprep.subr.mxu0 0.0
    %2192 = vmatpush1.msra.mxu0 0.0
    %2193 = vmatprep.subr.mxu0 0.0
    %2194 = vmatpush1.msra.mxu0 0.0
    %2195 = vmatprep.subr.mxu0 0.0
    %2196 = vmatpush1.msra.mxu0 0.0
    %2197 = vmatprep.subr.mxu0 0.0
    %2198 = vmatpush1.msra.mxu0 0.0
    %2199 = vmatprep.subr.mxu0 0.0
    %2200 = vmatpush1.msra.mxu0 0.0
    %2201 = vmatprep.subr.mxu0 0.0
    %2202 = vmatpush1.msra.mxu0 0.0
    %2203 = vmatprep.subr.mxu0 0.0
    %2204 = vmatpush1.msra.mxu0 0.0
    %2205 = vmatprep.subr.mxu0 0.0
    %2206 = vmatpush1.msra.mxu0 0.0
    %2207 = vmatprep.subr.mxu0 0.0
    %2208 = vmatpush1.msra.mxu0 0.0
    %2209 = vmatprep.subr.mxu0 0.0
    %2210 = vmatpush1.msra.mxu0 0.0
    %2211 = vmatprep.subr.mxu0 0.0
    %2212 = vmatpush1.msra.mxu0 0.0
    %2213 = vmatprep.subr.mxu0 0.0
    %2214 = vmatpush1.msra.mxu0 0.0
    %2215 = vmatprep.subr.mxu0 0.0
    %2216 = vmatpush1.msra.mxu0 0.0
    %2217 = vmatprep.subr.mxu0 0.0
    %2218 = vmatpush1.msra.mxu0 0.0
    %2219 = vmatprep.subr.mxu0 0.0
    %2220 = vmatpush1.msra.mxu0 0.0
    %2221 = vmatprep.subr.mxu0 0.0
    %2222 = vmatpush1.msra.mxu0 0.0
    %2223 = vmatprep.subr.mxu0 0.0
    %2224 = vmatpush1.msra.mxu0 0.0
    %2225 = vmatprep.subr.mxu0 0.0
    %2226 = vmatpush1.msra.mxu0 0.0
    %2227 = vmatprep.subr.mxu0 0.0
    %2228 = vmatpush1.msra.mxu0 0.0
    %2229 = vmatprep.subr.mxu0 0.0
    %2230 = vmatpush1.msra.mxu0 0.0
    %2231 = vmatprep.subr.mxu0 0.0
    %2232 = vmatpush1.msra.mxu0 0.0
    %2233 = vmatprep.subr.mxu0 0.0
    %2234 = vmatpush1.msra.mxu0 0.0
    %2235 = vmatprep.subr.mxu0 0.0
    %2236 = vmatpush1.msra.mxu0 0.0
    %2237 = vmatprep.subr.mxu0 0.0
    %2238 = vmatpush1.msra.mxu0 0.0
    %2239 = vmatprep.subr.mxu0 0.0
    %2240 = vmatpush1.msra.mxu0 0.0
    %2241 = vmatprep.mubr.f32.mxu0 0.0
    %2242 = vmatmul.mubr.f32.gmra.mrb[0].mxu0 %v2175
    %v2243 = vpop.f32.mrb[0].mxu0
    %v2244 = vadd.f32 0.0, %v2243
    %v2245 = vpop.f32.mrb[0].mxu0
    %2246 = vdwg.mxu0
    %v2248 = vsel %vm1193, %v1853, 0
    %2250 = vmatprep.subr.mxu0 0.0
    %2251 = vmatpush1.msra.mxu0 %v1190
    %2252 = vmatprep.subr.mxu0 0.0
    %2253 = vmatpush1.msra.mxu0 0.0
    %2254 = vmatprep.subr.mxu0 0.0
    %2255 = vmatpush1.msra.mxu0 0.0
    %2256 = vmatprep.subr.mxu0 0.0
    %2257 = vmatpush1.msra.mxu0 0.0
    %2258 = vmatprep.subr.mxu0 0.0
    %2259 = vmatpush1.msra.mxu0 0.0
    %2260 = vmatprep.subr.mxu0 0.0
    %2261 = vmatpush1.msra.mxu0 0.0
    %2262 = vmatprep.subr.mxu0 0.0
    %2263 = vmatpush1.msra.mxu0 0.0
    %2264 = vmatprep.subr.mxu0 0.0
    %2265 = vmatpush1.msra.mxu0 0.0
    %2266 = vmatprep.subr.mxu0 0.0
    %2267 = vmatpush1.msra.mxu0 0.0
    %2268 = vmatprep.subr.mxu0 0.0
    %2269 = vmatpush1.msra.mxu0 0.0
    %2270 = vmatprep.subr.mxu0 0.0
    %2271 = vmatpush1.msra.mxu0 0.0
    %2272 = vmatprep.subr.mxu0 0.0
    %2273 = vmatpush1.msra.mxu0 0.0
    %2274 = vmatprep.subr.mxu0 0.0
    %2275 = vmatpush1.msra.mxu0 0.0
    %2276 = vmatprep.subr.mxu0 0.0
    %2277 = vmatpush1.msra.mxu0 0.0
    %2278 = vmatprep.subr.mxu0 0.0
    %2279 = vmatpush1.msra.mxu0 0.0
    %2280 = vmatprep.subr.mxu0 0.0
    %2281 = vmatpush1.msra.mxu0 0.0
    %2282 = vmatprep.subr.mxu0 0.0
    %2283 = vmatpush1.msra.mxu0 0.0
    %2284 = vmatprep.subr.mxu0 0.0
    %2285 = vmatpush1.msra.mxu0 0.0
    %2286 = vmatprep.subr.mxu0 0.0
    %2287 = vmatpush1.msra.mxu0 0.0
    %2288 = vmatprep.subr.mxu0 0.0
    %2289 = vmatpush1.msra.mxu0 0.0
    %2290 = vmatprep.subr.mxu0 0.0
    %2291 = vmatpush1.msra.mxu0 0.0
    %2292 = vmatprep.subr.mxu0 0.0
    %2293 = vmatpush1.msra.mxu0 0.0
    %2294 = vmatprep.subr.mxu0 0.0
    %2295 = vmatpush1.msra.mxu0 0.0
    %2296 = vmatprep.subr.mxu0 0.0
    %2297 = vmatpush1.msra.mxu0 0.0
    %2298 = vmatprep.subr.mxu0 0.0
    %2299 = vmatpush1.msra.mxu0 0.0
    %2300 = vmatprep.subr.mxu0 0.0
    %2301 = vmatpush1.msra.mxu0 0.0
    %2302 = vmatprep.subr.mxu0 0.0
    %2303 = vmatpush1.msra.mxu0 0.0
    %2304 = vmatprep.subr.mxu0 0.0
    %2305 = vmatpush1.msra.mxu0 0.0
    %2306 = vmatprep.subr.mxu0 0.0
    %2307 = vmatpush1.msra.mxu0 0.0
    %2308 = vmatprep.subr.mxu0 0.0
    %2309 = vmatpush1.msra.mxu0 0.0
    %2310 = vmatprep.subr.mxu0 0.0
    %2311 = vmatpush1.msra.mxu0 0.0
    %2312 = vmatprep.subr.mxu0 0.0
    %2313 = vmatpush1.msra.mxu0 0.0
    %2314 = vmatprep.mubr.f32.mxu0 0.0
    %2315 = vmatmul.mubr.f32.gmra.mrb[0].mxu0 %v2248
    %v2316 = vpop.f32.mrb[0].mxu0
    %v2317 = vadd.f32 0.0, %v2316
    %v2318 = vpop.f32.mrb[0].mxu0
    %2319 = vdwg.mxu0
    %v2321 = vsel %vm1193, %v1855, 0
    %2323 = vmatprep.subr.mxu0 0.0
    %2324 = vmatpush1.msra.mxu0 %v1191
    %2325 = vmatprep.subr.mxu0 0.0
    %2326 = vmatpush1.msra.mxu0 0.0
    %2327 = vmatprep.subr.mxu0 0.0
    %2328 = vmatpush1.msra.mxu0 0.0
    %2329 = vmatprep.subr.mxu0 0.0
    %2330 = vmatpush1.msra.mxu0 0.0
    %2331 = vmatprep.subr.mxu0 0.0
    %2332 = vmatpush1.msra.mxu0 0.0
    %2333 = vmatprep.subr.mxu0 0.0
    %2334 = vmatpush1.msra.mxu0 0.0
    %2335 = vmatprep.subr.mxu0 0.0
    %2336 = vmatpush1.msra.mxu0 0.0
    %2337 = vmatprep.subr.mxu0 0.0
    %2338 = vmatpush1.msra.mxu0 0.0
    %2339 = vmatprep.subr.mxu0 0.0
    %2340 = vmatpush1.msra.mxu0 0.0
    %2341 = vmatprep.subr.mxu0 0.0
    %2342 = vmatpush1.msra.mxu0 0.0
    %2343 = vmatprep.subr.mxu0 0.0
    %2344 = vmatpush1.msra.mxu0 0.0
    %2345 = vmatprep.subr.mxu0 0.0
    %2346 = vmatpush1.msra.mxu0 0.0
    %2347 = vmatprep.subr.mxu0 0.0
    %2348 = vmatpush1.msra.mxu0 0.0
    %2349 = vmatprep.subr.mxu0 0.0
    %2350 = vmatpush1.msra.mxu0 0.0
    %2351 = vmatprep.subr.mxu0 0.0
    %2352 = vmatpush1.msra.mxu0 0.0
    %2353 = vmatprep.subr.mxu0 0.0
    %2354 = vmatpush1.msra.mxu0 0.0
    %2355 = vmatprep.subr.mxu0 0.0
    %2356 = vmatpush1.msra.mxu0 0.0
    %2357 = vmatprep.subr.mxu0 0.0
    %2358 = vmatpush1.msra.mxu0 0.0
    %2359 = vmatprep.subr.mxu0 0.0
    %2360 = vmatpush1.msra.mxu0 0.0
    %2361 = vmatprep.subr.mxu0 0.0
    %2362 = vmatpush1.msra.mxu0 0.0
    %2363 = vmatprep.subr.mxu0 0.0
    %2364 = vmatpush1.msra.mxu0 0.0
    %2365 = vmatprep.subr.mxu0 0.0
    %2366 = vmatpush1.msra.mxu0 0.0
    %2367 = vmatprep.subr.mxu0 0.0
    %2368 = vmatpush1.msra.mxu0 0.0
    %2369 = vmatprep.subr.mxu0 0.0
    %2370 = vmatpush1.msra.mxu0 0.0
    %2371 = vmatprep.subr.mxu0 0.0
    %2372 = vmatpush1.msra.mxu0 0.0
    %2373 = vmatprep.subr.mxu0 0.0
    %2374 = vmatpush1.msra.mxu0 0.0
    %2375 = vmatprep.subr.mxu0 0.0
    %2376 = vmatpush1.msra.mxu0 0.0
    %2377 = vmatprep.subr.mxu0 0.0
    %2378 = vmatpush1.msra.mxu0 0.0
    %2379 = vmatprep.subr.mxu0 0.0
    %2380 = vmatpush1.msra.mxu0 0.0
    %2381 = vmatprep.subr.mxu0 0.0
    %2382 = vmatpush1.msra.mxu0 0.0
    %2383 = vmatprep.subr.mxu0 0.0
    %2384 = vmatpush1.msra.mxu0 0.0
    %2385 = vmatprep.subr.mxu0 0.0
    %2386 = vmatpush1.msra.mxu0 0.0
    %2387 = vmatprep.mubr.f32.mxu0 0.0
    %2388 = vmatmul.mubr.f32.gmra.mrb[0].mxu0 %v2321
    %v2389 = vpop.f32.mrb[0].mxu0
    %v2390 = vadd.f32 0.0, %v2389
    %v2391 = vpop.f32.mrb[0].mxu0
    %2392 = vdwg.mxu0
    %v2394 = vsel %vm1193, %v1857, 0
    %2396 = vmatprep.subr.mxu0 0.0
    %2397 = vmatpush1.msra.mxu0 %v1192
    %2398 = vmatprep.subr.mxu0 0.0
    %2399 = vmatpush1.msra.mxu0 0.0
    %2400 = vmatprep.subr.mxu0 0.0
    %2401 = vmatpush1.msra.mxu0 0.0
    %2402 = vmatprep.subr.mxu0 0.0
    %2403 = vmatpush1.msra.mxu0 0.0
    %2404 = vmatprep.subr.mxu0 0.0
    %2405 = vmatpush1.msra.mxu0 0.0
    %2406 = vmatprep.subr.mxu0 0.0
    %2407 = vmatpush1.msra.mxu0 0.0
    %2408 = vmatprep.subr.mxu0 0.0
    %2409 = vmatpush1.msra.mxu0 0.0
    %2410 = vmatprep.subr.mxu0 0.0
    %2411 = vmatpush1.msra.mxu0 0.0
    %2412 = vmatprep.subr.mxu0 0.0
    %2413 = vmatpush1.msra.mxu0 0.0
    %2414 = vmatprep.subr.mxu0 0.0
    %2415 = vmatpush1.msra.mxu0 0.0
    %2416 = vmatprep.subr.mxu0 0.0
    %2417 = vmatpush1.msra.mxu0 0.0
    %2418 = vmatprep.subr.mxu0 0.0
    %2419 = vmatpush1.msra.mxu0 0.0
    %2420 = vmatprep.subr.mxu0 0.0
    %2421 = vmatpush1.msra.mxu0 0.0
    %2422 = vmatprep.subr.mxu0 0.0
    %2423 = vmatpush1.msra.mxu0 0.0
    %2424 = vmatprep.subr.mxu0 0.0
    %2425 = vmatpush1.msra.mxu0 0.0
    %2426 = vmatprep.subr.mxu0 0.0
    %2427 = vmatpush1.msra.mxu0 0.0
    %2428 = vmatprep.subr.mxu0 0.0
    %2429 = vmatpush1.msra.mxu0 0.0
    %2430 = vmatprep.subr.mxu0 0.0
    %2431 = vmatpush1.msra.mxu0 0.0
    %2432 = vmatprep.subr.mxu0 0.0
    %2433 = vmatpush1.msra.mxu0 0.0
    %2434 = vmatprep.subr.mxu0 0.0
    %2435 = vmatpush1.msra.mxu0 0.0
    %2436 = vmatprep.subr.mxu0 0.0
    %2437 = vmatpush1.msra.mxu0 0.0
    %2438 = vmatprep.subr.mxu0 0.0
    %2439 = vmatpush1.msra.mxu0 0.0
    %2440 = vmatprep.subr.mxu0 0.0
    %2441 = vmatpush1.msra.mxu0 0.0
    %2442 = vmatprep.subr.mxu0 0.0
    %2443 = vmatpush1.msra.mxu0 0.0
    %2444 = vmatprep.subr.mxu0 0.0
    %2445 = vmatpush1.msra.mxu0 0.0
    %2446 = vmatprep.subr.mxu0 0.0
    %2447 = vmatpush1.msra.mxu0 0.0
    %2448 = vmatprep.subr.mxu0 0.0
    %2449 = vmatpush1.msra.mxu0 0.0
    %2450 = vmatprep.subr.mxu0 0.0
    %2451 = vmatpush1.msra.mxu0 0.0
    %2452 = vmatprep.subr.mxu0 0.0
    %2453 = vmatpush1.msra.mxu0 0.0
    %2454 = vmatprep.subr.mxu0 0.0
    %2455 = vmatpush1.msra.mxu0 0.0
    %2456 = vmatprep.subr.mxu0 0.0
    %2457 = vmatpush1.msra.mxu0 0.0
    %2458 = vmatprep.subr.mxu0 0.0
    %2459 = vmatpush1.msra.mxu0 0.0
    %2460 = vmatprep.mubr.f32.mxu0 0.0
    %2461 = vmatmul.mubr.f32.gmra.mrb[0].mxu0 %v2394
    %v2462 = vpop.f32.mrb[0].mxu0
    %v2463 = vadd.f32 0.0, %v2462
    %v2464 = vpop.f32.mrb[0].mxu0
    %2465 = vdwg.mxu0
    %v2466 = vrcp.pop %v1860
    %v2467 = vrcp.pop %v1863
    %v2468 = vrcp.pop %v1866
    %v2469 = vrcp.pop %v1869
    %v2470 = vrcp.pop %v1872
    %v2471 = vrcp.pop %v1875
    %v2472 = vrcp.pop %v1878
    %v2473 = vrcp.pop %v1881
    %v2474 = vmul.f32 %v1952, %v2466
    %v2475 = vmul.f32 %v2025, %v2467
    %v2476 = vmul.f32 %v2098, %v2468
    %v2477 = vmul.f32 %v2171, %v2469
    %v2478 = vmul.f32 %v2244, %v2470
    %v2479 = vmul.f32 %v2317, %v2471
    %v2480 = vmul.f32 %v2390, %v2472
    %v2481 = vmul.f32 %v2463, %v2473
    %v2482 = vcombine.low %v2474, %v2476
    %v2483 = vcombine.high %v2474, %v2476
    %v2485 = vunpack.c.l.s4 1983009808
    %v2486 = vunpack.c.0.s8 %v2485
    %v2487 = vlaneseq
    %v2488 = vshrl.u32 %v2487, 7
    %v2489 = vsub.s32 %v2486, %v2488
    %v2490 = vrot.slane %v2482, %v2489
    %v2492 = vunpack.c.l.s4 1983009808
    %v2493 = vunpack.c.0.s8 %v2492
    %v2494 = vlaneseq
    %v2495 = vshrl.u32 %v2494, 7
    %v2496 = vsub.s32 %v2493, %v2495
    %v2497 = vrot.slane %v2483, %v2496
    %v2498 = vcombine.low %v2475, %v2477
    %v2499 = vcombine.high %v2475, %v2477
    %v2501 = vunpack.c.l.s4 1983009808
    %v2502 = vunpack.c.0.s8 %v2501
    %v2503 = vlaneseq
    %v2504 = vshrl.u32 %v2503, 7
    %v2505 = vsub.s32 %v2502, %v2504
    %v2506 = vrot.slane %v2498, %v2505
    %v2508 = vunpack.c.l.s4 1983009808
    %v2509 = vunpack.c.0.s8 %v2508
    %v2510 = vlaneseq
    %v2511 = vshrl.u32 %v2510, 7
    %v2512 = vsub.s32 %v2509, %v2511
    %v2513 = vrot.slane %v2499, %v2512
    %v2514 = vcombine.low %v2490, %v2506
    %v2515 = vcombine.high %v2490, %v2506
    %v2517 = vunpack.c.l.s4 1934713408
    %v2518 = vunpack.c.0.s8 %v2517
    %v2519 = vlaneseq
    %v2520 = vshrl.u32 %v2519, 7
    %v2521 = vsub.s32 %v2518, %v2520
    %v2522 = vrot.slane %v2514, %v2521
    %v2524 = vunpack.c.l.s4 1934713408
    %v2525 = vunpack.c.0.s8 %v2524
    %v2526 = vlaneseq
    %v2527 = vshrl.u32 %v2526, 7
    %v2528 = vsub.s32 %v2525, %v2527
    %v2529 = vrot.slane %v2515, %v2528
    %v2530 = vcombine.low %v2497, %v2513
    %v2531 = vcombine.high %v2497, %v2513
    %v2533 = vunpack.c.l.s4 1934713408
    %v2534 = vunpack.c.0.s8 %v2533
    %v2535 = vlaneseq
    %v2536 = vshrl.u32 %v2535, 7
    %v2537 = vsub.s32 %v2534, %v2536
    %v2538 = vrot.slane %v2530, %v2537
    %v2540 = vunpack.c.l.s4 1934713408
    %v2541 = vunpack.c.0.s8 %v2540
    %v2542 = vlaneseq
    %v2543 = vshrl.u32 %v2542, 7
    %v2544 = vsub.s32 %v2541, %v2543
    %v2545 = vrot.slane %v2531, %v2544
    %v2546 = vcombine.high %v2522, 0.0
    %v2547 = vcombine.high %v2529, 0.0
    %v2548 = vcombine.high %v2538, 0.0
    %v2549 = vcombine.high %v2545, 0.0
    %v2550 = vcombine.low %v2478, %v2480
    %v2551 = vcombine.high %v2478, %v2480
    %v2553 = vunpack.c.l.s4 1983009808
    %v2554 = vunpack.c.0.s8 %v2553
    %v2555 = vlaneseq
    %v2556 = vshrl.u32 %v2555, 7
    %v2557 = vsub.s32 %v2554, %v2556
    %v2558 = vrot.slane %v2550, %v2557
    %v2560 = vunpack.c.l.s4 1983009808
    %v2561 = vunpack.c.0.s8 %v2560
    %v2562 = vlaneseq
    %v2563 = vshrl.u32 %v2562, 7
    %v2564 = vsub.s32 %v2561, %v2563
    %v2565 = vrot.slane %v2551, %v2564
    %v2566 = vcombine.low %v2479, %v2481
    %v2567 = vcombine.high %v2479, %v2481
    %v2569 = vunpack.c.l.s4 1983009808
    %v2570 = vunpack.c.0.s8 %v2569
    %v2571 = vlaneseq
    %v2572 = vshrl.u32 %v2571, 7
    %v2573 = vsub.s32 %v2570, %v2572
    %v2574 = vrot.slane %v2566, %v2573
    %v2576 = vunpack.c.l.s4 1983009808
    %v2577 = vunpack.c.0.s8 %v2576
    %v2578 = vlaneseq
    %v2579 = vshrl.u32 %v2578, 7
    %v2580 = vsub.s32 %v2577, %v2579
    %v2581 = vrot.slane %v2567, %v2580
    %v2582 = vcombine.low %v2558, %v2574
    %v2583 = vcombine.high %v2558, %v2574
    %v2585 = vunpack.c.l.s4 1934713408
    %v2586 = vunpack.c.0.s8 %v2585
    %v2587 = vlaneseq
    %v2588 = vshrl.u32 %v2587, 7
    %v2589 = vsub.s32 %v2586, %v2588
    %v2590 = vrot.slane %v2582, %v2589
    %v2592 = vunpack.c.l.s4 1934713408
    %v2593 = vunpack.c.0.s8 %v2592
    %v2594 = vlaneseq
    %v2595 = vshrl.u32 %v2594, 7
    %v2596 = vsub.s32 %v2593, %v2595
    %v2597 = vrot.slane %v2583, %v2596
    %v2598 = vcombine.low %v2565, %v2581
    %v2599 = vcombine.high %v2565, %v2581
    %v2601 = vunpack.c.l.s4 1934713408
    %v2602 = vunpack.c.0.s8 %v2601
    %v2603 = vlaneseq
    %v2604 = vshrl.u32 %v2603, 7
    %v2605 = vsub.s32 %v2602, %v2604
    %v2606 = vrot.slane %v2598, %v2605
    %v2608 = vunpack.c.l.s4 1934713408
    %v2609 = vunpack.c.0.s8 %v2608
    %v2610 = vlaneseq
    %v2611 = vshrl.u32 %v2610, 7
    %v2612 = vsub.s32 %v2609, %v2611
    %v2613 = vrot.slane %v2599, %v2612
    %v2614 = vcombine.high %v2590, 0.0
    %v2615 = vcombine.high %v2597, 0.0
    %v2616 = vcombine.high %v2606, 0.0
    %v2617 = vcombine.high %v2613, 0.0
    %v2618 = vcombine.low %v2522, %v2529
    %v2620 = vunpack.c.l.s4 1983009808
    %v2621 = vunpack.c.0.s8 %v2620
    %v2622 = vlaneseq
    %v2623 = vshrl.u32 %v2622, 7
    %v2624 = vsub.s32 %v2621, %v2623
    %v2625 = vrot.slane %v2618, %v2624
    %v2626 = vcombine.low %v2546, %v2547
    %v2628 = vunpack.c.l.s4 1983009808
    %v2629 = vunpack.c.0.s8 %v2628
    %v2630 = vlaneseq
    %v2631 = vshrl.u32 %v2630, 7
    %v2632 = vsub.s32 %v2629, %v2631
    %v2633 = vrot.slane %v2626, %v2632
    %v2634 = vcombine.low %v2538, %v2545
    %v2636 = vunpack.c.l.s4 1983009808
    %v2637 = vunpack.c.0.s8 %v2636
    %v2638 = vlaneseq
    %v2639 = vshrl.u32 %v2638, 7
    %v2640 = vsub.s32 %v2637, %v2639
    %v2641 = vrot.slane %v2634, %v2640
    %v2642 = vcombine.low %v2548, %v2549
    %v2644 = vunpack.c.l.s4 1983009808
    %v2645 = vunpack.c.0.s8 %v2644
    %v2646 = vlaneseq
    %v2647 = vshrl.u32 %v2646, 7
    %v2648 = vsub.s32 %v2645, %v2647
    %v2649 = vrot.slane %v2642, %v2648
    %v2650 = vcombine.low %v2625, %v2633
    %v2651 = vcombine.high %v2625, %v2633
    %v2653 = vunpack.c.l.s4 1934713408
    %v2654 = vunpack.c.0.s8 %v2653
    %v2655 = vlaneseq
    %v2656 = vshrl.u32 %v2655, 7
    %v2657 = vsub.s32 %v2654, %v2656
    %v2658 = vrot.slane %v2650, %v2657
    %v2660 = vunpack.c.l.s4 1934713408
    %v2661 = vunpack.c.0.s8 %v2660
    %v2662 = vlaneseq
    %v2663 = vshrl.u32 %v2662, 7
    %v2664 = vsub.s32 %v2661, %v2663
    %v2665 = vrot.slane %v2651, %v2664
    %v2666 = vcombine.low %v2641, %v2649
    %v2667 = vcombine.high %v2641, %v2649
    %v2669 = vunpack.c.l.s4 1934713408
    %v2670 = vunpack.c.0.s8 %v2669
    %v2671 = vlaneseq
    %v2672 = vshrl.u32 %v2671, 7
    %v2673 = vsub.s32 %v2670, %v2672
    %v2674 = vrot.slane %v2666, %v2673
    %v2676 = vunpack.c.l.s4 1934713408
    %v2677 = vunpack.c.0.s8 %v2676
    %v2678 = vlaneseq
    %v2679 = vshrl.u32 %v2678, 7
    %v2680 = vsub.s32 %v2677, %v2679
    %v2681 = vrot.slane %v2667, %v2680
    %v2682 = vcombine.low %v2658, %v2674
    %v2683 = vcombine.high %v2658, %v2674
    %v2684 = vcombine.low %v2665, %v2681
    %v2685 = vcombine.high %v2665, %v2681
    %v2686 = vcombine.low %v2590, %v2597
    %v2688 = vunpack.c.l.s4 1983009808
    %v2689 = vunpack.c.0.s8 %v2688
    %v2690 = vlaneseq
    %v2691 = vshrl.u32 %v2690, 7
    %v2692 = vsub.s32 %v2689, %v2691
    %v2693 = vrot.slane %v2686, %v2692
    %v2694 = vcombine.low %v2614, %v2615
    %v2696 = vunpack.c.l.s4 1983009808
    %v2697 = vunpack.c.0.s8 %v2696
    %v2698 = vlaneseq
    %v2699 = vshrl.u32 %v2698, 7
    %v2700 = vsub.s32 %v2697, %v2699
    %v2701 = vrot.slane %v2694, %v2700
    %v2702 = vcombine.low %v2606, %v2613
    %v2704 = vunpack.c.l.s4 1983009808
    %v2705 = vunpack.c.0.s8 %v2704
    %v2706 = vlaneseq
    %v2707 = vshrl.u32 %v2706, 7
    %v2708 = vsub.s32 %v2705, %v2707
    %v2709 = vrot.slane %v2702, %v2708
    %v2710 = vcombine.low %v2616, %v2617
    %v2712 = vunpack.c.l.s4 1983009808
    %v2713 = vunpack.c.0.s8 %v2712
    %v2714 = vlaneseq
    %v2715 = vshrl.u32 %v2714, 7
    %v2716 = vsub.s32 %v2713, %v2715
    %v2717 = vrot.slane %v2710, %v2716
    %v2718 = vcombine.low %v2693, %v2701
    %v2719 = vcombine.high %v2693, %v2701
    %v2721 = vunpack.c.l.s4 1934713408
    %v2722 = vunpack.c.0.s8 %v2721
    %v2723 = vlaneseq
    %v2724 = vshrl.u32 %v2723, 7
    %v2725 = vsub.s32 %v2722, %v2724
    %v2726 = vrot.slane %v2718, %v2725
    %v2728 = vunpack.c.l.s4 1934713408
    %v2729 = vunpack.c.0.s8 %v2728
    %v2730 = vlaneseq
    %v2731 = vshrl.u32 %v2730, 7
    %v2732 = vsub.s32 %v2729, %v2731
    %v2733 = vrot.slane %v2719, %v2732
    %v2734 = vcombine.low %v2709, %v2717
    %v2735 = vcombine.high %v2709, %v2717
    %v2737 = vunpack.c.l.s4 1934713408
    %v2738 = vunpack.c.0.s8 %v2737
    %v2739 = vlaneseq
    %v2740 = vshrl.u32 %v2739, 7
    %v2741 = vsub.s32 %v2738, %v2740
    %v2742 = vrot.slane %v2734, %v2741
    %v2744 = vunpack.c.l.s4 1934713408
    %v2745 = vunpack.c.0.s8 %v2744
    %v2746 = vlaneseq
    %v2747 = vshrl.u32 %v2746, 7
    %v2748 = vsub.s32 %v2745, %v2747
    %v2749 = vrot.slane %v2735, %v2748
    %v2750 = vcombine.low %v2726, %v2742
    %v2751 = vcombine.high %v2726, %v2742
    %v2752 = vcombine.low %v2733, %v2749
    %v2753 = vcombine.high %v2733, %v2749
    %2756 = vrot.lane.b32.xlu0 %v2683, 8
    %v2757 = vpop.permute.xlu0 %2756
    %2758 = vrot.lane.b32.xlu0 %v2751, 8
    %v2759 = vpop.permute.xlu0 %2758
    %2764 = vrot.lane.b32.xlu0 %v2684, 16
    %v2765 = vpop.permute.xlu0 %2764
    %2766 = vrot.lane.b32.xlu0 %v2752, 16
    %v2767 = vpop.permute.xlu0 %2766
    %2772 = vrot.lane.b32.xlu0 %v2685, 24
    %v2773 = vpop.permute.xlu0 %2772
    %2774 = vrot.lane.b32.xlu0 %v2753, 24
    %v2775 = vpop.permute.xlu0 %2774
    %v2778 = vsel %vm1193, %v2682, %v2757
    %v2779 = vsel %vm1193, %v2750, %v2759
    %vm2780 = vcmask 130048
    %v2781 = vsel %vm2780, %v2778, %v2765
    %v2782 = vsel %vm2780, %v2779, %v2767
    %vm2783 = vcmask 195584
    %v2784 = vsel %vm2783, %v2781, %v2773
    %v2785 = vsel %vm2783, %v2782, %v2775
    %v2786 = vlaneseq
    %v2787 = vshrl.u32 %v2786, 7
    %v2788 = vsub.s32 0, %v2787
    %v2789 = vrot.slane %v60, %v2788
    %v2791 = vsel %vm65, %v2784, 0
    %v2794 = vsel %vm65, %v2785, 0
    %2796 = vmatprep.subr.mxu0 0.0
    %2797 = vmatpush1.msra.mxu0 %v53
    %2798 = vmatprep.subr.mxu0 0.0
    %2799 = vmatpush1.msra.mxu0 %v54
    %2800 = vmatprep.subr.mxu0 0.0
    %2801 = vmatpush1.msra.mxu0 %v55
    %2802 = vmatprep.subr.mxu0 0.0
    %2803 = vmatpush1.msra.mxu0 %v56
    %2804 = vmatprep.subr.mxu0 0.0
    %2805 = vmatpush1.msra.mxu0 0.0
    %2806 = vmatprep.subr.mxu0 0.0
    %2807 = vmatpush1.msra.mxu0 0.0
    %2808 = vmatprep.subr.mxu0 0.0
    %2809 = vmatpush1.msra.mxu0 0.0
    %2810 = vmatprep.subr.mxu0 0.0
    %2811 = vmatpush1.msra.mxu0 0.0
    %2812 = vmatprep.subr.mxu0 0.0
    %2813 = vmatpush1.msra.mxu0 0.0
    %2814 = vmatprep.subr.mxu0 0.0
    %2815 = vmatpush1.msra.mxu0 0.0
    %2816 = vmatprep.subr.mxu0 0.0
    %2817 = vmatpush1.msra.mxu0 0.0
    %2818 = vmatprep.subr.mxu0 0.0
    %2819 = vmatpush1.msra.mxu0 0.0
    %2820 = vmatprep.subr.mxu0 0.0
    %2821 = vmatpush1.msra.mxu0 0.0
    %2822 = vmatprep.subr.mxu0 0.0
    %2823 = vmatpush1.msra.mxu0 0.0
    %2824 = vmatprep.subr.mxu0 0.0
    %2825 = vmatpush1.msra.mxu0 0.0
    %2826 = vmatprep.subr.mxu0 0.0
    %2827 = vmatpush1.msra.mxu0 0.0
    %2828 = vmatprep.subr.mxu0 0.0
    %2829 = vmatpush1.msra.mxu0 0.0
    %2830 = vmatprep.subr.mxu0 0.0
    %2831 = vmatpush1.msra.mxu0 0.0
    %2832 = vmatprep.subr.mxu0 0.0
    %2833 = vmatpush1.msra.mxu0 0.0
    %2834 = vmatprep.subr.mxu0 0.0
    %2835 = vmatpush1.msra.mxu0 0.0
    %2836 = vmatprep.subr.mxu0 0.0
    %2837 = vmatpush1.msra.mxu0 0.0
    %2838 = vmatprep.subr.mxu0 0.0
    %2839 = vmatpush1.msra.mxu0 0.0
    %2840 = vmatprep.subr.mxu0 0.0
    %2841 = vmatpush1.msra.mxu0 0.0
    %2842 = vmatprep.subr.mxu0 0.0
    %2843 = vmatpush1.msra.mxu0 0.0
    %2844 = vmatprep.subr.mxu0 0.0
    %2845 = vmatpush1.msra.mxu0 0.0
    %2846 = vmatprep.subr.mxu0 0.0
    %2847 = vmatpush1.msra.mxu0 0.0
    %2848 = vmatprep.subr.mxu0 0.0
    %2849 = vmatpush1.msra.mxu0 0.0
    %2850 = vmatprep.subr.mxu0 0.0
    %2851 = vmatpush1.msra.mxu0 0.0
    %2852 = vmatprep.subr.mxu0 0.0
    %2853 = vmatpush1.msra.mxu0 0.0
    %2854 = vmatprep.subr.mxu0 0.0
    %2855 = vmatpush1.msra.mxu0 0.0
    %2856 = vmatprep.subr.mxu0 0.0
    %2857 = vmatpush1.msra.mxu0 0.0
    %2858 = vmatprep.subr.mxu0 0.0
    %2859 = vmatpush1.msra.mxu0 0.0
    %2860 = vmatprep.mubr.f32.mxu0 0.0
    %2861 = vmatmul.mubr.f32.gmra.mrb[0].mxu0 %v2791
    %v2862 = vpop.f32.mrb[0].mxu0
    %v2863 = vadd.f32 %v2789, %v2862
    %v2864 = vpop.f32.mrb[0].mxu0
    %2865 = vmatprep.mubr.f32.mxu0 0.0
    %2866 = vmatmul.mubr.f32.gmra.mrb[0].mxu0 %v2794
    %v2867 = vpop.f32.mrb[0].mxu0
    %v2868 = vadd.f32 %v2789, %v2867
    %v2869 = vpop.f32.mrb[0].mxu0
    %2870 = vdwg.mxu0
    %v2871 = vld [vmem:[%s5] sm:$0xff]
    %v2872 = vld [vmem:[%s5 + $0x8] sm:$0xff]
    %v2873 = vld [vmem:[%s5 + $0x10] sm:$0xff]
    %v2874 = vld [vmem:[%s5 + $0x18] sm:$0xff]
    %v2875 = vld [vmem:[%s5 + $0x20] sm:$0xff]
    %v2876 = vld [vmem:[%s5 + $0x28] sm:$0xff]
    %v2877 = vld [vmem:[%s5 + $0x30] sm:$0xff]
    %v2878 = vld [vmem:[%s5 + $0x38] sm:$0xff]
    %v2879 = vld [vmem:[%s5 + $0x40] sm:$0xff]
    %v2880 = vld [vmem:[%s5 + $0x48] sm:$0xff]
    %v2881 = vld [vmem:[%s5 + $0x50] sm:$0xff]
    %v2882 = vld [vmem:[%s5 + $0x58] sm:$0xff]
    %v2883 = vld [vmem:[%s5 + $0x60] sm:$0xff]
    %v2884 = vld [vmem:[%s5 + $0x68] sm:$0xff]
    %v2885 = vld [vmem:[%s5 + $0x70] sm:$0xff]
    %v2886 = vld [vmem:[%s5 + $0x78] sm:$0xff]
    %v2887 = vld [vmem:[%s6] sm:$0x1]
    %v2888 = vld [vmem:[%s6 + $0x1] sm:$0x1]
    %v2889 = vld [vmem:[%s6 + $0x2] sm:$0x1]
    %v2890 = vld [vmem:[%s6 + $0x3] sm:$0x1]
    %v2891 = vlaneseq
    %v2892 = vshrl.u32 %v2891, 7
    %v2893 = vsub.s32 0, %v2892
    %v2894 = vrot.slane %v2887, %v2893
    %2895 = vmatprep.subr.mxu0 0.0
    %2896 = vmatpush1.msra.mxu0 %v2871
    %2897 = vmatprep.subr.mxu0 0.0
    %2898 = vmatpush1.msra.mxu0 %v2872
    %2899 = vmatprep.subr.mxu0 0.0
    %2900 = vmatpush1.msra.mxu0 %v2873
    %2901 = vmatprep.subr.mxu0 0.0
    %2902 = vmatpush1.msra.mxu0 %v2874
    %2903 = vmatprep.subr.mxu0 0.0
    %2904 = vmatpush1.msra.mxu0 0.0
    %2905 = vmatprep.subr.mxu0 0.0
    %2906 = vmatpush1.msra.mxu0 0.0
    %2907 = vmatprep.subr.mxu0 0.0
    %2908 = vmatpush1.msra.mxu0 0.0
    %2909 = vmatprep.subr.mxu0 0.0
    %2910 = vmatpush1.msra.mxu0 0.0
    %2911 = vmatprep.subr.mxu0 0.0
    %2912 = vmatpush1.msra.mxu0 0.0
    %2913 = vmatprep.subr.mxu0 0.0
    %2914 = vmatpush1.msra.mxu0 0.0
    %2915 = vmatprep.subr.mxu0 0.0
    %2916 = vmatpush1.msra.mxu0 0.0
    %2917 = vmatprep.subr.mxu0 0.0
    %2918 = vmatpush1.msra.mxu0 0.0
    %2919 = vmatprep.subr.mxu0 0.0
    %2920 = vmatpush1.msra.mxu0 0.0
    %2921 = vmatprep.subr.mxu0 0.0
    %2922 = vmatpush1.msra.mxu0 0.0
    %2923 = vmatprep.subr.mxu0 0.0
    %2924 = vmatpush1.msra.mxu0 0.0
    %2925 = vmatprep.subr.mxu0 0.0
    %2926 = vmatpush1.msra.mxu0 0.0
    %2927 = vmatprep.subr.mxu0 0.0
    %2928 = vmatpush1.msra.mxu0 0.0
    %2929 = vmatprep.subr.mxu0 0.0
    %2930 = vmatpush1.msra.mxu0 0.0
    %2931 = vmatprep.subr.mxu0 0.0
    %2932 = vmatpush1.msra.mxu0 0.0
    %2933 = vmatprep.subr.mxu0 0.0
    %2934 = vmatpush1.msra.mxu0 0.0
    %2935 = vmatprep.subr.mxu0 0.0
    %2936 = vmatpush1.msra.mxu0 0.0
    %2937 = vmatprep.subr.mxu0 0.0
    %2938 = vmatpush1.msra.mxu0 0.0
    %2939 = vmatprep.subr.mxu0 0.0
    %2940 = vmatpush1.msra.mxu0 0.0
    %2941 = vmatprep.subr.mxu0 0.0
    %2942 = vmatpush1.msra.mxu0 0.0
    %2943 = vmatprep.subr.mxu0 0.0
    %2944 = vmatpush1.msra.mxu0 0.0
    %2945 = vmatprep.subr.mxu0 0.0
    %2946 = vmatpush1.msra.mxu0 0.0
    %2947 = vmatprep.subr.mxu0 0.0
    %2948 = vmatpush1.msra.mxu0 0.0
    %2949 = vmatprep.subr.mxu0 0.0
    %2950 = vmatpush1.msra.mxu0 0.0
    %2951 = vmatprep.subr.mxu0 0.0
    %2952 = vmatpush1.msra.mxu0 0.0
    %2953 = vmatprep.subr.mxu0 0.0
    %2954 = vmatpush1.msra.mxu0 0.0
    %2955 = vmatprep.subr.mxu0 0.0
    %2956 = vmatpush1.msra.mxu0 0.0
    %2957 = vmatprep.subr.mxu0 0.0
    %2958 = vmatpush1.msra.mxu0 0.0
    %2959 = vmatprep.mubr.f32.mxu0 0.0
    %2960 = vmatmul.mubr.f32.gmra.mrb[0].mxu0 %v67
    %v2961 = vpop.f32.mrb[0].mxu0
    %v2962 = vadd.f32 %v2894, %v2961
    %v2963 = vpop.f32.mrb[0].mxu0
    %2964 = vmatprep.mubr.f32.mxu0 0.0
    %2965 = vmatmul.mubr.f32.gmra.mrb[0].mxu0 %v70
    %v2966 = vpop.f32.mrb[0].mxu0
    %v2967 = vadd.f32 %v2894, %v2966
    %v2968 = vpop.f32.mrb[0].mxu0
    %2969 = vdwg.mxu0
    %v2970 = vlaneseq
    %v2971 = vshrl.u32 %v2970, 7
    %v2972 = vsub.s32 0, %v2971
    %v2973 = vrot.slane %v2888, %v2972
    %v2975 = vsel %vm65, %v2863, 0
    %v2978 = vsel %vm65, %v2868, 0
    %2980 = vmatprep.subr.mxu0 0.0
    %2981 = vmatpush1.msra.mxu0 %v2875
    %2982 = vmatprep.subr.mxu0 0.0
    %2983 = vmatpush1.msra.mxu0 %v2876
    %2984 = vmatprep.subr.mxu0 0.0
    %2985 = vmatpush1.msra.mxu0 %v2877
    %2986 = vmatprep.subr.mxu0 0.0
    %2987 = vmatpush1.msra.mxu0 %v2878
    %2988 = vmatprep.subr.mxu0 0.0
    %2989 = vmatpush1.msra.mxu0 0.0
    %2990 = vmatprep.subr.mxu0 0.0
    %2991 = vmatpush1.msra.mxu0 0.0
    %2992 = vmatprep.subr.mxu0 0.0
    %2993 = vmatpush1.msra.mxu0 0.0
    %2994 = vmatprep.subr.mxu0 0.0
    %2995 = vmatpush1.msra.mxu0 0.0
    %2996 = vmatprep.subr.mxu0 0.0
    %2997 = vmatpush1.msra.mxu0 0.0
    %2998 = vmatprep.subr.mxu0 0.0
    %2999 = vmatpush1.msra.mxu0 0.0
    %3000 = vmatprep.subr.mxu0 0.0
    %3001 = vmatpush1.msra.mxu0 0.0
    %3002 = vmatprep.subr.mxu0 0.0
    %3003 = vmatpush1.msra.mxu0 0.0
    %3004 = vmatprep.subr.mxu0 0.0
    %3005 = vmatpush1.msra.mxu0 0.0
    %3006 = vmatprep.subr.mxu0 0.0
    %3007 = vmatpush1.msra.mxu0 0.0
    %3008 = vmatprep.subr.mxu0 0.0
    %3009 = vmatpush1.msra.mxu0 0.0
    %3010 = vmatprep.subr.mxu0 0.0
    %3011 = vmatpush1.msra.mxu0 0.0
    %3012 = vmatprep.subr.mxu0 0.0
    %3013 = vmatpush1.msra.mxu0 0.0
    %3014 = vmatprep.subr.mxu0 0.0
    %3015 = vmatpush1.msra.mxu0 0.0
    %3016 = vmatprep.subr.mxu0 0.0
    %3017 = vmatpush1.msra.mxu0 0.0
    %3018 = vmatprep.subr.mxu0 0.0
    %3019 = vmatpush1.msra.mxu0 0.0
    %3020 = vmatprep.subr.mxu0 0.0
    %3021 = vmatpush1.msra.mxu0 0.0
    %3022 = vmatprep.subr.mxu0 0.0
    %3023 = vmatpush1.msra.mxu0 0.0
    %3024 = vmatprep.subr.mxu0 0.0
    %3025 = vmatpush1.msra.mxu0 0.0
    %3026 = vmatprep.subr.mxu0 0.0
    %3027 = vmatpush1.msra.mxu0 0.0
    %3028 = vmatprep.subr.mxu0 0.0
    %3029 = vmatpush1.msra.mxu0 0.0
    %3030 = vmatprep.subr.mxu0 0.0
    %3031 = vmatpush1.msra.mxu0 0.0
    %3032 = vmatprep.subr.mxu0 0.0
    %3033 = vmatpush1.msra.mxu0 0.0
    %3034 = vmatprep.subr.mxu0 0.0
    %3035 = vmatpush1.msra.mxu0 0.0
    %3036 = vmatprep.subr.mxu0 0.0
    %3037 = vmatpush1.msra.mxu0 0.0
    %3038 = vmatprep.subr.mxu0 0.0
    %3039 = vmatpush1.msra.mxu0 0.0
    %3040 = vmatprep.subr.mxu0 0.0
    %3041 = vmatpush1.msra.mxu0 0.0
    %3042 = vmatprep.subr.mxu0 0.0
    %3043 = vmatpush1.msra.mxu0 0.0
    %3044 = vmatprep.mubr.f32.mxu0 0.0
    %3045 = vmatmul.mubr.f32.gmra.mrb[0].mxu0 %v2975
    %v3046 = vpop.f32.mrb[0].mxu0
    %v3047 = vadd.f32 %v2973, %v3046
    %v3048 = vpop.f32.mrb[0].mxu0
    %3049 = vmatprep.mubr.f32.mxu0 0.0
    %3050 = vmatmul.mubr.f32.gmra.mrb[0].mxu0 %v2978
    %v3051 = vpop.f32.mrb[0].mxu0
    %v3052 = vadd.f32 %v2973, %v3051
    %v3053 = vpop.f32.mrb[0].mxu0
    %3054 = vdwg.mxu0
    %v3055 = vlaneseq
    %v3056 = vshrl.u32 %v3055, 7
    %v3057 = vsub.s32 0, %v3056
    %v3058 = vrot.slane %v2889, %v3057
    %3059 = vmatprep.subr.mxu0 0.0
    %3060 = vmatpush1.msra.mxu0 %v2879
    %3061 = vmatprep.subr.mxu0 0.0
    %3062 = vmatpush1.msra.mxu0 %v2880
    %3063 = vmatprep.subr.mxu0 0.0
    %3064 = vmatpush1.msra.mxu0 %v2881
    %3065 = vmatprep.subr.mxu0 0.0
    %3066 = vmatpush1.msra.mxu0 %v2882
    %3067 = vmatprep.subr.mxu0 0.0
    %3068 = vmatpush1.msra.mxu0 0.0
    %3069 = vmatprep.subr.mxu0 0.0
    %3070 = vmatpush1.msra.mxu0 0.0
    %3071 = vmatprep.subr.mxu0 0.0
    %3072 = vmatpush1.msra.mxu0 0.0
    %3073 = vmatprep.subr.mxu0 0.0
    %3074 = vmatpush1.msra.mxu0 0.0
    %3075 = vmatprep.subr.mxu0 0.0
    %3076 = vmatpush1.msra.mxu0 0.0
    %3077 = vmatprep.subr.mxu0 0.0
    %3078 = vmatpush1.msra.mxu0 0.0
    %3079 = vmatprep.subr.mxu0 0.0
    %3080 = vmatpush1.msra.mxu0 0.0
    %3081 = vmatprep.subr.mxu0 0.0
    %3082 = vmatpush1.msra.mxu0 0.0
    %3083 = vmatprep.subr.mxu0 0.0
    %3084 = vmatpush1.msra.mxu0 0.0
    %3085 = vmatprep.subr.mxu0 0.0
    %3086 = vmatpush1.msra.mxu0 0.0
    %3087 = vmatprep.subr.mxu0 0.0
    %3088 = vmatpush1.msra.mxu0 0.0
    %3089 = vmatprep.subr.mxu0 0.0
    %3090 = vmatpush1.msra.mxu0 0.0
    %3091 = vmatprep.subr.mxu0 0.0
    %3092 = vmatpush1.msra.mxu0 0.0
    %3093 = vmatprep.subr.mxu0 0.0
    %3094 = vmatpush1.msra.mxu0 0.0
    %3095 = vmatprep.subr.mxu0 0.0
    %3096 = vmatpush1.msra.mxu0 0.0
    %3097 = vmatprep.subr.mxu0 0.0
    %3098 = vmatpush1.msra.mxu0 0.0
    %3099 = vmatprep.subr.mxu0 0.0
    %3100 = vmatpush1.msra.mxu0 0.0
    %3101 = vmatprep.subr.mxu0 0.0
    %3102 = vmatpush1.msra.mxu0 0.0
    %3103 = vmatprep.subr.mxu0 0.0
    %3104 = vmatpush1.msra.mxu0 0.0
    %3105 = vmatprep.subr.mxu0 0.0
    %3106 = vmatpush1.msra.mxu0 0.0
    %3107 = vmatprep.subr.mxu0 0.0
    %3108 = vmatpush1.msra.mxu0 0.0
    %3109 = vmatprep.subr.mxu0 0.0
    %3110 = vmatpush1.msra.mxu0 0.0
    %3111 = vmatprep.subr.mxu0 0.0
    %3112 = vmatpush1.msra.mxu0 0.0
    %3113 = vmatprep.subr.mxu0 0.0
    %3114 = vmatpush1.msra.mxu0 0.0
    %3115 = vmatprep.subr.mxu0 0.0
    %3116 = vmatpush1.msra.mxu0 0.0
    %3117 = vmatprep.subr.mxu0 0.0
    %3118 = vmatpush1.msra.mxu0 0.0
    %3119 = vmatprep.subr.mxu0 0.0
    %3120 = vmatpush1.msra.mxu0 0.0
    %3121 = vmatprep.subr.mxu0 0.0
    %3122 = vmatpush1.msra.mxu0 0.0
    %3123 = vmatprep.mubr.f32.mxu0 0.0
    %3124 = vmatmul.mubr.f32.gmra.mrb[0].mxu0 %v2975
    %v3125 = vpop.f32.mrb[0].mxu0
    %v3126 = vadd.f32 %v3058, %v3125
    %v3127 = vpop.f32.mrb[0].mxu0
    %3128 = vmatprep.mubr.f32.mxu0 0.0
    %3129 = vmatmul.mubr.f32.gmra.mrb[0].mxu0 %v2978
    %v3130 = vpop.f32.mrb[0].mxu0
    %v3131 = vadd.f32 %v3058, %v3130
    %v3132 = vpop.f32.mrb[0].mxu0
    %3133 = vdwg.mxu0
    %3136 = vrot.lane.b32.xlu0 %v2962, 120
    %v3137 = vpop.permute.xlu0 %3136
    %3138 = vrot.lane.b32.xlu0 %v2967, 120
    %v3139 = vpop.permute.xlu0 %3138
    %3142 = vrot.lane.b32.xlu0 %v2962, 112
    %v3143 = vpop.permute.xlu0 %3142
    %3144 = vrot.lane.b32.xlu0 %v2967, 112
    %v3145 = vpop.permute.xlu0 %3144
    %3148 = vrot.lane.b32.xlu0 %v2962, 104
    %v3149 = vpop.permute.xlu0 %3148
    %3150 = vrot.lane.b32.xlu0 %v2967, 104
    %v3151 = vpop.permute.xlu0 %3150
    %v3154 = vcombine.low %v2962, %v3143
    %v3155 = vcombine.high %v2962, %v3143
    %v3157 = vunpack.c.l.s4 1983009808
    %v3158 = vunpack.c.0.s8 %v3157
    %v3159 = vlaneseq
    %v3160 = vshrl.u32 %v3159, 7
    %v3161 = vsub.s32 %v3158, %v3160
    %v3162 = vrot.slane %v3154, %v3161
    %v3164 = vunpack.c.l.s4 1983009808
    %v3165 = vunpack.c.0.s8 %v3164
    %v3166 = vlaneseq
    %v3167 = vshrl.u32 %v3166, 7
    %v3168 = vsub.s32 %v3165, %v3167
    %v3169 = vrot.slane %v3155, %v3168
    %v3170 = vcombine.low %v3137, %v3149
    %v3171 = vcombine.high %v3137, %v3149
    %v3173 = vunpack.c.l.s4 1983009808
    %v3174 = vunpack.c.0.s8 %v3173
    %v3175 = vlaneseq
    %v3176 = vshrl.u32 %v3175, 7
    %v3177 = vsub.s32 %v3174, %v3176
    %v3178 = vrot.slane %v3170, %v3177
    %v3180 = vunpack.c.l.s4 1983009808
    %v3181 = vunpack.c.0.s8 %v3180
    %v3182 = vlaneseq
    %v3183 = vshrl.u32 %v3182, 7
    %v3184 = vsub.s32 %v3181, %v3183
    %v3185 = vrot.slane %v3171, %v3184
    %v3186 = vcombine.low %v3162, %v3178
    %v3187 = vcombine.high %v3162, %v3178
    %v3189 = vunpack.c.l.s4 1934713408
    %v3190 = vunpack.c.0.s8 %v3189
    %v3191 = vlaneseq
    %v3192 = vshrl.u32 %v3191, 7
    %v3193 = vsub.s32 %v3190, %v3192
    %v3194 = vrot.slane %v3186, %v3193
    %v3196 = vunpack.c.l.s4 1934713408
    %v3197 = vunpack.c.0.s8 %v3196
    %v3198 = vlaneseq
    %v3199 = vshrl.u32 %v3198, 7
    %v3200 = vsub.s32 %v3197, %v3199
    %v3201 = vrot.slane %v3187, %v3200
    %v3202 = vcombine.low %v3169, %v3185
    %v3203 = vcombine.high %v3169, %v3185
    %v3205 = vunpack.c.l.s4 1934713408
    %v3206 = vunpack.c.0.s8 %v3205
    %v3207 = vlaneseq
    %v3208 = vshrl.u32 %v3207, 7
    %v3209 = vsub.s32 %v3206, %v3208
    %v3210 = vrot.slane %v3202, %v3209
    %v3212 = vunpack.c.l.s4 1934713408
    %v3213 = vunpack.c.0.s8 %v3212
    %v3214 = vlaneseq
    %v3215 = vshrl.u32 %v3214, 7
    %v3216 = vsub.s32 %v3213, %v3215
    %v3217 = vrot.slane %v3203, %v3216
    %v3218 = vcombine.high %v3194, 0.0
    %v3219 = vcombine.high %v3201, 0.0
    %v3220 = vcombine.high %v3210, 0.0
    %v3221 = vcombine.high %v3217, 0.0
    %v3222 = vcombine.low %v2967, %v3145
    %v3223 = vcombine.high %v2967, %v3145
    %v3225 = vunpack.c.l.s4 1983009808
    %v3226 = vunpack.c.0.s8 %v3225
    %v3227 = vlaneseq
    %v3228 = vshrl.u32 %v3227, 7
    %v3229 = vsub.s32 %v3226, %v3228
    %v3230 = vrot.slane %v3222, %v3229
    %v3232 = vunpack.c.l.s4 1983009808
    %v3233 = vunpack.c.0.s8 %v3232
    %v3234 = vlaneseq
    %v3235 = vshrl.u32 %v3234, 7
    %v3236 = vsub.s32 %v3233, %v3235
    %v3237 = vrot.slane %v3223, %v3236
    %v3238 = vcombine.low %v3139, %v3151
    %v3239 = vcombine.high %v3139, %v3151
    %v3241 = vunpack.c.l.s4 1983009808
    %v3242 = vunpack.c.0.s8 %v3241
    %v3243 = vlaneseq
    %v3244 = vshrl.u32 %v3243, 7
    %v3245 = vsub.s32 %v3242, %v3244
    %v3246 = vrot.slane %v3238, %v3245
    %v3248 = vunpack.c.l.s4 1983009808
    %v3249 = vunpack.c.0.s8 %v3248
    %v3250 = vlaneseq
    %v3251 = vshrl.u32 %v3250, 7
    %v3252 = vsub.s32 %v3249, %v3251
    %v3253 = vrot.slane %v3239, %v3252
    %v3254 = vcombine.low %v3230, %v3246
    %v3255 = vcombine.high %v3230, %v3246
    %v3257 = vunpack.c.l.s4 1934713408
    %v3258 = vunpack.c.0.s8 %v3257
    %v3259 = vlaneseq
    %v3260 = vshrl.u32 %v3259, 7
    %v3261 = vsub.s32 %v3258, %v3260
    %v3262 = vrot.slane %v3254, %v3261
    %v3264 = vunpack.c.l.s4 1934713408
    %v3265 = vunpack.c.0.s8 %v3264
    %v3266 = vlaneseq
    %v3267 = vshrl.u32 %v3266, 7
    %v3268 = vsub.s32 %v3265, %v3267
    %v3269 = vrot.slane %v3255, %v3268
    %v3270 = vcombine.low %v3237, %v3253
    %v3271 = vcombine.high %v3237, %v3253
    %v3273 = vunpack.c.l.s4 1934713408
    %v3274 = vunpack.c.0.s8 %v3273
    %v3275 = vlaneseq
    %v3276 = vshrl.u32 %v3275, 7
    %v3277 = vsub.s32 %v3274, %v3276
    %v3278 = vrot.slane %v3270, %v3277
    %v3280 = vunpack.c.l.s4 1934713408
    %v3281 = vunpack.c.0.s8 %v3280
    %v3282 = vlaneseq
    %v3283 = vshrl.u32 %v3282, 7
    %v3284 = vsub.s32 %v3281, %v3283
    %v3285 = vrot.slane %v3271, %v3284
    %v3286 = vcombine.high %v3262, 0.0
    %v3287 = vcombine.high %v3269, 0.0
    %v3288 = vcombine.high %v3278, 0.0
    %v3289 = vcombine.high %v3285, 0.0
    %v3290 = vcombine.low %v3194, %v3201
    %v3292 = vunpack.c.l.s4 1983009808
    %v3293 = vunpack.c.0.s8 %v3292
    %v3294 = vlaneseq
    %v3295 = vshrl.u32 %v3294, 7
    %v3296 = vsub.s32 %v3293, %v3295
    %v3297 = vrot.slane %v3290, %v3296
    %v3298 = vcombine.low %v3218, %v3219
    %v3300 = vunpack.c.l.s4 1983009808
    %v3301 = vunpack.c.0.s8 %v3300
    %v3302 = vlaneseq
    %v3303 = vshrl.u32 %v3302, 7
    %v3304 = vsub.s32 %v3301, %v3303
    %v3305 = vrot.slane %v3298, %v3304
    %v3306 = vcombine.low %v3210, %v3217
    %v3308 = vunpack.c.l.s4 1983009808
    %v3309 = vunpack.c.0.s8 %v3308
    %v3310 = vlaneseq
    %v3311 = vshrl.u32 %v3310, 7
    %v3312 = vsub.s32 %v3309, %v3311
    %v3313 = vrot.slane %v3306, %v3312
    %v3314 = vcombine.low %v3220, %v3221
    %v3316 = vunpack.c.l.s4 1983009808
    %v3317 = vunpack.c.0.s8 %v3316
    %v3318 = vlaneseq
    %v3319 = vshrl.u32 %v3318, 7
    %v3320 = vsub.s32 %v3317, %v3319
    %v3321 = vrot.slane %v3314, %v3320
    %v3322 = vcombine.low %v3297, %v3305
    %v3323 = vcombine.high %v3297, %v3305
    %v3325 = vunpack.c.l.s4 1934713408
    %v3326 = vunpack.c.0.s8 %v3325
    %v3327 = vlaneseq
    %v3328 = vshrl.u32 %v3327, 7
    %v3329 = vsub.s32 %v3326, %v3328
    %v3330 = vrot.slane %v3322, %v3329
    %v3332 = vunpack.c.l.s4 1934713408
    %v3333 = vunpack.c.0.s8 %v3332
    %v3334 = vlaneseq
    %v3335 = vshrl.u32 %v3334, 7
    %v3336 = vsub.s32 %v3333, %v3335
    %v3337 = vrot.slane %v3323, %v3336
    %v3338 = vcombine.low %v3313, %v3321
    %v3339 = vcombine.high %v3313, %v3321
    %v3341 = vunpack.c.l.s4 1934713408
    %v3342 = vunpack.c.0.s8 %v3341
    %v3343 = vlaneseq
    %v3344 = vshrl.u32 %v3343, 7
    %v3345 = vsub.s32 %v3342, %v3344
    %v3346 = vrot.slane %v3338, %v3345
    %v3348 = vunpack.c.l.s4 1934713408
    %v3349 = vunpack.c.0.s8 %v3348
    %v3350 = vlaneseq
    %v3351 = vshrl.u32 %v3350, 7
    %v3352 = vsub.s32 %v3349, %v3351
    %v3353 = vrot.slane %v3339, %v3352
    %v3354 = vcombine.low %v3330, %v3346
    %v3355 = vcombine.high %v3330, %v3346
    %v3356 = vcombine.low %v3337, %v3353
    %v3357 = vcombine.high %v3337, %v3353
    %v3358 = vcombine.low %v3262, %v3269
    %v3360 = vunpack.c.l.s4 1983009808
    %v3361 = vunpack.c.0.s8 %v3360
    %v3362 = vlaneseq
    %v3363 = vshrl.u32 %v3362, 7
    %v3364 = vsub.s32 %v3361, %v3363
    %v3365 = vrot.slane %v3358, %v3364
    %v3366 = vcombine.low %v3286, %v3287
    %v3368 = vunpack.c.l.s4 1983009808
    %v3369 = vunpack.c.0.s8 %v3368
    %v3370 = vlaneseq
    %v3371 = vshrl.u32 %v3370, 7
    %v3372 = vsub.s32 %v3369, %v3371
    %v3373 = vrot.slane %v3366, %v3372
    %v3374 = vcombine.low %v3278, %v3285
    %v3376 = vunpack.c.l.s4 1983009808
    %v3377 = vunpack.c.0.s8 %v3376
    %v3378 = vlaneseq
    %v3379 = vshrl.u32 %v3378, 7
    %v3380 = vsub.s32 %v3377, %v3379
    %v3381 = vrot.slane %v3374, %v3380
    %v3382 = vcombine.low %v3288, %v3289
    %v3384 = vunpack.c.l.s4 1983009808
    %v3385 = vunpack.c.0.s8 %v3384
    %v3386 = vlaneseq
    %v3387 = vshrl.u32 %v3386, 7
    %v3388 = vsub.s32 %v3385, %v3387
    %v3389 = vrot.slane %v3382, %v3388
    %v3390 = vcombine.low %v3365, %v3373
    %v3391 = vcombine.high %v3365, %v3373
    %v3393 = vunpack.c.l.s4 1934713408
    %v3394 = vunpack.c.0.s8 %v3393
    %v3395 = vlaneseq
    %v3396 = vshrl.u32 %v3395, 7
    %v3397 = vsub.s32 %v3394, %v3396
    %v3398 = vrot.slane %v3390, %v3397
    %v3400 = vunpack.c.l.s4 1934713408
    %v3401 = vunpack.c.0.s8 %v3400
    %v3402 = vlaneseq
    %v3403 = vshrl.u32 %v3402, 7
    %v3404 = vsub.s32 %v3401, %v3403
    %v3405 = vrot.slane %v3391, %v3404
    %v3406 = vcombine.low %v3381, %v3389
    %v3407 = vcombine.high %v3381, %v3389
    %v3409 = vunpack.c.l.s4 1934713408
    %v3410 = vunpack.c.0.s8 %v3409
    %v3411 = vlaneseq
    %v3412 = vshrl.u32 %v3411, 7
    %v3413 = vsub.s32 %v3410, %v3412
    %v3414 = vrot.slane %v3406, %v3413
    %v3416 = vunpack.c.l.s4 1934713408
    %v3417 = vunpack.c.0.s8 %v3416
    %v3418 = vlaneseq
    %v3419 = vshrl.u32 %v3418, 7
    %v3420 = vsub.s32 %v3417, %v3419
    %v3421 = vrot.slane %v3407, %v3420
    %v3422 = vcombine.low %v3398, %v3414
    %v3423 = vcombine.high %v3398, %v3414
    %v3424 = vcombine.low %v3405, %v3421
    %v3425 = vcombine.high %v3405, %v3421
    %3428 = vrot.lane.b32.xlu0 %v3047, 120
    %v3429 = vpop.permute.xlu0 %3428
    %3430 = vrot.lane.b32.xlu0 %v3052, 120
    %v3431 = vpop.permute.xlu0 %3430
    %3434 = vrot.lane.b32.xlu0 %v3047, 112
    %v3435 = vpop.permute.xlu0 %3434
    %3436 = vrot.lane.b32.xlu0 %v3052, 112
    %v3437 = vpop.permute.xlu0 %3436
    %3440 = vrot.lane.b32.xlu0 %v3047, 104
    %v3441 = vpop.permute.xlu0 %3440
    %3442 = vrot.lane.b32.xlu0 %v3052, 104
    %v3443 = vpop.permute.xlu0 %3442
    %v3446 = vcombine.low %v3047, %v3435
    %v3447 = vcombine.high %v3047, %v3435
    %v3449 = vunpack.c.l.s4 1983009808
    %v3450 = vunpack.c.0.s8 %v3449
    %v3451 = vlaneseq
    %v3452 = vshrl.u32 %v3451, 7
    %v3453 = vsub.s32 %v3450, %v3452
    %v3454 = vrot.slane %v3446, %v3453
    %v3456 = vunpack.c.l.s4 1983009808
    %v3457 = vunpack.c.0.s8 %v3456
    %v3458 = vlaneseq
    %v3459 = vshrl.u32 %v3458, 7
    %v3460 = vsub.s32 %v3457, %v3459
    %v3461 = vrot.slane %v3447, %v3460
    %v3462 = vcombine.low %v3429, %v3441
    %v3463 = vcombine.high %v3429, %v3441
    %v3465 = vunpack.c.l.s4 1983009808
    %v3466 = vunpack.c.0.s8 %v3465
    %v3467 = vlaneseq
    %v3468 = vshrl.u32 %v3467, 7
    %v3469 = vsub.s32 %v3466, %v3468
    %v3470 = vrot.slane %v3462, %v3469
    %v3472 = vunpack.c.l.s4 1983009808
    %v3473 = vunpack.c.0.s8 %v3472
    %v3474 = vlaneseq
    %v3475 = vshrl.u32 %v3474, 7
    %v3476 = vsub.s32 %v3473, %v3475
    %v3477 = vrot.slane %v3463, %v3476
    %v3478 = vcombine.low %v3454, %v3470
    %v3479 = vcombine.high %v3454, %v3470
    %v3481 = vunpack.c.l.s4 1934713408
    %v3482 = vunpack.c.0.s8 %v3481
    %v3483 = vlaneseq
    %v3484 = vshrl.u32 %v3483, 7
    %v3485 = vsub.s32 %v3482, %v3484
    %v3486 = vrot.slane %v3478, %v3485
    %v3488 = vunpack.c.l.s4 1934713408
    %v3489 = vunpack.c.0.s8 %v3488
    %v3490 = vlaneseq
    %v3491 = vshrl.u32 %v3490, 7
    %v3492 = vsub.s32 %v3489, %v3491
    %v3493 = vrot.slane %v3479, %v3492
    %v3494 = vcombine.low %v3461, %v3477
    %v3495 = vcombine.high %v3461, %v3477
    %v3497 = vunpack.c.l.s4 1934713408
    %v3498 = vunpack.c.0.s8 %v3497
    %v3499 = vlaneseq
    %v3500 = vshrl.u32 %v3499, 7
    %v3501 = vsub.s32 %v3498, %v3500
    %v3502 = vrot.slane %v3494, %v3501
    %v3504 = vunpack.c.l.s4 1934713408
    %v3505 = vunpack.c.0.s8 %v3504
    %v3506 = vlaneseq
    %v3507 = vshrl.u32 %v3506, 7
    %v3508 = vsub.s32 %v3505, %v3507
    %v3509 = vrot.slane %v3495, %v3508
    %v3510 = vcombine.high %v3486, 0.0
    %v3511 = vcombine.high %v3493, 0.0
    %v3512 = vcombine.high %v3502, 0.0
    %v3513 = vcombine.high %v3509, 0.0
    %v3514 = vcombine.low %v3052, %v3437
    %v3515 = vcombine.high %v3052, %v3437
    %v3517 = vunpack.c.l.s4 1983009808
    %v3518 = vunpack.c.0.s8 %v3517
    %v3519 = vlaneseq
    %v3520 = vshrl.u32 %v3519, 7
    %v3521 = vsub.s32 %v3518, %v3520
    %v3522 = vrot.slane %v3514, %v3521
    %v3524 = vunpack.c.l.s4 1983009808
    %v3525 = vunpack.c.0.s8 %v3524
    %v3526 = vlaneseq
    %v3527 = vshrl.u32 %v3526, 7
    %v3528 = vsub.s32 %v3525, %v3527
    %v3529 = vrot.slane %v3515, %v3528
    %v3530 = vcombine.low %v3431, %v3443
    %v3531 = vcombine.high %v3431, %v3443
    %v3533 = vunpack.c.l.s4 1983009808
    %v3534 = vunpack.c.0.s8 %v3533
    %v3535 = vlaneseq
    %v3536 = vshrl.u32 %v3535, 7
    %v3537 = vsub.s32 %v3534, %v3536
    %v3538 = vrot.slane %v3530, %v3537
    %v3540 = vunpack.c.l.s4 1983009808
    %v3541 = vunpack.c.0.s8 %v3540
    %v3542 = vlaneseq
    %v3543 = vshrl.u32 %v3542, 7
    %v3544 = vsub.s32 %v3541, %v3543
    %v3545 = vrot.slane %v3531, %v3544
    %v3546 = vcombine.low %v3522, %v3538
    %v3547 = vcombine.high %v3522, %v3538
    %v3549 = vunpack.c.l.s4 1934713408
    %v3550 = vunpack.c.0.s8 %v3549
    %v3551 = vlaneseq
    %v3552 = vshrl.u32 %v3551, 7
    %v3553 = vsub.s32 %v3550, %v3552
    %v3554 = vrot.slane %v3546, %v3553
    %v3556 = vunpack.c.l.s4 1934713408
    %v3557 = vunpack.c.0.s8 %v3556
    %v3558 = vlaneseq
    %v3559 = vshrl.u32 %v3558, 7
    %v3560 = vsub.s32 %v3557, %v3559
    %v3561 = vrot.slane %v3547, %v3560
    %v3562 = vcombine.low %v3529, %v3545
    %v3563 = vcombine.high %v3529, %v3545
    %v3565 = vunpack.c.l.s4 1934713408
    %v3566 = vunpack.c.0.s8 %v3565
    %v3567 = vlaneseq
    %v3568 = vshrl.u32 %v3567, 7
    %v3569 = vsub.s32 %v3566, %v3568
    %v3570 = vrot.slane %v3562, %v3569
    %v3572 = vunpack.c.l.s4 1934713408
    %v3573 = vunpack.c.0.s8 %v3572
    %v3574 = vlaneseq
    %v3575 = vshrl.u32 %v3574, 7
    %v3576 = vsub.s32 %v3573, %v3575
    %v3577 = vrot.slane %v3563, %v3576
    %v3578 = vcombine.high %v3554, 0.0
    %v3579 = vcombine.high %v3561, 0.0
    %v3580 = vcombine.high %v3570, 0.0
    %v3581 = vcombine.high %v3577, 0.0
    %v3582 = vcombine.low %v3486, %v3493
    %v3584 = vunpack.c.l.s4 1983009808
    %v3585 = vunpack.c.0.s8 %v3584
    %v3586 = vlaneseq
    %v3587 = vshrl.u32 %v3586, 7
    %v3588 = vsub.s32 %v3585, %v3587
    %v3589 = vrot.slane %v3582, %v3588
    %v3590 = vcombine.low %v3510, %v3511
    %v3592 = vunpack.c.l.s4 1983009808
    %v3593 = vunpack.c.0.s8 %v3592
    %v3594 = vlaneseq
    %v3595 = vshrl.u32 %v3594, 7
    %v3596 = vsub.s32 %v3593, %v3595
    %v3597 = vrot.slane %v3590, %v3596
    %v3598 = vcombine.low %v3502, %v3509
    %v3600 = vunpack.c.l.s4 1983009808
    %v3601 = vunpack.c.0.s8 %v3600
    %v3602 = vlaneseq
    %v3603 = vshrl.u32 %v3602, 7
    %v3604 = vsub.s32 %v3601, %v3603
    %v3605 = vrot.slane %v3598, %v3604
    %v3606 = vcombine.low %v3512, %v3513
    %v3608 = vunpack.c.l.s4 1983009808
    %v3609 = vunpack.c.0.s8 %v3608
    %v3610 = vlaneseq
    %v3611 = vshrl.u32 %v3610, 7
    %v3612 = vsub.s32 %v3609, %v3611
    %v3613 = vrot.slane %v3606, %v3612
    %v3614 = vcombine.low %v3589, %v3597
    %v3615 = vcombine.high %v3589, %v3597
    %v3617 = vunpack.c.l.s4 1934713408
    %v3618 = vunpack.c.0.s8 %v3617
    %v3619 = vlaneseq
    %v3620 = vshrl.u32 %v3619, 7
    %v3621 = vsub.s32 %v3618, %v3620
    %v3622 = vrot.slane %v3614, %v3621
    %v3624 = vunpack.c.l.s4 1934713408
    %v3625 = vunpack.c.0.s8 %v3624
    %v3626 = vlaneseq
    %v3627 = vshrl.u32 %v3626, 7
    %v3628 = vsub.s32 %v3625, %v3627
    %v3629 = vrot.slane %v3615, %v3628
    %v3630 = vcombine.low %v3605, %v3613
    %v3631 = vcombine.high %v3605, %v3613
    %v3633 = vunpack.c.l.s4 1934713408
    %v3634 = vunpack.c.0.s8 %v3633
    %v3635 = vlaneseq
    %v3636 = vshrl.u32 %v3635, 7
    %v3637 = vsub.s32 %v3634, %v3636
    %v3638 = vrot.slane %v3630, %v3637
    %v3640 = vunpack.c.l.s4 1934713408
    %v3641 = vunpack.c.0.s8 %v3640
    %v3642 = vlaneseq
    %v3643 = vshrl.u32 %v3642, 7
    %v3644 = vsub.s32 %v3641, %v3643
    %v3645 = vrot.slane %v3631, %v3644
    %v3646 = vcombine.low %v3622, %v3638
    %v3647 = vcombine.high %v3622, %v3638
    %v3648 = vcombine.low %v3629, %v3645
    %v3649 = vcombine.high %v3629, %v3645
    %v3650 = vcombine.low %v3554, %v3561
    %v3652 = vunpack.c.l.s4 1983009808
    %v3653 = vunpack.c.0.s8 %v3652
    %v3654 = vlaneseq
    %v3655 = vshrl.u32 %v3654, 7
    %v3656 = vsub.s32 %v3653, %v3655
    %v3657 = vrot.slane %v3650, %v3656
    %v3658 = vcombine.low %v3578, %v3579
    %v3660 = vunpack.c.l.s4 1983009808
    %v3661 = vunpack.c.0.s8 %v3660
    %v3662 = vlaneseq
    %v3663 = vshrl.u32 %v3662, 7
    %v3664 = vsub.s32 %v3661, %v3663
    %v3665 = vrot.slane %v3658, %v3664
    %v3666 = vcombine.low %v3570, %v3577
    %v3668 = vunpack.c.l.s4 1983009808
    %v3669 = vunpack.c.0.s8 %v3668
    %v3670 = vlaneseq
    %v3671 = vshrl.u32 %v3670, 7
    %v3672 = vsub.s32 %v3669, %v3671
    %v3673 = vrot.slane %v3666, %v3672
    %v3674 = vcombine.low %v3580, %v3581
    %v3676 = vunpack.c.l.s4 1983009808
    %v3677 = vunpack.c.0.s8 %v3676
    %v3678 = vlaneseq
    %v3679 = vshrl.u32 %v3678, 7
    %v3680 = vsub.s32 %v3677, %v3679
    %v3681 = vrot.slane %v3674, %v3680
    %v3682 = vcombine.low %v3657, %v3665
    %v3683 = vcombine.high %v3657, %v3665
    %v3685 = vunpack.c.l.s4 1934713408
    %v3686 = vunpack.c.0.s8 %v3685
    %v3687 = vlaneseq
    %v3688 = vshrl.u32 %v3687, 7
    %v3689 = vsub.s32 %v3686, %v3688
    %v3690 = vrot.slane %v3682, %v3689
    %v3692 = vunpack.c.l.s4 1934713408
    %v3693 = vunpack.c.0.s8 %v3692
    %v3694 = vlaneseq
    %v3695 = vshrl.u32 %v3694, 7
    %v3696 = vsub.s32 %v3693, %v3695
    %v3697 = vrot.slane %v3683, %v3696
    %v3698 = vcombine.low %v3673, %v3681
    %v3699 = vcombine.high %v3673, %v3681
    %v3701 = vunpack.c.l.s4 1934713408
    %v3702 = vunpack.c.0.s8 %v3701
    %v3703 = vlaneseq
    %v3704 = vshrl.u32 %v3703, 7
    %v3705 = vsub.s32 %v3702, %v3704
    %v3706 = vrot.slane %v3698, %v3705
    %v3708 = vunpack.c.l.s4 1934713408
    %v3709 = vunpack.c.0.s8 %v3708
    %v3710 = vlaneseq
    %v3711 = vshrl.u32 %v3710, 7
    %v3712 = vsub.s32 %v3709, %v3711
    %v3713 = vrot.slane %v3699, %v3712
    %v3714 = vcombine.low %v3690, %v3706
    %v3715 = vcombine.high %v3690, %v3706
    %v3716 = vcombine.low %v3697, %v3713
    %v3717 = vcombine.high %v3697, %v3713
    %3720 = vrot.lane.b32.xlu0 %v3126, 120
    %v3721 = vpop.permute.xlu0 %3720
    %3722 = vrot.lane.b32.xlu0 %v3131, 120
    %v3723 = vpop.permute.xlu0 %3722
    %3726 = vrot.lane.b32.xlu0 %v3126, 112
    %v3727 = vpop.permute.xlu0 %3726
    %3728 = vrot.lane.b32.xlu0 %v3131, 112
    %v3729 = vpop.permute.xlu0 %3728
    %3732 = vrot.lane.b32.xlu0 %v3126, 104
    %v3733 = vpop.permute.xlu0 %3732
    %3734 = vrot.lane.b32.xlu0 %v3131, 104
    %v3735 = vpop.permute.xlu0 %3734
    %v3738 = vcombine.low %v3126, %v3727
    %v3739 = vcombine.high %v3126, %v3727
    %v3741 = vunpack.c.l.s4 1983009808
    %v3742 = vunpack.c.0.s8 %v3741
    %v3743 = vlaneseq
    %v3744 = vshrl.u32 %v3743, 7
    %v3745 = vsub.s32 %v3742, %v3744
    %v3746 = vrot.slane %v3738, %v3745
    %v3748 = vunpack.c.l.s4 1983009808
    %v3749 = vunpack.c.0.s8 %v3748
    %v3750 = vlaneseq
    %v3751 = vshrl.u32 %v3750, 7
    %v3752 = vsub.s32 %v3749, %v3751
    %v3753 = vrot.slane %v3739, %v3752
    %v3754 = vcombine.low %v3721, %v3733
    %v3755 = vcombine.high %v3721, %v3733
    %v3757 = vunpack.c.l.s4 1983009808
    %v3758 = vunpack.c.0.s8 %v3757
    %v3759 = vlaneseq
    %v3760 = vshrl.u32 %v3759, 7
    %v3761 = vsub.s32 %v3758, %v3760
    %v3762 = vrot.slane %v3754, %v3761
    %v3764 = vunpack.c.l.s4 1983009808
    %v3765 = vunpack.c.0.s8 %v3764
    %v3766 = vlaneseq
    %v3767 = vshrl.u32 %v3766, 7
    %v3768 = vsub.s32 %v3765, %v3767
    %v3769 = vrot.slane %v3755, %v3768
    %v3770 = vcombine.low %v3746, %v3762
    %v3771 = vcombine.high %v3746, %v3762
    %v3773 = vunpack.c.l.s4 1934713408
    %v3774 = vunpack.c.0.s8 %v3773
    %v3775 = vlaneseq
    %v3776 = vshrl.u32 %v3775, 7
    %v3777 = vsub.s32 %v3774, %v3776
    %v3778 = vrot.slane %v3770, %v3777
    %v3780 = vunpack.c.l.s4 1934713408
    %v3781 = vunpack.c.0.s8 %v3780
    %v3782 = vlaneseq
    %v3783 = vshrl.u32 %v3782, 7
    %v3784 = vsub.s32 %v3781, %v3783
    %v3785 = vrot.slane %v3771, %v3784
    %v3786 = vcombine.low %v3753, %v3769
    %v3787 = vcombine.high %v3753, %v3769
    %v3789 = vunpack.c.l.s4 1934713408
    %v3790 = vunpack.c.0.s8 %v3789
    %v3791 = vlaneseq
    %v3792 = vshrl.u32 %v3791, 7
    %v3793 = vsub.s32 %v3790, %v3792
    %v3794 = vrot.slane %v3786, %v3793
    %v3796 = vunpack.c.l.s4 1934713408
    %v3797 = vunpack.c.0.s8 %v3796
    %v3798 = vlaneseq
    %v3799 = vshrl.u32 %v3798, 7
    %v3800 = vsub.s32 %v3797, %v3799
    %v3801 = vrot.slane %v3787, %v3800
    %v3802 = vcombine.high %v3778, 0.0
    %v3803 = vcombine.high %v3785, 0.0
    %v3804 = vcombine.high %v3794, 0.0
    %v3805 = vcombine.high %v3801, 0.0
    %v3806 = vcombine.low %v3131, %v3729
    %v3807 = vcombine.high %v3131, %v3729
    %v3809 = vunpack.c.l.s4 1983009808
    %v3810 = vunpack.c.0.s8 %v3809
    %v3811 = vlaneseq
    %v3812 = vshrl.u32 %v3811, 7
    %v3813 = vsub.s32 %v3810, %v3812
    %v3814 = vrot.slane %v3806, %v3813
    %v3816 = vunpack.c.l.s4 1983009808
    %v3817 = vunpack.c.0.s8 %v3816
    %v3818 = vlaneseq
    %v3819 = vshrl.u32 %v3818, 7
    %v3820 = vsub.s32 %v3817, %v3819
    %v3821 = vrot.slane %v3807, %v3820
    %v3822 = vcombine.low %v3723, %v3735
    %v3823 = vcombine.high %v3723, %v3735
    %v3825 = vunpack.c.l.s4 1983009808
    %v3826 = vunpack.c.0.s8 %v3825
    %v3827 = vlaneseq
    %v3828 = vshrl.u32 %v3827, 7
    %v3829 = vsub.s32 %v3826, %v3828
    %v3830 = vrot.slane %v3822, %v3829
    %v3832 = vunpack.c.l.s4 1983009808
    %v3833 = vunpack.c.0.s8 %v3832
    %v3834 = vlaneseq
    %v3835 = vshrl.u32 %v3834, 7
    %v3836 = vsub.s32 %v3833, %v3835
    %v3837 = vrot.slane %v3823, %v3836
    %v3838 = vcombine.low %v3814, %v3830
    %v3839 = vcombine.high %v3814, %v3830
    %v3841 = vunpack.c.l.s4 1934713408
    %v3842 = vunpack.c.0.s8 %v3841
    %v3843 = vlaneseq
    %v3844 = vshrl.u32 %v3843, 7
    %v3845 = vsub.s32 %v3842, %v3844
    %v3846 = vrot.slane %v3838, %v3845
    %v3848 = vunpack.c.l.s4 1934713408
    %v3849 = vunpack.c.0.s8 %v3848
    %v3850 = vlaneseq
    %v3851 = vshrl.u32 %v3850, 7
    %v3852 = vsub.s32 %v3849, %v3851
    %v3853 = vrot.slane %v3839, %v3852
    %v3854 = vcombine.low %v3821, %v3837
    %v3855 = vcombine.high %v3821, %v3837
    %v3857 = vunpack.c.l.s4 1934713408
    %v3858 = vunpack.c.0.s8 %v3857
    %v3859 = vlaneseq
    %v3860 = vshrl.u32 %v3859, 7
    %v3861 = vsub.s32 %v3858, %v3860
    %v3862 = vrot.slane %v3854, %v3861
    %v3864 = vunpack.c.l.s4 1934713408
    %v3865 = vunpack.c.0.s8 %v3864
    %v3866 = vlaneseq
    %v3867 = vshrl.u32 %v3866, 7
    %v3868 = vsub.s32 %v3865, %v3867
    %v3869 = vrot.slane %v3855, %v3868
    %v3870 = vcombine.high %v3846, 0.0
    %v3871 = vcombine.high %v3853, 0.0
    %v3872 = vcombine.high %v3862, 0.0
    %v3873 = vcombine.high %v3869, 0.0
    %v3874 = vcombine.low %v3778, %v3785
    %v3876 = vunpack.c.l.s4 1983009808
    %v3877 = vunpack.c.0.s8 %v3876
    %v3878 = vlaneseq
    %v3879 = vshrl.u32 %v3878, 7
    %v3880 = vsub.s32 %v3877, %v3879
    %v3881 = vrot.slane %v3874, %v3880
    %v3882 = vcombine.low %v3802, %v3803
    %v3884 = vunpack.c.l.s4 1983009808
    %v3885 = vunpack.c.0.s8 %v3884
    %v3886 = vlaneseq
    %v3887 = vshrl.u32 %v3886, 7
    %v3888 = vsub.s32 %v3885, %v3887
    %v3889 = vrot.slane %v3882, %v3888
    %v3890 = vcombine.low %v3794, %v3801
    %v3892 = vunpack.c.l.s4 1983009808
    %v3893 = vunpack.c.0.s8 %v3892
    %v3894 = vlaneseq
    %v3895 = vshrl.u32 %v3894, 7
    %v3896 = vsub.s32 %v3893, %v3895
    %v3897 = vrot.slane %v3890, %v3896
    %v3898 = vcombine.low %v3804, %v3805
    %v3900 = vunpack.c.l.s4 1983009808
    %v3901 = vunpack.c.0.s8 %v3900
    %v3902 = vlaneseq
    %v3903 = vshrl.u32 %v3902, 7
    %v3904 = vsub.s32 %v3901, %v3903
    %v3905 = vrot.slane %v3898, %v3904
    %v3906 = vcombine.low %v3881, %v3889
    %v3907 = vcombine.high %v3881, %v3889
    %v3909 = vunpack.c.l.s4 1934713408
    %v3910 = vunpack.c.0.s8 %v3909
    %v3911 = vlaneseq
    %v3912 = vshrl.u32 %v3911, 7
    %v3913 = vsub.s32 %v3910, %v3912
    %v3914 = vrot.slane %v3906, %v3913
    %v3916 = vunpack.c.l.s4 1934713408
    %v3917 = vunpack.c.0.s8 %v3916
    %v3918 = vlaneseq
    %v3919 = vshrl.u32 %v3918, 7
    %v3920 = vsub.s32 %v3917, %v3919
    %v3921 = vrot.slane %v3907, %v3920
    %v3922 = vcombine.low %v3897, %v3905
    %v3923 = vcombine.high %v3897, %v3905
    %v3925 = vunpack.c.l.s4 1934713408
    %v3926 = vunpack.c.0.s8 %v3925
    %v3927 = vlaneseq
    %v3928 = vshrl.u32 %v3927, 7
    %v3929 = vsub.s32 %v3926, %v3928
    %v3930 = vrot.slane %v3922, %v3929
    %v3932 = vunpack.c.l.s4 1934713408
    %v3933 = vunpack.c.0.s8 %v3932
    %v3934 = vlaneseq
    %v3935 = vshrl.u32 %v3934, 7
    %v3936 = vsub.s32 %v3933, %v3935
    %v3937 = vrot.slane %v3923, %v3936
    %v3938 = vcombine.low %v3914, %v3930
    %v3939 = vcombine.high %v3914, %v3930
    %v3940 = vcombine.low %v3921, %v3937
    %v3941 = vcombine.high %v3921, %v3937
    %v3942 = vcombine.low %v3846, %v3853
    %v3944 = vunpack.c.l.s4 1983009808
    %v3945 = vunpack.c.0.s8 %v3944
    %v3946 = vlaneseq
    %v3947 = vshrl.u32 %v3946, 7
    %v3948 = vsub.s32 %v3945, %v3947
    %v3949 = vrot.slane %v3942, %v3948
    %v3950 = vcombine.low %v3870, %v3871
    %v3952 = vunpack.c.l.s4 1983009808
    %v3953 = vunpack.c.0.s8 %v3952
    %v3954 = vlaneseq
    %v3955 = vshrl.u32 %v3954, 7
    %v3956 = vsub.s32 %v3953, %v3955
    %v3957 = vrot.slane %v3950, %v3956
    %v3958 = vcombine.low %v3862, %v3869
    %v3960 = vunpack.c.l.s4 1983009808
    %v3961 = vunpack.c.0.s8 %v3960
    %v3962 = vlaneseq
    %v3963 = vshrl.u32 %v3962, 7
    %v3964 = vsub.s32 %v3961, %v3963
    %v3965 = vrot.slane %v3958, %v3964
    %v3966 = vcombine.low %v3872, %v3873
    %v3968 = vunpack.c.l.s4 1983009808
    %v3969 = vunpack.c.0.s8 %v3968
    %v3970 = vlaneseq
    %v3971 = vshrl.u32 %v3970, 7
    %v3972 = vsub.s32 %v3969, %v3971
    %v3973 = vrot.slane %v3966, %v3972
    %v3974 = vcombine.low %v3949, %v3957
    %v3975 = vcombine.high %v3949, %v3957
    %v3977 = vunpack.c.l.s4 1934713408
    %v3978 = vunpack.c.0.s8 %v3977
    %v3979 = vlaneseq
    %v3980 = vshrl.u32 %v3979, 7
    %v3981 = vsub.s32 %v3978, %v3980
    %v3982 = vrot.slane %v3974, %v3981
    %v3984 = vunpack.c.l.s4 1934713408
    %v3985 = vunpack.c.0.s8 %v3984
    %v3986 = vlaneseq
    %v3987 = vshrl.u32 %v3986, 7
    %v3988 = vsub.s32 %v3985, %v3987
    %v3989 = vrot.slane %v3975, %v3988
    %v3990 = vcombine.low %v3965, %v3973
    %v3991 = vcombine.high %v3965, %v3973
    %v3993 = vunpack.c.l.s4 1934713408
    %v3994 = vunpack.c.0.s8 %v3993
    %v3995 = vlaneseq
    %v3996 = vshrl.u32 %v3995, 7
    %v3997 = vsub.s32 %v3994, %v3996
    %v3998 = vrot.slane %v3990, %v3997
    %v4000 = vunpack.c.l.s4 1934713408
    %v4001 = vunpack.c.0.s8 %v4000
    %v4002 = vlaneseq
    %v4003 = vshrl.u32 %v4002, 7
    %v4004 = vsub.s32 %v4001, %v4003
    %v4005 = vrot.slane %v3991, %v4004
    %v4006 = vcombine.low %v3982, %v3998
    %v4007 = vcombine.high %v3982, %v3998
    %v4008 = vcombine.low %v3989, %v4005
    %v4009 = vcombine.high %v3989, %v4005
    %v4011 = vsel %vm1193, %v3354, 0
    %v4014 = vsel %vm1193, %v3646, 0
    %4016 = vmatprep.subr.mxu0 0.0
    %4017 = vmatpush1.xpose.msra.mxu0 %v4014
    %4018 = vmatprep.subr.mxu0 0.0
    %4019 = vmatpush1.xpose.msra.mxu0 0.0
    %4020 = vmatprep.subr.mxu0 0.0
    %4021 = vmatpush1.xpose.msra.mxu0 0.0
    %4022 = vmatprep.subr.mxu0 0.0
    %4023 = vmatpush1.xpose.msra.mxu0 0.0
    %4024 = vmatprep.subr.mxu0 0.0
    %4025 = vmatpush1.xpose.msra.mxu0 0.0
    %4026 = vmatprep.subr.mxu0 0.0
    %4027 = vmatpush1.xpose.msra.mxu0 0.0
    %4028 = vmatprep.subr.mxu0 0.0
    %4029 = vmatpush1.xpose.msra.mxu0 0.0
    %4030 = vmatprep.subr.mxu0 0.0
    %4031 = vmatpush1.xpose.msra.mxu0 0.0
    %4032 = vmatprep.subr.mxu0 0.0
    %4033 = vmatpush1.xpose.msra.mxu0 0.0
    %4034 = vmatprep.subr.mxu0 0.0
    %4035 = vmatpush1.xpose.msra.mxu0 0.0
    %4036 = vmatprep.subr.mxu0 0.0
    %4037 = vmatpush1.xpose.msra.mxu0 0.0
    %4038 = vmatprep.subr.mxu0 0.0
    %4039 = vmatpush1.xpose.msra.mxu0 0.0
    %4040 = vmatprep.subr.mxu0 0.0
    %4041 = vmatpush1.xpose.msra.mxu0 0.0
    %4042 = vmatprep.subr.mxu0 0.0
    %4043 = vmatpush1.xpose.msra.mxu0 0.0
    %4044 = vmatprep.subr.mxu0 0.0
    %4045 = vmatpush1.xpose.msra.mxu0 0.0
    %4046 = vmatprep.subr.mxu0 0.0
    %4047 = vmatpush1.xpose.msra.mxu0 0.0
    %4048 = vmatprep.subr.mxu0 0.0
    %4049 = vmatpush1.xpose.msra.mxu0 0.0
    %4050 = vmatprep.subr.mxu0 0.0
    %4051 = vmatpush1.xpose.msra.mxu0 0.0
    %4052 = vmatprep.subr.mxu0 0.0
    %4053 = vmatpush1.xpose.msra.mxu0 0.0
    %4054 = vmatprep.subr.mxu0 0.0
    %4055 = vmatpush1.xpose.msra.mxu0 0.0
    %4056 = vmatprep.subr.mxu0 0.0
    %4057 = vmatpush1.xpose.msra.mxu0 0.0
    %4058 = vmatprep.subr.mxu0 0.0
    %4059 = vmatpush1.xpose.msra.mxu0 0.0
    %4060 = vmatprep.subr.mxu0 0.0
    %4061 = vmatpush1.xpose.msra.mxu0 0.0
    %4062 = vmatprep.subr.mxu0 0.0
    %4063 = vmatpush1.xpose.msra.mxu0 0.0
    %4064 = vmatprep.subr.mxu0 0.0
    %4065 = vmatpush1.xpose.msra.mxu0 0.0
    %4066 = vmatprep.subr.mxu0 0.0
    %4067 = vmatpush1.xpose.msra.mxu0 0.0
    %4068 = vmatprep.subr.mxu0 0.0
    %4069 = vmatpush1.xpose.msra.mxu0 0.0
    %4070 = vmatprep.subr.mxu0 0.0
    %4071 = vmatpush1.xpose.msra.mxu0 0.0
    %4072 = vmatprep.subr.mxu0 0.0
    %4073 = vmatpush1.xpose.msra.mxu0 0.0
    %4074 = vmatprep.subr.mxu0 0.0
    %4075 = vmatpush1.xpose.msra.mxu0 0.0
    %4076 = vmatprep.subr.mxu0 0.0
    %4077 = vmatpush1.xpose.msra.mxu0 0.0
    %4078 = vmatprep.subr.mxu0 0.0
    %4079 = vmatpush1.xpose.msra.mxu0 0.0
    %4080 = vmatprep.mubr.f32.mxu0 0.0
    %4081 = vmatmul.mubr.f32.gmra.mrb[0].mxu0 %v4011
    %v4082 = vpop.f32.mrb[0].mxu0
    %v4083 = vadd.f32 0.0, %v4082
    %v4084 = vpop.f32.mrb[0].mxu0
    %4085 = vdwg.mxu0
    %v4087 = vsel %vm1193, %v3355, 0
    %v4090 = vsel %vm1193, %v3647, 0
    %4092 = vmatprep.subr.mxu0 0.0
    %4093 = vmatpush1.xpose.msra.mxu0 %v4090
    %4094 = vmatprep.subr.mxu0 0.0
    %4095 = vmatpush1.xpose.msra.mxu0 0.0
    %4096 = vmatprep.subr.mxu0 0.0
    %4097 = vmatpush1.xpose.msra.mxu0 0.0
    %4098 = vmatprep.subr.mxu0 0.0
    %4099 = vmatpush1.xpose.msra.mxu0 0.0
    %4100 = vmatprep.subr.mxu0 0.0
    %4101 = vmatpush1.xpose.msra.mxu0 0.0
    %4102 = vmatprep.subr.mxu0 0.0
    %4103 = vmatpush1.xpose.msra.mxu0 0.0
    %4104 = vmatprep.subr.mxu0 0.0
    %4105 = vmatpush1.xpose.msra.mxu0 0.0
    %4106 = vmatprep.subr.mxu0 0.0
    %4107 = vmatpush1.xpose.msra.mxu0 0.0
    %4108 = vmatprep.subr.mxu0 0.0
    %4109 = vmatpush1.xpose.msra.mxu0 0.0
    %4110 = vmatprep.subr.mxu0 0.0
    %4111 = vmatpush1.xpose.msra.mxu0 0.0
    %4112 = vmatprep.subr.mxu0 0.0
    %4113 = vmatpush1.xpose.msra.mxu0 0.0
    %4114 = vmatprep.subr.mxu0 0.0
    %4115 = vmatpush1.xpose.msra.mxu0 0.0
    %4116 = vmatprep.subr.mxu0 0.0
    %4117 = vmatpush1.xpose.msra.mxu0 0.0
    %4118 = vmatprep.subr.mxu0 0.0
    %4119 = vmatpush1.xpose.msra.mxu0 0.0
    %4120 = vmatprep.subr.mxu0 0.0
    %4121 = vmatpush1.xpose.msra.mxu0 0.0
    %4122 = vmatprep.subr.mxu0 0.0
    %4123 = vmatpush1.xpose.msra.mxu0 0.0
    %4124 = vmatprep.subr.mxu0 0.0
    %4125 = vmatpush1.xpose.msra.mxu0 0.0
    %4126 = vmatprep.subr.mxu0 0.0
    %4127 = vmatpush1.xpose.msra.mxu0 0.0
    %4128 = vmatprep.subr.mxu0 0.0
    %4129 = vmatpush1.xpose.msra.mxu0 0.0
    %4130 = vmatprep.subr.mxu0 0.0
    %4131 = vmatpush1.xpose.msra.mxu0 0.0
    %4132 = vmatprep.subr.mxu0 0.0
    %4133 = vmatpush1.xpose.msra.mxu0 0.0
    %4134 = vmatprep.subr.mxu0 0.0
    %4135 = vmatpush1.xpose.msra.mxu0 0.0
    %4136 = vmatprep.subr.mxu0 0.0
    %4137 = vmatpush1.xpose.msra.mxu0 0.0
    %4138 = vmatprep.subr.mxu0 0.0
    %4139 = vmatpush1.xpose.msra.mxu0 0.0
    %4140 = vmatprep.subr.mxu0 0.0
    %4141 = vmatpush1.xpose.msra.mxu0 0.0
    %4142 = vmatprep.subr.mxu0 0.0
    %4143 = vmatpush1.xpose.msra.mxu0 0.0
    %4144 = vmatprep.subr.mxu0 0.0
    %4145 = vmatpush1.xpose.msra.mxu0 0.0
    %4146 = vmatprep.subr.mxu0 0.0
    %4147 = vmatpush1.xpose.msra.mxu0 0.0
    %4148 = vmatprep.subr.mxu0 0.0
    %4149 = vmatpush1.xpose.msra.mxu0 0.0
    %4150 = vmatprep.subr.mxu0 0.0
    %4151 = vmatpush1.xpose.msra.mxu0 0.0
    %4152 = vmatprep.subr.mxu0 0.0
    %4153 = vmatpush1.xpose.msra.mxu0 0.0
    %4154 = vmatprep.subr.mxu0 0.0
    %4155 = vmatpush1.xpose.msra.mxu0 0.0
    %4156 = vmatprep.mubr.f32.mxu0 0.0
    %4157 = vmatmul.mubr.f32.gmra.mrb[0].mxu0 %v4087
    %v4158 = vpop.f32.mrb[0].mxu0
    %v4159 = vadd.f32 0.0, %v4158
    %v4160 = vpop.f32.mrb[0].mxu0
    %4161 = vdwg.mxu0
    %v4163 = vsel %vm1193, %v3356, 0
    %v4166 = vsel %vm1193, %v3648, 0
    %4168 = vmatprep.subr.mxu0 0.0
    %4169 = vmatpush1.xpose.msra.mxu0 %v4166
    %4170 = vmatprep.subr.mxu0 0.0
    %4171 = vmatpush1.xpose.msra.mxu0 0.0
    %4172 = vmatprep.subr.mxu0 0.0
    %4173 = vmatpush1.xpose.msra.mxu0 0.0
    %4174 = vmatprep.subr.mxu0 0.0
    %4175 = vmatpush1.xpose.msra.mxu0 0.0
    %4176 = vmatprep.subr.mxu0 0.0
    %4177 = vmatpush1.xpose.msra.mxu0 0.0
    %4178 = vmatprep.subr.mxu0 0.0
    %4179 = vmatpush1.xpose.msra.mxu0 0.0
    %4180 = vmatprep.subr.mxu0 0.0
    %4181 = vmatpush1.xpose.msra.mxu0 0.0
    %4182 = vmatprep.subr.mxu0 0.0
    %4183 = vmatpush1.xpose.msra.mxu0 0.0
    %4184 = vmatprep.subr.mxu0 0.0
    %4185 = vmatpush1.xpose.msra.mxu0 0.0
    %4186 = vmatprep.subr.mxu0 0.0
    %4187 = vmatpush1.xpose.msra.mxu0 0.0
    %4188 = vmatprep.subr.mxu0 0.0
    %4189 = vmatpush1.xpose.msra.mxu0 0.0
    %4190 = vmatprep.subr.mxu0 0.0
    %4191 = vmatpush1.xpose.msra.mxu0 0.0
    %4192 = vmatprep.subr.mxu0 0.0
    %4193 = vmatpush1.xpose.msra.mxu0 0.0
    %4194 = vmatprep.subr.mxu0 0.0
    %4195 = vmatpush1.xpose.msra.mxu0 0.0
    %4196 = vmatprep.subr.mxu0 0.0
    %4197 = vmatpush1.xpose.msra.mxu0 0.0
    %4198 = vmatprep.subr.mxu0 0.0
    %4199 = vmatpush1.xpose.msra.mxu0 0.0
    %4200 = vmatprep.subr.mxu0 0.0
    %4201 = vmatpush1.xpose.msra.mxu0 0.0
    %4202 = vmatprep.subr.mxu0 0.0
    %4203 = vmatpush1.xpose.msra.mxu0 0.0
    %4204 = vmatprep.subr.mxu0 0.0
    %4205 = vmatpush1.xpose.msra.mxu0 0.0
    %4206 = vmatprep.subr.mxu0 0.0
    %4207 = vmatpush1.xpose.msra.mxu0 0.0
    %4208 = vmatprep.subr.mxu0 0.0
    %4209 = vmatpush1.xpose.msra.mxu0 0.0
    %4210 = vmatprep.subr.mxu0 0.0
    %4211 = vmatpush1.xpose.msra.mxu0 0.0
    %4212 = vmatprep.subr.mxu0 0.0
    %4213 = vmatpush1.xpose.msra.mxu0 0.0
    %4214 = vmatprep.subr.mxu0 0.0
    %4215 = vmatpush1.xpose.msra.mxu0 0.0
    %4216 = vmatprep.subr.mxu0 0.0
    %4217 = vmatpush1.xpose.msra.mxu0 0.0
    %4218 = vmatprep.subr.mxu0 0.0
    %4219 = vmatpush1.xpose.msra.mxu0 0.0
    %4220 = vmatprep.subr.mxu0 0.0
    %4221 = vmatpush1.xpose.msra.mxu0 0.0
    %4222 = vmatprep.subr.mxu0 0.0
    %4223 = vmatpush1.xpose.msra.mxu0 0.0
    %4224 = vmatprep.subr.mxu0 0.0
    %4225 = vmatpush1.xpose.msra.mxu0 0.0
    %4226 = vmatprep.subr.mxu0 0.0
    %4227 = vmatpush1.xpose.msra.mxu0 0.0
    %4228 = vmatprep.subr.mxu0 0.0
    %4229 = vmatpush1.xpose.msra.mxu0 0.0
    %4230 = vmatprep.subr.mxu0 0.0
    %4231 = vmatpush1.xpose.msra.mxu0 0.0
    %4232 = vmatprep.mubr.f32.mxu0 0.0
    %4233 = vmatmul.mubr.f32.gmra.mrb[0].mxu0 %v4163
    %v4234 = vpop.f32.mrb[0].mxu0
    %v4235 = vadd.f32 0.0, %v4234
    %v4236 = vpop.f32.mrb[0].mxu0
    %4237 = vdwg.mxu0
    %v4239 = vsel %vm1193, %v3357, 0
    %v4242 = vsel %vm1193, %v3649, 0
    %4244 = vmatprep.subr.mxu0 0.0
    %4245 = vmatpush1.xpose.msra.mxu0 %v4242
    %4246 = vmatprep.subr.mxu0 0.0
    %4247 = vmatpush1.xpose.msra.mxu0 0.0
    %4248 = vmatprep.subr.mxu0 0.0
    %4249 = vmatpush1.xpose.msra.mxu0 0.0
    %4250 = vmatprep.subr.mxu0 0.0
    %4251 = vmatpush1.xpose.msra.mxu0 0.0
    %4252 = vmatprep.subr.mxu0 0.0
    %4253 = vmatpush1.xpose.msra.mxu0 0.0
    %4254 = vmatprep.subr.mxu0 0.0
    %4255 = vmatpush1.xpose.msra.mxu0 0.0
    %4256 = vmatprep.subr.mxu0 0.0
    %4257 = vmatpush1.xpose.msra.mxu0 0.0
    %4258 = vmatprep.subr.mxu0 0.0
    %4259 = vmatpush1.xpose.msra.mxu0 0.0
    %4260 = vmatprep.subr.mxu0 0.0
    %4261 = vmatpush1.xpose.msra.mxu0 0.0
    %4262 = vmatprep.subr.mxu0 0.0
    %4263 = vmatpush1.xpose.msra.mxu0 0.0
    %4264 = vmatprep.subr.mxu0 0.0
    %4265 = vmatpush1.xpose.msra.mxu0 0.0
    %4266 = vmatprep.subr.mxu0 0.0
    %4267 = vmatpush1.xpose.msra.mxu0 0.0
    %4268 = vmatprep.subr.mxu0 0.0
    %4269 = vmatpush1.xpose.msra.mxu0 0.0
    %4270 = vmatprep.subr.mxu0 0.0
    %4271 = vmatpush1.xpose.msra.mxu0 0.0
    %4272 = vmatprep.subr.mxu0 0.0
    %4273 = vmatpush1.xpose.msra.mxu0 0.0
    %4274 = vmatprep.subr.mxu0 0.0
    %4275 = vmatpush1.xpose.msra.mxu0 0.0
    %4276 = vmatprep.subr.mxu0 0.0
    %4277 = vmatpush1.xpose.msra.mxu0 0.0
    %4278 = vmatprep.subr.mxu0 0.0
    %4279 = vmatpush1.xpose.msra.mxu0 0.0
    %4280 = vmatprep.subr.mxu0 0.0
    %4281 = vmatpush1.xpose.msra.mxu0 0.0
    %4282 = vmatprep.subr.mxu0 0.0
    %4283 = vmatpush1.xpose.msra.mxu0 0.0
    %4284 = vmatprep.subr.mxu0 0.0
    %4285 = vmatpush1.xpose.msra.mxu0 0.0
    %4286 = vmatprep.subr.mxu0 0.0
    %4287 = vmatpush1.xpose.msra.mxu0 0.0
    %4288 = vmatprep.subr.mxu0 0.0
    %4289 = vmatpush1.xpose.msra.mxu0 0.0
    %4290 = vmatprep.subr.mxu0 0.0
    %4291 = vmatpush1.xpose.msra.mxu0 0.0
    %4292 = vmatprep.subr.mxu0 0.0
    %4293 = vmatpush1.xpose.msra.mxu0 0.0
    %4294 = vmatprep.subr.mxu0 0.0
    %4295 = vmatpush1.xpose.msra.mxu0 0.0
    %4296 = vmatprep.subr.mxu0 0.0
    %4297 = vmatpush1.xpose.msra.mxu0 0.0
    %4298 = vmatprep.subr.mxu0 0.0
    %4299 = vmatpush1.xpose.msra.mxu0 0.0
    %4300 = vmatprep.subr.mxu0 0.0
    %4301 = vmatpush1.xpose.msra.mxu0 0.0
    %4302 = vmatprep.subr.mxu0 0.0
    %4303 = vmatpush1.xpose.msra.mxu0 0.0
    %4304 = vmatprep.subr.mxu0 0.0
    %4305 = vmatpush1.xpose.msra.mxu0 0.0
    %4306 = vmatprep.subr.mxu0 0.0
    %4307 = vmatpush1.xpose.msra.mxu0 0.0
    %4308 = vmatprep.mubr.f32.mxu0 0.0
    %4309 = vmatmul.mubr.f32.gmra.mrb[0].mxu0 %v4239
    %v4310 = vpop.f32.mrb[0].mxu0
    %v4311 = vadd.f32 0.0, %v4310
    %v4312 = vpop.f32.mrb[0].mxu0
    %4313 = vdwg.mxu0
    %v4315 = vsel %vm1193, %v3422, 0
    %v4318 = vsel %vm1193, %v3714, 0
    %4320 = vmatprep.subr.mxu0 0.0
    %4321 = vmatpush1.xpose.msra.mxu0 %v4318
    %4322 = vmatprep.subr.mxu0 0.0
    %4323 = vmatpush1.xpose.msra.mxu0 0.0
    %4324 = vmatprep.subr.mxu0 0.0
    %4325 = vmatpush1.xpose.msra.mxu0 0.0
    %4326 = vmatprep.subr.mxu0 0.0
    %4327 = vmatpush1.xpose.msra.mxu0 0.0
    %4328 = vmatprep.subr.mxu0 0.0
    %4329 = vmatpush1.xpose.msra.mxu0 0.0
    %4330 = vmatprep.subr.mxu0 0.0
    %4331 = vmatpush1.xpose.msra.mxu0 0.0
    %4332 = vmatprep.subr.mxu0 0.0
    %4333 = vmatpush1.xpose.msra.mxu0 0.0
    %4334 = vmatprep.subr.mxu0 0.0
    %4335 = vmatpush1.xpose.msra.mxu0 0.0
    %4336 = vmatprep.subr.mxu0 0.0
    %4337 = vmatpush1.xpose.msra.mxu0 0.0
    %4338 = vmatprep.subr.mxu0 0.0
    %4339 = vmatpush1.xpose.msra.mxu0 0.0
    %4340 = vmatprep.subr.mxu0 0.0
    %4341 = vmatpush1.xpose.msra.mxu0 0.0
    %4342 = vmatprep.subr.mxu0 0.0
    %4343 = vmatpush1.xpose.msra.mxu0 0.0
    %4344 = vmatprep.subr.mxu0 0.0
    %4345 = vmatpush1.xpose.msra.mxu0 0.0
    %4346 = vmatprep.subr.mxu0 0.0
    %4347 = vmatpush1.xpose.msra.mxu0 0.0
    %4348 = vmatprep.subr.mxu0 0.0
    %4349 = vmatpush1.xpose.msra.mxu0 0.0
    %4350 = vmatprep.subr.mxu0 0.0
    %4351 = vmatpush1.xpose.msra.mxu0 0.0
    %4352 = vmatprep.subr.mxu0 0.0
    %4353 = vmatpush1.xpose.msra.mxu0 0.0
    %4354 = vmatprep.subr.mxu0 0.0
    %4355 = vmatpush1.xpose.msra.mxu0 0.0
    %4356 = vmatprep.subr.mxu0 0.0
    %4357 = vmatpush1.xpose.msra.mxu0 0.0
    %4358 = vmatprep.subr.mxu0 0.0
    %4359 = vmatpush1.xpose.msra.mxu0 0.0
    %4360 = vmatprep.subr.mxu0 0.0
    %4361 = vmatpush1.xpose.msra.mxu0 0.0
    %4362 = vmatprep.subr.mxu0 0.0
    %4363 = vmatpush1.xpose.msra.mxu0 0.0
    %4364 = vmatprep.subr.mxu0 0.0
    %4365 = vmatpush1.xpose.msra.mxu0 0.0
    %4366 = vmatprep.subr.mxu0 0.0
    %4367 = vmatpush1.xpose.msra.mxu0 0.0
    %4368 = vmatprep.subr.mxu0 0.0
    %4369 = vmatpush1.xpose.msra.mxu0 0.0
    %4370 = vmatprep.subr.mxu0 0.0
    %4371 = vmatpush1.xpose.msra.mxu0 0.0
    %4372 = vmatprep.subr.mxu0 0.0
    %4373 = vmatpush1.xpose.msra.mxu0 0.0
    %4374 = vmatprep.subr.mxu0 0.0
    %4375 = vmatpush1.xpose.msra.mxu0 0.0
    %4376 = vmatprep.subr.mxu0 0.0
    %4377 = vmatpush1.xpose.msra.mxu0 0.0
    %4378 = vmatprep.subr.mxu0 0.0
    %4379 = vmatpush1.xpose.msra.mxu0 0.0
    %4380 = vmatprep.subr.mxu0 0.0
    %4381 = vmatpush1.xpose.msra.mxu0 0.0
    %4382 = vmatprep.subr.mxu0 0.0
    %4383 = vmatpush1.xpose.msra.mxu0 0.0
    %4384 = vmatprep.mubr.f32.mxu0 0.0
    %4385 = vmatmul.mubr.f32.gmra.mrb[0].mxu0 %v4315
    %v4386 = vpop.f32.mrb[0].mxu0
    %v4387 = vadd.f32 0.0, %v4386
    %v4388 = vpop.f32.mrb[0].mxu0
    %4389 = vdwg.mxu0
    %v4391 = vsel %vm1193, %v3423, 0
    %v4394 = vsel %vm1193, %v3715, 0
    %4396 = vmatprep.subr.mxu0 0.0
    %4397 = vmatpush1.xpose.msra.mxu0 %v4394
    %4398 = vmatprep.subr.mxu0 0.0
    %4399 = vmatpush1.xpose.msra.mxu0 0.0
    %4400 = vmatprep.subr.mxu0 0.0
    %4401 = vmatpush1.xpose.msra.mxu0 0.0
    %4402 = vmatprep.subr.mxu0 0.0
    %4403 = vmatpush1.xpose.msra.mxu0 0.0
    %4404 = vmatprep.subr.mxu0 0.0
    %4405 = vmatpush1.xpose.msra.mxu0 0.0
    %4406 = vmatprep.subr.mxu0 0.0
    %4407 = vmatpush1.xpose.msra.mxu0 0.0
    %4408 = vmatprep.subr.mxu0 0.0
    %4409 = vmatpush1.xpose.msra.mxu0 0.0
    %4410 = vmatprep.subr.mxu0 0.0
    %4411 = vmatpush1.xpose.msra.mxu0 0.0
    %4412 = vmatprep.subr.mxu0 0.0
    %4413 = vmatpush1.xpose.msra.mxu0 0.0
    %4414 = vmatprep.subr.mxu0 0.0
    %4415 = vmatpush1.xpose.msra.mxu0 0.0
    %4416 = vmatprep.subr.mxu0 0.0
    %4417 = vmatpush1.xpose.msra.mxu0 0.0
    %4418 = vmatprep.subr.mxu0 0.0
    %4419 = vmatpush1.xpose.msra.mxu0 0.0
    %4420 = vmatprep.subr.mxu0 0.0
    %4421 = vmatpush1.xpose.msra.mxu0 0.0
    %4422 = vmatprep.subr.mxu0 0.0
    %4423 = vmatpush1.xpose.msra.mxu0 0.0
    %4424 = vmatprep.subr.mxu0 0.0
    %4425 = vmatpush1.xpose.msra.mxu0 0.0
    %4426 = vmatprep.subr.mxu0 0.0
    %4427 = vmatpush1.xpose.msra.mxu0 0.0
    %4428 = vmatprep.subr.mxu0 0.0
    %4429 = vmatpush1.xpose.msra.mxu0 0.0
    %4430 = vmatprep.subr.mxu0 0.0
    %4431 = vmatpush1.xpose.msra.mxu0 0.0
    %4432 = vmatprep.subr.mxu0 0.0
    %4433 = vmatpush1.xpose.msra.mxu0 0.0
    %4434 = vmatprep.subr.mxu0 0.0
    %4435 = vmatpush1.xpose.msra.mxu0 0.0
    %4436 = vmatprep.subr.mxu0 0.0
    %4437 = vmatpush1.xpose.msra.mxu0 0.0
    %4438 = vmatprep.subr.mxu0 0.0
    %4439 = vmatpush1.xpose.msra.mxu0 0.0
    %4440 = vmatprep.subr.mxu0 0.0
    %4441 = vmatpush1.xpose.msra.mxu0 0.0
    %4442 = vmatprep.subr.mxu0 0.0
    %4443 = vmatpush1.xpose.msra.mxu0 0.0
    %4444 = vmatprep.subr.mxu0 0.0
    %4445 = vmatpush1.xpose.msra.mxu0 0.0
    %4446 = vmatprep.subr.mxu0 0.0
    %4447 = vmatpush1.xpose.msra.mxu0 0.0
    %4448 = vmatprep.subr.mxu0 0.0
    %4449 = vmatpush1.xpose.msra.mxu0 0.0
    %4450 = vmatprep.subr.mxu0 0.0
    %4451 = vmatpush1.xpose.msra.mxu0 0.0
    %4452 = vmatprep.subr.mxu0 0.0
    %4453 = vmatpush1.xpose.msra.mxu0 0.0
    %4454 = vmatprep.subr.mxu0 0.0
    %4455 = vmatpush1.xpose.msra.mxu0 0.0
    %4456 = vmatprep.subr.mxu0 0.0
    %4457 = vmatpush1.xpose.msra.mxu0 0.0
    %4458 = vmatprep.subr.mxu0 0.0
    %4459 = vmatpush1.xpose.msra.mxu0 0.0
    %4460 = vmatprep.mubr.f32.mxu0 0.0
    %4461 = vmatmul.mubr.f32.gmra.mrb[0].mxu0 %v4391
    %v4462 = vpop.f32.mrb[0].mxu0
    %v4463 = vadd.f32 0.0, %v4462
    %v4464 = vpop.f32.mrb[0].mxu0
    %4465 = vdwg.mxu0
    %v4467 = vsel %vm1193, %v3424, 0
    %v4470 = vsel %vm1193, %v3716, 0
    %4472 = vmatprep.subr.mxu0 0.0
    %4473 = vmatpush1.xpose.msra.mxu0 %v4470
    %4474 = vmatprep.subr.mxu0 0.0
    %4475 = vmatpush1.xpose.msra.mxu0 0.0
    %4476 = vmatprep.subr.mxu0 0.0
    %4477 = vmatpush1.xpose.msra.mxu0 0.0
    %4478 = vmatprep.subr.mxu0 0.0
    %4479 = vmatpush1.xpose.msra.mxu0 0.0
    %4480 = vmatprep.subr.mxu0 0.0
    %4481 = vmatpush1.xpose.msra.mxu0 0.0
    %4482 = vmatprep.subr.mxu0 0.0
    %4483 = vmatpush1.xpose.msra.mxu0 0.0
    %4484 = vmatprep.subr.mxu0 0.0
    %4485 = vmatpush1.xpose.msra.mxu0 0.0
    %4486 = vmatprep.subr.mxu0 0.0
    %4487 = vmatpush1.xpose.msra.mxu0 0.0
    %4488 = vmatprep.subr.mxu0 0.0
    %4489 = vmatpush1.xpose.msra.mxu0 0.0
    %4490 = vmatprep.subr.mxu0 0.0
    %4491 = vmatpush1.xpose.msra.mxu0 0.0
    %4492 = vmatprep.subr.mxu0 0.0
    %4493 = vmatpush1.xpose.msra.mxu0 0.0
    %4494 = vmatprep.subr.mxu0 0.0
    %4495 = vmatpush1.xpose.msra.mxu0 0.0
    %4496 = vmatprep.subr.mxu0 0.0
    %4497 = vmatpush1.xpose.msra.mxu0 0.0
    %4498 = vmatprep.subr.mxu0 0.0
    %4499 = vmatpush1.xpose.msra.mxu0 0.0
    %4500 = vmatprep.subr.mxu0 0.0
    %4501 = vmatpush1.xpose.msra.mxu0 0.0
    %4502 = vmatprep.subr.mxu0 0.0
    %4503 = vmatpush1.xpose.msra.mxu0 0.0
    %4504 = vmatprep.subr.mxu0 0.0
    %4505 = vmatpush1.xpose.msra.mxu0 0.0
    %4506 = vmatprep.subr.mxu0 0.0
    %4507 = vmatpush1.xpose.msra.mxu0 0.0
    %4508 = vmatprep.subr.mxu0 0.0
    %4509 = vmatpush1.xpose.msra.mxu0 0.0
    %4510 = vmatprep.subr.mxu0 0.0
    %4511 = vmatpush1.xpose.msra.mxu0 0.0
    %4512 = vmatprep.subr.mxu0 0.0
    %4513 = vmatpush1.xpose.msra.mxu0 0.0
    %4514 = vmatprep.subr.mxu0 0.0
    %4515 = vmatpush1.xpose.msra.mxu0 0.0
    %4516 = vmatprep.subr.mxu0 0.0
    %4517 = vmatpush1.xpose.msra.mxu0 0.0
    %4518 = vmatprep.subr.mxu0 0.0
    %4519 = vmatpush1.xpose.msra.mxu0 0.0
    %4520 = vmatprep.subr.mxu0 0.0
    %4521 = vmatpush1.xpose.msra.mxu0 0.0
    %4522 = vmatprep.subr.mxu0 0.0
    %4523 = vmatpush1.xpose.msra.mxu0 0.0
    %4524 = vmatprep.subr.mxu0 0.0
    %4525 = vmatpush1.xpose.msra.mxu0 0.0
    %4526 = vmatprep.subr.mxu0 0.0
    %4527 = vmatpush1.xpose.msra.mxu0 0.0
    %4528 = vmatprep.subr.mxu0 0.0
    %4529 = vmatpush1.xpose.msra.mxu0 0.0
    %4530 = vmatprep.subr.mxu0 0.0
    %4531 = vmatpush1.xpose.msra.mxu0 0.0
    %4532 = vmatprep.subr.mxu0 0.0
    %4533 = vmatpush1.xpose.msra.mxu0 0.0
    %4534 = vmatprep.subr.mxu0 0.0
    %4535 = vmatpush1.xpose.msra.mxu0 0.0
    %4536 = vmatprep.mubr.f32.mxu0 0.0
    %4537 = vmatmul.mubr.f32.gmra.mrb[0].mxu0 %v4467
    %v4538 = vpop.f32.mrb[0].mxu0
    %v4539 = vadd.f32 0.0, %v4538
    %v4540 = vpop.f32.mrb[0].mxu0
    %4541 = vdwg.mxu0
    %v4543 = vsel %vm1193, %v3425, 0
    %v4546 = vsel %vm1193, %v3717, 0
    %4548 = vmatprep.subr.mxu0 0.0
    %4549 = vmatpush1.xpose.msra.mxu0 %v4546
    %4550 = vmatprep.subr.mxu0 0.0
    %4551 = vmatpush1.xpose.msra.mxu0 0.0
    %4552 = vmatprep.subr.mxu0 0.0
    %4553 = vmatpush1.xpose.msra.mxu0 0.0
    %4554 = vmatprep.subr.mxu0 0.0
    %4555 = vmatpush1.xpose.msra.mxu0 0.0
    %4556 = vmatprep.subr.mxu0 0.0
    %4557 = vmatpush1.xpose.msra.mxu0 0.0
    %4558 = vmatprep.subr.mxu0 0.0
    %4559 = vmatpush1.xpose.msra.mxu0 0.0
    %4560 = vmatprep.subr.mxu0 0.0
    %4561 = vmatpush1.xpose.msra.mxu0 0.0
    %4562 = vmatprep.subr.mxu0 0.0
    %4563 = vmatpush1.xpose.msra.mxu0 0.0
    %4564 = vmatprep.subr.mxu0 0.0
    %4565 = vmatpush1.xpose.msra.mxu0 0.0
    %4566 = vmatprep.subr.mxu0 0.0
    %4567 = vmatpush1.xpose.msra.mxu0 0.0
    %4568 = vmatprep.subr.mxu0 0.0
    %4569 = vmatpush1.xpose.msra.mxu0 0.0
    %4570 = vmatprep.subr.mxu0 0.0
    %4571 = vmatpush1.xpose.msra.mxu0 0.0
    %4572 = vmatprep.subr.mxu0 0.0
    %4573 = vmatpush1.xpose.msra.mxu0 0.0
    %4574 = vmatprep.subr.mxu0 0.0
    %4575 = vmatpush1.xpose.msra.mxu0 0.0
    %4576 = vmatprep.subr.mxu0 0.0
    %4577 = vmatpush1.xpose.msra.mxu0 0.0
    %4578 = vmatprep.subr.mxu0 0.0
    %4579 = vmatpush1.xpose.msra.mxu0 0.0
    %4580 = vmatprep.subr.mxu0 0.0
    %4581 = vmatpush1.xpose.msra.mxu0 0.0
    %4582 = vmatprep.subr.mxu0 0.0
    %4583 = vmatpush1.xpose.msra.mxu0 0.0
    %4584 = vmatprep.subr.mxu0 0.0
    %4585 = vmatpush1.xpose.msra.mxu0 0.0
    %4586 = vmatprep.subr.mxu0 0.0
    %4587 = vmatpush1.xpose.msra.mxu0 0.0
    %4588 = vmatprep.subr.mxu0 0.0
    %4589 = vmatpush1.xpose.msra.mxu0 0.0
    %4590 = vmatprep.subr.mxu0 0.0
    %4591 = vmatpush1.xpose.msra.mxu0 0.0
    %4592 = vmatprep.subr.mxu0 0.0
    %4593 = vmatpush1.xpose.msra.mxu0 0.0
    %4594 = vmatprep.subr.mxu0 0.0
    %4595 = vmatpush1.xpose.msra.mxu0 0.0
    %4596 = vmatprep.subr.mxu0 0.0
    %4597 = vmatpush1.xpose.msra.mxu0 0.0
    %4598 = vmatprep.subr.mxu0 0.0
    %4599 = vmatpush1.xpose.msra.mxu0 0.0
    %4600 = vmatprep.subr.mxu0 0.0
    %4601 = vmatpush1.xpose.msra.mxu0 0.0
    %4602 = vmatprep.subr.mxu0 0.0
    %4603 = vmatpush1.xpose.msra.mxu0 0.0
    %4604 = vmatprep.subr.mxu0 0.0
    %4605 = vmatpush1.xpose.msra.mxu0 0.0
    %4606 = vmatprep.subr.mxu0 0.0
    %4607 = vmatpush1.xpose.msra.mxu0 0.0
    %4608 = vmatprep.subr.mxu0 0.0
    %4609 = vmatpush1.xpose.msra.mxu0 0.0
    %4610 = vmatprep.subr.mxu0 0.0
    %4611 = vmatpush1.xpose.msra.mxu0 0.0
    %4612 = vmatprep.mubr.f32.mxu0 0.0
    %4613 = vmatmul.mubr.f32.gmra.mrb[0].mxu0 %v4543
    %v4614 = vpop.f32.mrb[0].mxu0
    %v4615 = vadd.f32 0.0, %v4614
    %v4616 = vpop.f32.mrb[0].mxu0
    %4617 = vdwg.mxu0
    %v4618 = vmul.f32 %v4083, 0.35355338
    %v4619 = vmul.f32 %v4159, 0.35355338
    %v4620 = vmul.f32 %v4235, 0.35355338
    %v4621 = vmul.f32 %v4311, 0.35355338
    %v4622 = vmul.f32 %v4387, 0.35355338
    %v4623 = vmul.f32 %v4463, 0.35355338
    %v4624 = vmul.f32 %v4539, 0.35355338
    %v4625 = vmul.f32 %v4615, 0.35355338
    %v4626 = vsel %vm1193, %v4618, -inf
    %4627 = vmax.xlane.f32.xlu0 %v4626
    %v4628 = vpop.xlane.xlu0 %4627
    %v4629 = vsel %vm1193, %v4619, -inf
    %4630 = vmax.xlane.f32.xlu0 %v4629
    %v4631 = vpop.xlane.xlu0 %4630
    %v4632 = vsel %vm1193, %v4620, -inf
    %4633 = vmax.xlane.f32.xlu0 %v4632
    %v4634 = vpop.xlane.xlu0 %4633
    %v4635 = vsel %vm1193, %v4621, -inf
    %4636 = vmax.xlane.f32.xlu0 %v4635
    %v4637 = vpop.xlane.xlu0 %4636
    %v4638 = vsel %vm1193, %v4622, -inf
    %4639 = vmax.xlane.f32.xlu0 %v4638
    %v4640 = vpop.xlane.xlu0 %4639
    %v4641 = vsel %vm1193, %v4623, -inf
    %4642 = vmax.xlane.f32.xlu0 %v4641
    %v4643 = vpop.xlane.xlu0 %4642
    %v4644 = vsel %vm1193, %v4624, -inf
    %4645 = vmax.xlane.f32.xlu0 %v4644
    %v4646 = vpop.xlane.xlu0 %4645
    %v4647 = vsel %vm1193, %v4625, -inf
    %4648 = vmax.xlane.f32.xlu0 %v4647
    %v4649 = vpop.xlane.xlu0 %4648
    %v4650 = vsub.f32 %v4618, %v4628
    %v4651 = vsub.f32 %v4619, %v4631
    %v4652 = vsub.f32 %v4620, %v4634
    %v4653 = vsub.f32 %v4621, %v4637
    %v4654 = vsub.f32 %v4622, %v4640
    %v4655 = vsub.f32 %v4623, %v4643
    %v4656 = vsub.f32 %v4624, %v4646
    %v4657 = vsub.f32 %v4625, %v4649
    %v4658 = vmul.f32 %v4650, 1.442695
    %v4659 = vpow.pop %v4658
    %v4660 = vmul.f32 %v4651, 1.442695
    %v4661 = vpow.pop %v4660
    %v4662 = vmul.f32 %v4652, 1.442695
    %v4663 = vpow.pop %v4662
    %v4664 = vmul.f32 %v4653, 1.442695
    %v4665 = vpow.pop %v4664
    %v4666 = vmul.f32 %v4654, 1.442695
    %v4667 = vpow.pop %v4666
    %v4668 = vmul.f32 %v4655, 1.442695
    %v4669 = vpow.pop %v4668
    %v4670 = vmul.f32 %v4656, 1.442695
    %v4671 = vpow.pop %v4670
    %v4672 = vmul.f32 %v4657, 1.442695
    %v4673 = vpow.pop %v4672
    %v4674 = vsel %vm1193, %v4659, 0.0
    %4675 = vadd.xlane.f32.xlu0 %v4674
    %v4676 = vpop.xlane.xlu0 %4675
    %v4677 = vsel %vm1193, %v4661, 0.0
    %4678 = vadd.xlane.f32.xlu0 %v4677
    %v4679 = vpop.xlane.xlu0 %4678
    %v4680 = vsel %vm1193, %v4663, 0.0
    %4681 = vadd.xlane.f32.xlu0 %v4680
    %v4682 = vpop.xlane.xlu0 %4681
    %v4683 = vsel %vm1193, %v4665, 0.0
    %4684 = vadd.xlane.f32.xlu0 %v4683
    %v4685 = vpop.xlane.xlu0 %4684
    %v4686 = vsel %vm1193, %v4667, 0.0
    %4687 = vadd.xlane.f32.xlu0 %v4686
    %v4688 = vpop.xlane.xlu0 %4687
    %v4689 = vsel %vm1193, %v4669, 0.0
    %4690 = vadd.xlane.f32.xlu0 %v4689
    %v4691 = vpop.xlane.xlu0 %4690
    %v4692 = vsel %vm1193, %v4671, 0.0
    %4693 = vadd.xlane.f32.xlu0 %v4692
    %v4694 = vpop.xlane.xlu0 %4693
    %v4695 = vsel %vm1193, %v4673, 0.0
    %4696 = vadd.xlane.f32.xlu0 %v4695
    %v4697 = vpop.xlane.xlu0 %4696
    %v4699 = vsel %vm1193, %v4659, 0
    %4701 = vmatprep.subr.mxu0 0.0
    %4702 = vmatpush1.msra.mxu0 %v3938
    %4703 = vmatprep.subr.mxu0 0.0
    %4704 = vmatpush1.msra.mxu0 0.0
    %4705 = vmatprep.subr.mxu0 0.0
    %4706 = vmatpush1.msra.mxu0 0.0
    %4707 = vmatprep.subr.mxu0 0.0
    %4708 = vmatpush1.msra.mxu0 0.0
    %4709 = vmatprep.subr.mxu0 0.0
    %4710 = vmatpush1.msra.mxu0 0.0
    %4711 = vmatprep.subr.mxu0 0.0
    %4712 = vmatpush1.msra.mxu0 0.0
    %4713 = vmatprep.subr.mxu0 0.0
    %4714 = vmatpush1.msra.mxu0 0.0
    %4715 = vmatprep.subr.mxu0 0.0
    %4716 = vmatpush1.msra.mxu0 0.0
    %4717 = vmatprep.subr.mxu0 0.0
    %4718 = vmatpush1.msra.mxu0 0.0
    %4719 = vmatprep.subr.mxu0 0.0
    %4720 = vmatpush1.msra.mxu0 0.0
    %4721 = vmatprep.subr.mxu0 0.0
    %4722 = vmatpush1.msra.mxu0 0.0
    %4723 = vmatprep.subr.mxu0 0.0
    %4724 = vmatpush1.msra.mxu0 0.0
    %4725 = vmatprep.subr.mxu0 0.0
    %4726 = vmatpush1.msra.mxu0 0.0
    %4727 = vmatprep.subr.mxu0 0.0
    %4728 = vmatpush1.msra.mxu0 0.0
    %4729 = vmatprep.subr.mxu0 0.0
    %4730 = vmatpush1.msra.mxu0 0.0
    %4731 = vmatprep.subr.mxu0 0.0
    %4732 = vmatpush1.msra.mxu0 0.0
    %4733 = vmatprep.subr.mxu0 0.0
    %4734 = vmatpush1.msra.mxu0 0.0
    %4735 = vmatprep.subr.mxu0 0.0
    %4736 = vmatpush1.msra.mxu0 0.0
    %4737 = vmatprep.subr.mxu0 0.0
    %4738 = vmatpush1.msra.mxu0 0.0
    %4739 = vmatprep.subr.mxu0 0.0
    %4740 = vmatpush1.msra.mxu0 0.0
    %4741 = vmatprep.subr.mxu0 0.0
    %4742 = vmatpush1.msra.mxu0 0.0
    %4743 = vmatprep.subr.mxu0 0.0
    %4744 = vmatpush1.msra.mxu0 0.0
    %4745 = vmatprep.subr.mxu0 0.0
    %4746 = vmatpush1.msra.mxu0 0.0
    %4747 = vmatprep.subr.mxu0 0.0
    %4748 = vmatpush1.msra.mxu0 0.0
    %4749 = vmatprep.subr.mxu0 0.0
    %4750 = vmatpush1.msra.mxu0 0.0
    %4751 = vmatprep.subr.mxu0 0.0
    %4752 = vmatpush1.msra.mxu0 0.0
    %4753 = vmatprep.subr.mxu0 0.0
    %4754 = vmatpush1.msra.mxu0 0.0
    %4755 = vmatprep.subr.mxu0 0.0
    %4756 = vmatpush1.msra.mxu0 0.0
    %4757 = vmatprep.subr.mxu0 0.0
    %4758 = vmatpush1.msra.mxu0 0.0
    %4759 = vmatprep.subr.mxu0 0.0
    %4760 = vmatpush1.msra.mxu0 0.0
    %4761 = vmatprep.subr.mxu0 0.0
    %4762 = vmatpush1.msra.mxu0 0.0
    %4763 = vmatprep.subr.mxu0 0.0
    %4764 = vmatpush1.msra.mxu0 0.0
    %4765 = vmatprep.mubr.f32.mxu0 0.0
    %4766 = vmatmul.mubr.f32.gmra.mrb[0].mxu0 %v4699
    %v4767 = vpop.f32.mrb[0].mxu0
    %v4768 = vadd.f32 0.0, %v4767
    %v4769 = vpop.f32.mrb[0].mxu0
    %4770 = vdwg.mxu0
    %v4772 = vsel %vm1193, %v4661, 0
    %4774 = vmatprep.subr.mxu0 0.0
    %4775 = vmatpush1.msra.mxu0 %v3939
    %4776 = vmatprep.subr.mxu0 0.0
    %4777 = vmatpush1.msra.mxu0 0.0
    %4778 = vmatprep.subr.mxu0 0.0
    %4779 = vmatpush1.msra.mxu0 0.0
    %4780 = vmatprep.subr.mxu0 0.0
    %4781 = vmatpush1.msra.mxu0 0.0
    %4782 = vmatprep.subr.mxu0 0.0
    %4783 = vmatpush1.msra.mxu0 0.0
    %4784 = vmatprep.subr.mxu0 0.0
    %4785 = vmatpush1.msra.mxu0 0.0
    %4786 = vmatprep.subr.mxu0 0.0
    %4787 = vmatpush1.msra.mxu0 0.0
    %4788 = vmatprep.subr.mxu0 0.0
    %4789 = vmatpush1.msra.mxu0 0.0
    %4790 = vmatprep.subr.mxu0 0.0
    %4791 = vmatpush1.msra.mxu0 0.0
    %4792 = vmatprep.subr.mxu0 0.0
    %4793 = vmatpush1.msra.mxu0 0.0
    %4794 = vmatprep.subr.mxu0 0.0
    %4795 = vmatpush1.msra.mxu0 0.0
    %4796 = vmatprep.subr.mxu0 0.0
    %4797 = vmatpush1.msra.mxu0 0.0
    %4798 = vmatprep.subr.mxu0 0.0
    %4799 = vmatpush1.msra.mxu0 0.0
    %4800 = vmatprep.subr.mxu0 0.0
    %4801 = vmatpush1.msra.mxu0 0.0
    %4802 = vmatprep.subr.mxu0 0.0
    %4803 = vmatpush1.msra.mxu0 0.0
    %4804 = vmatprep.subr.mxu0 0.0
    %4805 = vmatpush1.msra.mxu0 0.0
    %4806 = vmatprep.subr.mxu0 0.0
    %4807 = vmatpush1.msra.mxu0 0.0
    %4808 = vmatprep.subr.mxu0 0.0
    %4809 = vmatpush1.msra.mxu0 0.0
    %4810 = vmatprep.subr.mxu0 0.0
    %4811 = vmatpush1.msra.mxu0 0.0
    %4812 = vmatprep.subr.mxu0 0.0
    %4813 = vmatpush1.msra.mxu0 0.0
    %4814 = vmatprep.subr.mxu0 0.0
    %4815 = vmatpush1.msra.mxu0 0.0
    %4816 = vmatprep.subr.mxu0 0.0
    %4817 = vmatpush1.msra.mxu0 0.0
    %4818 = vmatprep.subr.mxu0 0.0
    %4819 = vmatpush1.msra.mxu0 0.0
    %4820 = vmatprep.subr.mxu0 0.0
    %4821 = vmatpush1.msra.mxu0 0.0
    %4822 = vmatprep.subr.mxu0 0.0
    %4823 = vmatpush1.msra.mxu0 0.0
    %4824 = vmatprep.subr.mxu0 0.0
    %4825 = vmatpush1.msra.mxu0 0.0
    %4826 = vmatprep.subr.mxu0 0.0
    %4827 = vmatpush1.msra.mxu0 0.0
    %4828 = vmatprep.subr.mxu0 0.0
    %4829 = vmatpush1.msra.mxu0 0.0
    %4830 = vmatprep.subr.mxu0 0.0
    %4831 = vmatpush1.msra.mxu0 0.0
    %4832 = vmatprep.subr.mxu0 0.0
    %4833 = vmatpush1.msra.mxu0 0.0
    %4834 = vmatprep.subr.mxu0 0.0
    %4835 = vmatpush1.msra.mxu0 0.0
    %4836 = vmatprep.subr.mxu0 0.0
    %4837 = vmatpush1.msra.mxu0 0.0
    %4838 = vmatprep.mubr.f32.mxu0 0.0
    %4839 = vmatmul.mubr.f32.gmra.mrb[0].mxu0 %v4772
    %v4840 = vpop.f32.mrb[0].mxu0
    %v4841 = vadd.f32 0.0, %v4840
    %v4842 = vpop.f32.mrb[0].mxu0
    %4843 = vdwg.mxu0
    %v4845 = vsel %vm1193, %v4663, 0
    %4847 = vmatprep.subr.mxu0 0.0
    %4848 = vmatpush1.msra.mxu0 %v3940
    %4849 = vmatprep.subr.mxu0 0.0
    %4850 = vmatpush1.msra.mxu0 0.0
    %4851 = vmatprep.subr.mxu0 0.0
    %4852 = vmatpush1.msra.mxu0 0.0
    %4853 = vmatprep.subr.mxu0 0.0
    %4854 = vmatpush1.msra.mxu0 0.0
    %4855 = vmatprep.subr.mxu0 0.0
    %4856 = vmatpush1.msra.mxu0 0.0
    %4857 = vmatprep.subr.mxu0 0.0
    %4858 = vmatpush1.msra.mxu0 0.0
    %4859 = vmatprep.subr.mxu0 0.0
    %4860 = vmatpush1.msra.mxu0 0.0
    %4861 = vmatprep.subr.mxu0 0.0
    %4862 = vmatpush1.msra.mxu0 0.0
    %4863 = vmatprep.subr.mxu0 0.0
    %4864 = vmatpush1.msra.mxu0 0.0
    %4865 = vmatprep.subr.mxu0 0.0
    %4866 = vmatpush1.msra.mxu0 0.0
    %4867 = vmatprep.subr.mxu0 0.0
    %4868 = vmatpush1.msra.mxu0 0.0
    %4869 = vmatprep.subr.mxu0 0.0
    %4870 = vmatpush1.msra.mxu0 0.0
    %4871 = vmatprep.subr.mxu0 0.0
    %4872 = vmatpush1.msra.mxu0 0.0
    %4873 = vmatprep.subr.mxu0 0.0
    %4874 = vmatpush1.msra.mxu0 0.0
    %4875 = vmatprep.subr.mxu0 0.0
    %4876 = vmatpush1.msra.mxu0 0.0
    %4877 = vmatprep.subr.mxu0 0.0
    %4878 = vmatpush1.msra.mxu0 0.0
    %4879 = vmatprep.subr.mxu0 0.0
    %4880 = vmatpush1.msra.mxu0 0.0
    %4881 = vmatprep.subr.mxu0 0.0
    %4882 = vmatpush1.msra.mxu0 0.0
    %4883 = vmatprep.subr.mxu0 0.0
    %4884 = vmatpush1.msra.mxu0 0.0
    %4885 = vmatprep.subr.mxu0 0.0
    %4886 = vmatpush1.msra.mxu0 0.0
    %4887 = vmatprep.subr.mxu0 0.0
    %4888 = vmatpush1.msra.mxu0 0.0
    %4889 = vmatprep.subr.mxu0 0.0
    %4890 = vmatpush1.msra.mxu0 0.0
    %4891 = vmatprep.subr.mxu0 0.0
    %4892 = vmatpush1.msra.mxu0 0.0
    %4893 = vmatprep.subr.mxu0 0.0
    %4894 = vmatpush1.msra.mxu0 0.0
    %4895 = vmatprep.subr.mxu0 0.0
    %4896 = vmatpush1.msra.mxu0 0.0
    %4897 = vmatprep.subr.mxu0 0.0
    %4898 = vmatpush1.msra.mxu0 0.0
    %4899 = vmatprep.subr.mxu0 0.0
    %4900 = vmatpush1.msra.mxu0 0.0
    %4901 = vmatprep.subr.mxu0 0.0
    %4902 = vmatpush1.msra.mxu0 0.0
    %4903 = vmatprep.subr.mxu0 0.0
    %4904 = vmatpush1.msra.mxu0 0.0
    %4905 = vmatprep.subr.mxu0 0.0
    %4906 = vmatpush1.msra.mxu0 0.0
    %4907 = vmatprep.subr.mxu0 0.0
    %4908 = vmatpush1.msra.mxu0 0.0
    %4909 = vmatprep.subr.mxu0 0.0
    %4910 = vmatpush1.msra.mxu0 0.0
    %4911 = vmatprep.mubr.f32.mxu0 0.0
    %4912 = vmatmul.mubr.f32.gmra.mrb[0].mxu0 %v4845
    %v4913 = vpop.f32.mrb[0].mxu0
    %v4914 = vadd.f32 0.0, %v4913
    %v4915 = vpop.f32.mrb[0].mxu0
    %4916 = vdwg.mxu0
    %v4918 = vsel %vm1193, %v4665, 0
    %4920 = vmatprep.subr.mxu0 0.0
    %4921 = vmatpush1.msra.mxu0 %v3941
    %4922 = vmatprep.subr.mxu0 0.0
    %4923 = vmatpush1.msra.mxu0 0.0
    %4924 = vmatprep.subr.mxu0 0.0
    %4925 = vmatpush1.msra.mxu0 0.0
    %4926 = vmatprep.subr.mxu0 0.0
    %4927 = vmatpush1.msra.mxu0 0.0
    %4928 = vmatprep.subr.mxu0 0.0
    %4929 = vmatpush1.msra.mxu0 0.0
    %4930 = vmatprep.subr.mxu0 0.0
    %4931 = vmatpush1.msra.mxu0 0.0
    %4932 = vmatprep.subr.mxu0 0.0
    %4933 = vmatpush1.msra.mxu0 0.0
    %4934 = vmatprep.subr.mxu0 0.0
    %4935 = vmatpush1.msra.mxu0 0.0
    %4936 = vmatprep.subr.mxu0 0.0
    %4937 = vmatpush1.msra.mxu0 0.0
    %4938 = vmatprep.subr.mxu0 0.0
    %4939 = vmatpush1.msra.mxu0 0.0
    %4940 = vmatprep.subr.mxu0 0.0
    %4941 = vmatpush1.msra.mxu0 0.0
    %4942 = vmatprep.subr.mxu0 0.0
    %4943 = vmatpush1.msra.mxu0 0.0
    %4944 = vmatprep.subr.mxu0 0.0
    %4945 = vmatpush1.msra.mxu0 0.0
    %4946 = vmatprep.subr.mxu0 0.0
    %4947 = vmatpush1.msra.mxu0 0.0
    %4948 = vmatprep.subr.mxu0 0.0
    %4949 = vmatpush1.msra.mxu0 0.0
    %4950 = vmatprep.subr.mxu0 0.0
    %4951 = vmatpush1.msra.mxu0 0.0
    %4952 = vmatprep.subr.mxu0 0.0
    %4953 = vmatpush1.msra.mxu0 0.0
    %4954 = vmatprep.subr.mxu0 0.0
    %4955 = vmatpush1.msra.mxu0 0.0
    %4956 = vmatprep.subr.mxu0 0.0
    %4957 = vmatpush1.msra.mxu0 0.0
    %4958 = vmatprep.subr.mxu0 0.0
    %4959 = vmatpush1.msra.mxu0 0.0
    %4960 = vmatprep.subr.mxu0 0.0
    %4961 = vmatpush1.msra.mxu0 0.0
    %4962 = vmatprep.subr.mxu0 0.0
    %4963 = vmatpush1.msra.mxu0 0.0
    %4964 = vmatprep.subr.mxu0 0.0
    %4965 = vmatpush1.msra.mxu0 0.0
    %4966 = vmatprep.subr.mxu0 0.0
    %4967 = vmatpush1.msra.mxu0 0.0
    %4968 = vmatprep.subr.mxu0 0.0
    %4969 = vmatpush1.msra.mxu0 0.0
    %4970 = vmatprep.subr.mxu0 0.0
    %4971 = vmatpush1.msra.mxu0 0.0
    %4972 = vmatprep.subr.mxu0 0.0
    %4973 = vmatpush1.msra.mxu0 0.0
    %4974 = vmatprep.subr.mxu0 0.0
    %4975 = vmatpush1.msra.mxu0 0.0
    %4976 = vmatprep.subr.mxu0 0.0
    %4977 = vmatpush1.msra.mxu0 0.0
    %4978 = vmatprep.subr.mxu0 0.0
    %4979 = vmatpush1.msra.mxu0 0.0
    %4980 = vmatprep.subr.mxu0 0.0
    %4981 = vmatpush1.msra.mxu0 0.0
    %4982 = vmatprep.subr.mxu0 0.0
    %4983 = vmatpush1.msra.mxu0 0.0
    %4984 = vmatprep.mubr.f32.mxu0 0.0
    %4985 = vmatmul.mubr.f32.gmra.mrb[0].mxu0 %v4918
    %v4986 = vpop.f32.mrb[0].mxu0
    %v4987 = vadd.f32 0.0, %v4986
    %v4988 = vpop.f32.mrb[0].mxu0
    %4989 = vdwg.mxu0
    %v4991 = vsel %vm1193, %v4667, 0
    %4993 = vmatprep.subr.mxu0 0.0
    %4994 = vmatpush1.msra.mxu0 %v4006
    %4995 = vmatprep.subr.mxu0 0.0
    %4996 = vmatpush1.msra.mxu0 0.0
    %4997 = vmatprep.subr.mxu0 0.0
    %4998 = vmatpush1.msra.mxu0 0.0
    %4999 = vmatprep.subr.mxu0 0.0
    %5000 = vmatpush1.msra.mxu0 0.0
    %5001 = vmatprep.subr.mxu0 0.0
    %5002 = vmatpush1.msra.mxu0 0.0
    %5003 = vmatprep.subr.mxu0 0.0
    %5004 = vmatpush1.msra.mxu0 0.0
    %5005 = vmatprep.subr.mxu0 0.0
    %5006 = vmatpush1.msra.mxu0 0.0
    %5007 = vmatprep.subr.mxu0 0.0
    %5008 = vmatpush1.msra.mxu0 0.0
    %5009 = vmatprep.subr.mxu0 0.0
    %5010 = vmatpush1.msra.mxu0 0.0
    %5011 = vmatprep.subr.mxu0 0.0
    %5012 = vmatpush1.msra.mxu0 0.0
    %5013 = vmatprep.subr.mxu0 0.0
    %5014 = vmatpush1.msra.mxu0 0.0
    %5015 = vmatprep.subr.mxu0 0.0
    %5016 = vmatpush1.msra.mxu0 0.0
    %5017 = vmatprep.subr.mxu0 0.0
    %5018 = vmatpush1.msra.mxu0 0.0
    %5019 = vmatprep.subr.mxu0 0.0
    %5020 = vmatpush1.msra.mxu0 0.0
    %5021 = vmatprep.subr.mxu0 0.0
    %5022 = vmatpush1.msra.mxu0 0.0
    %5023 = vmatprep.subr.mxu0 0.0
    %5024 = vmatpush1.msra.mxu0 0.0
    %5025 = vmatprep.subr.mxu0 0.0
    %5026 = vmatpush1.msra.mxu0 0.0
    %5027 = vmatprep.subr.mxu0 0.0
    %5028 = vmatpush1.msra.mxu0 0.0
    %5029 = vmatprep.subr.mxu0 0.0
    %5030 = vmatpush1.msra.mxu0 0.0
    %5031 = vmatprep.subr.mxu0 0.0
    %5032 = vmatpush1.msra.mxu0 0.0
    %5033 = vmatprep.subr.mxu0 0.0
    %5034 = vmatpush1.msra.mxu0 0.0
    %5035 = vmatprep.subr.mxu0 0.0
    %5036 = vmatpush1.msra.mxu0 0.0
    %5037 = vmatprep.subr.mxu0 0.0
    %5038 = vmatpush1.msra.mxu0 0.0
    %5039 = vmatprep.subr.mxu0 0.0
    %5040 = vmatpush1.msra.mxu0 0.0
    %5041 = vmatprep.subr.mxu0 0.0
    %5042 = vmatpush1.msra.mxu0 0.0
    %5043 = vmatprep.subr.mxu0 0.0
    %5044 = vmatpush1.msra.mxu0 0.0
    %5045 = vmatprep.subr.mxu0 0.0
    %5046 = vmatpush1.msra.mxu0 0.0
    %5047 = vmatprep.subr.mxu0 0.0
    %5048 = vmatpush1.msra.mxu0 0.0
    %5049 = vmatprep.subr.mxu0 0.0
    %5050 = vmatpush1.msra.mxu0 0.0
    %5051 = vmatprep.subr.mxu0 0.0
    %5052 = vmatpush1.msra.mxu0 0.0
    %5053 = vmatprep.subr.mxu0 0.0
    %5054 = vmatpush1.msra.mxu0 0.0
    %5055 = vmatprep.subr.mxu0 0.0
    %5056 = vmatpush1.msra.mxu0 0.0
    %5057 = vmatprep.mubr.f32.mxu0 0.0
    %5058 = vmatmul.mubr.f32.gmra.mrb[0].mxu0 %v4991
    %v5059 = vpop.f32.mrb[0].mxu0
    %v5060 = vadd.f32 0.0, %v5059
    %v5061 = vpop.f32.mrb[0].mxu0
    %5062 = vdwg.mxu0
    %v5064 = vsel %vm1193, %v4669, 0
    %5066 = vmatprep.subr.mxu0 0.0
    %5067 = vmatpush1.msra.mxu0 %v4007
    %5068 = vmatprep.subr.mxu0 0.0
    %5069 = vmatpush1.msra.mxu0 0.0
    %5070 = vmatprep.subr.mxu0 0.0
    %5071 = vmatpush1.msra.mxu0 0.0
    %5072 = vmatprep.subr.mxu0 0.0
    %5073 = vmatpush1.msra.mxu0 0.0
    %5074 = vmatprep.subr.mxu0 0.0
    %5075 = vmatpush1.msra.mxu0 0.0
    %5076 = vmatprep.subr.mxu0 0.0
    %5077 = vmatpush1.msra.mxu0 0.0
    %5078 = vmatprep.subr.mxu0 0.0
    %5079 = vmatpush1.msra.mxu0 0.0
    %5080 = vmatprep.subr.mxu0 0.0
    %5081 = vmatpush1.msra.mxu0 0.0
    %5082 = vmatprep.subr.mxu0 0.0
    %5083 = vmatpush1.msra.mxu0 0.0
    %5084 = vmatprep.subr.mxu0 0.0
    %5085 = vmatpush1.msra.mxu0 0.0
    %5086 = vmatprep.subr.mxu0 0.0
    %5087 = vmatpush1.msra.mxu0 0.0
    %5088 = vmatprep.subr.mxu0 0.0
    %5089 = vmatpush1.msra.mxu0 0.0
    %5090 = vmatprep.subr.mxu0 0.0
    %5091 = vmatpush1.msra.mxu0 0.0
    %5092 = vmatprep.subr.mxu0 0.0
    %5093 = vmatpush1.msra.mxu0 0.0
    %5094 = vmatprep.subr.mxu0 0.0
    %5095 = vmatpush1.msra.mxu0 0.0
    %5096 = vmatprep.subr.mxu0 0.0
    %5097 = vmatpush1.msra.mxu0 0.0
    %5098 = vmatprep.subr.mxu0 0.0
    %5099 = vmatpush1.msra.mxu0 0.0
    %5100 = vmatprep.subr.mxu0 0.0
    %5101 = vmatpush1.msra.mxu0 0.0
    %5102 = vmatprep.subr.mxu0 0.0
    %5103 = vmatpush1.msra.mxu0 0.0
    %5104 = vmatprep.subr.mxu0 0.0
    %5105 = vmatpush1.msra.mxu0 0.0
    %5106 = vmatprep.subr.mxu0 0.0
    %5107 = vmatpush1.msra.mxu0 0.0
    %5108 = vmatprep.subr.mxu0 0.0
    %5109 = vmatpush1.msra.mxu0 0.0
    %5110 = vmatprep.subr.mxu0 0.0
    %5111 = vmatpush1.msra.mxu0 0.0
    %5112 = vmatprep.subr.mxu0 0.0
    %5113 = vmatpush1.msra.mxu0 0.0
    %5114 = vmatprep.subr.mxu0 0.0
    %5115 = vmatpush1.msra.mxu0 0.0
    %5116 = vmatprep.subr.mxu0 0.0
    %5117 = vmatpush1.msra.mxu0 0.0
    %5118 = vmatprep.subr.mxu0 0.0
    %5119 = vmatpush1.msra.mxu0 0.0
    %5120 = vmatprep.subr.mxu0 0.0
    %5121 = vmatpush1.msra.mxu0 0.0
    %5122 = vmatprep.subr.mxu0 0.0
    %5123 = vmatpush1.msra.mxu0 0.0
    %5124 = vmatprep.subr.mxu0 0.0
    %5125 = vmatpush1.msra.mxu0 0.0
    %5126 = vmatprep.subr.mxu0 0.0
    %5127 = vmatpush1.msra.mxu0 0.0
    %5128 = vmatprep.subr.mxu0 0.0
    %5129 = vmatpush1.msra.mxu0 0.0
    %5130 = vmatprep.mubr.f32.mxu0 0.0
    %5131 = vmatmul.mubr.f32.gmra.mrb[0].mxu0 %v5064
    %v5132 = vpop.f32.mrb[0].mxu0
    %v5133 = vadd.f32 0.0, %v5132
    %v5134 = vpop.f32.mrb[0].mxu0
    %5135 = vdwg.mxu0
    %v5137 = vsel %vm1193, %v4671, 0
    %5139 = vmatprep.subr.mxu0 0.0
    %5140 = vmatpush1.msra.mxu0 %v4008
    %5141 = vmatprep.subr.mxu0 0.0
    %5142 = vmatpush1.msra.mxu0 0.0
    %5143 = vmatprep.subr.mxu0 0.0
    %5144 = vmatpush1.msra.mxu0 0.0
    %5145 = vmatprep.subr.mxu0 0.0
    %5146 = vmatpush1.msra.mxu0 0.0
    %5147 = vmatprep.subr.mxu0 0.0
    %5148 = vmatpush1.msra.mxu0 0.0
    %5149 = vmatprep.subr.mxu0 0.0
    %5150 = vmatpush1.msra.mxu0 0.0
    %5151 = vmatprep.subr.mxu0 0.0
    %5152 = vmatpush1.msra.mxu0 0.0
    %5153 = vmatprep.subr.mxu0 0.0
    %5154 = vmatpush1.msra.mxu0 0.0
    %5155 = vmatprep.subr.mxu0 0.0
    %5156 = vmatpush1.msra.mxu0 0.0
    %5157 = vmatprep.subr.mxu0 0.0
    %5158 = vmatpush1.msra.mxu0 0.0
    %5159 = vmatprep.subr.mxu0 0.0
    %5160 = vmatpush1.msra.mxu0 0.0
    %5161 = vmatprep.subr.mxu0 0.0
    %5162 = vmatpush1.msra.mxu0 0.0
    %5163 = vmatprep.subr.mxu0 0.0
    %5164 = vmatpush1.msra.mxu0 0.0
    %5165 = vmatprep.subr.mxu0 0.0
    %5166 = vmatpush1.msra.mxu0 0.0
    %5167 = vmatprep.subr.mxu0 0.0
    %5168 = vmatpush1.msra.mxu0 0.0
    %5169 = vmatprep.subr.mxu0 0.0
    %5170 = vmatpush1.msra.mxu0 0.0
    %5171 = vmatprep.subr.mxu0 0.0
    %5172 = vmatpush1.msra.mxu0 0.0
    %5173 = vmatprep.subr.mxu0 0.0
    %5174 = vmatpush1.msra.mxu0 0.0
    %5175 = vmatprep.subr.mxu0 0.0
    %5176 = vmatpush1.msra.mxu0 0.0
    %5177 = vmatprep.subr.mxu0 0.0
    %5178 = vmatpush1.msra.mxu0 0.0
    %5179 = vmatprep.subr.mxu0 0.0
    %5180 = vmatpush1.msra.mxu0 0.0
    %5181 = vmatprep.subr.mxu0 0.0
    %5182 = vmatpush1.msra.mxu0 0.0
    %5183 = vmatprep.subr.mxu0 0.0
    %5184 = vmatpush1.msra.mxu0 0.0
    %5185 = vmatprep.subr.mxu0 0.0
    %5186 = vmatpush1.msra.mxu0 0.0
    %5187 = vmatprep.subr.mxu0 0.0
    %5188 = vmatpush1.msra.mxu0 0.0
    %5189 = vmatprep.subr.mxu0 0.0
    %5190 = vmatpush1.msra.mxu0 0.0
    %5191 = vmatprep.subr.mxu0 0.0
    %5192 = vmatpush1.msra.mxu0 0.0
    %5193 = vmatprep.subr.mxu0 0.0
    %5194 = vmatpush1.msra.mxu0 0.0
    %5195 = vmatprep.subr.mxu0 0.0
    %5196 = vmatpush1.msra.mxu0 0.0
    %5197 = vmatprep.subr.mxu0 0.0
    %5198 = vmatpush1.msra.mxu0 0.0
    %5199 = vmatprep.subr.mxu0 0.0
    %5200 = vmatpush1.msra.mxu0 0.0
    %5201 = vmatprep.subr.mxu0 0.0
    %5202 = vmatpush1.msra.mxu0 0.0
    %5203 = vmatprep.mubr.f32.mxu0 0.0
    %5204 = vmatmul.mubr.f32.gmra.mrb[0].mxu0 %v5137
    %v5205 = vpop.f32.mrb[0].mxu0
    %v5206 = vadd.f32 0.0, %v5205
    %v5207 = vpop.f32.mrb[0].mxu0
    %5208 = vdwg.mxu0
    %v5210 = vsel %vm1193, %v4673, 0
    %5212 = vmatprep.subr.mxu0 0.0
    %5213 = vmatpush1.msra.mxu0 %v4009
    %5214 = vmatprep.subr.mxu0 0.0
    %5215 = vmatpush1.msra.mxu0 0.0
    %5216 = vmatprep.subr.mxu0 0.0
    %5217 = vmatpush1.msra.mxu0 0.0
    %5218 = vmatprep.subr.mxu0 0.0
    %5219 = vmatpush1.msra.mxu0 0.0
    %5220 = vmatprep.subr.mxu0 0.0
    %5221 = vmatpush1.msra.mxu0 0.0
    %5222 = vmatprep.subr.mxu0 0.0
    %5223 = vmatpush1.msra.mxu0 0.0
    %5224 = vmatprep.subr.mxu0 0.0
    %5225 = vmatpush1.msra.mxu0 0.0
    %5226 = vmatprep.subr.mxu0 0.0
    %5227 = vmatpush1.msra.mxu0 0.0
    %5228 = vmatprep.subr.mxu0 0.0
    %5229 = vmatpush1.msra.mxu0 0.0
    %5230 = vmatprep.subr.mxu0 0.0
    %5231 = vmatpush1.msra.mxu0 0.0
    %5232 = vmatprep.subr.mxu0 0.0
    %5233 = vmatpush1.msra.mxu0 0.0
    %5234 = vmatprep.subr.mxu0 0.0
    %5235 = vmatpush1.msra.mxu0 0.0
    %5236 = vmatprep.subr.mxu0 0.0
    %5237 = vmatpush1.msra.mxu0 0.0
    %5238 = vmatprep.subr.mxu0 0.0
    %5239 = vmatpush1.msra.mxu0 0.0
    %5240 = vmatprep.subr.mxu0 0.0
    %5241 = vmatpush1.msra.mxu0 0.0
    %5242 = vmatprep.subr.mxu0 0.0
    %5243 = vmatpush1.msra.mxu0 0.0
    %5244 = vmatprep.subr.mxu0 0.0
    %5245 = vmatpush1.msra.mxu0 0.0
    %5246 = vmatprep.subr.mxu0 0.0
    %5247 = vmatpush1.msra.mxu0 0.0
    %5248 = vmatprep.subr.mxu0 0.0
    %5249 = vmatpush1.msra.mxu0 0.0
    %5250 = vmatprep.subr.mxu0 0.0
    %5251 = vmatpush1.msra.mxu0 0.0
    %5252 = vmatprep.subr.mxu0 0.0
    %5253 = vmatpush1.msra.mxu0 0.0
    %5254 = vmatprep.subr.mxu0 0.0
    %5255 = vmatpush1.msra.mxu0 0.0
    %5256 = vmatprep.subr.mxu0 0.0
    %5257 = vmatpush1.msra.mxu0 0.0
    %5258 = vmatprep.subr.mxu0 0.0
    %5259 = vmatpush1.msra.mxu0 0.0
    %5260 = vmatprep.subr.mxu0 0.0
    %5261 = vmatpush1.msra.mxu0 0.0
    %5262 = vmatprep.subr.mxu0 0.0
    %5263 = vmatpush1.msra.mxu0 0.0
    %5264 = vmatprep.subr.mxu0 0.0
    %5265 = vmatpush1.msra.mxu0 0.0
    %5266 = vmatprep.subr.mxu0 0.0
    %5267 = vmatpush1.msra.mxu0 0.0
    %5268 = vmatprep.subr.mxu0 0.0
    %5269 = vmatpush1.msra.mxu0 0.0
    %5270 = vmatprep.subr.mxu0 0.0
    %5271 = vmatpush1.msra.mxu0 0.0
    %5272 = vmatprep.subr.mxu0 0.0
    %5273 = vmatpush1.msra.mxu0 0.0
    %5274 = vmatprep.subr.mxu0 0.0
    %5275 = vmatpush1.msra.mxu0 0.0
    %5276 = vmatprep.mubr.f32.mxu0 0.0
    %5277 = vmatmul.mubr.f32.gmra.mrb[0].mxu0 %v5210
    %v5278 = vpop.f32.mrb[0].mxu0
    %v5279 = vadd.f32 0.0, %v5278
    %v5280 = vpop.f32.mrb[0].mxu0
    %5281 = vdwg.mxu0
    %v5282 = vrcp.pop %v4676
    %v5283 = vrcp.pop %v4679
    %v5284 = vrcp.pop %v4682
    %v5285 = vrcp.pop %v4685
    %v5286 = vrcp.pop %v4688
    %v5287 = vrcp.pop %v4691
    %v5288 = vrcp.pop %v4694
    %v5289 = vrcp.pop %v4697
    %v5290 = vmul.f32 %v4768, %v5282
    %v5291 = vmul.f32 %v4841, %v5283
    %v5292 = vmul.f32 %v4914, %v5284
    %v5293 = vmul.f32 %v4987, %v5285
    %v5294 = vmul.f32 %v5060, %v5286
    %v5295 = vmul.f32 %v5133, %v5287
    %v5296 = vmul.f32 %v5206, %v5288
    %v5297 = vmul.f32 %v5279, %v5289
    %v5298 = vcombine.low %v5290, %v5292
    %v5299 = vcombine.high %v5290, %v5292
    %v5301 = vunpack.c.l.s4 1983009808
    %v5302 = vunpack.c.0.s8 %v5301
    %v5303 = vlaneseq
    %v5304 = vshrl.u32 %v5303, 7
    %v5305 = vsub.s32 %v5302, %v5304
    %v5306 = vrot.slane %v5298, %v5305
    %v5308 = vunpack.c.l.s4 1983009808
    %v5309 = vunpack.c.0.s8 %v5308
    %v5310 = vlaneseq
    %v5311 = vshrl.u32 %v5310, 7
    %v5312 = vsub.s32 %v5309, %v5311
    %v5313 = vrot.slane %v5299, %v5312
    %v5314 = vcombine.low %v5291, %v5293
    %v5315 = vcombine.high %v5291, %v5293
    %v5317 = vunpack.c.l.s4 1983009808
    %v5318 = vunpack.c.0.s8 %v5317
    %v5319 = vlaneseq
    %v5320 = vshrl.u32 %v5319, 7
    %v5321 = vsub.s32 %v5318, %v5320
    %v5322 = vrot.slane %v5314, %v5321
    %v5324 = vunpack.c.l.s4 1983009808
    %v5325 = vunpack.c.0.s8 %v5324
    %v5326 = vlaneseq
    %v5327 = vshrl.u32 %v5326, 7
    %v5328 = vsub.s32 %v5325, %v5327
    %v5329 = vrot.slane %v5315, %v5328
    %v5330 = vcombine.low %v5306, %v5322
    %v5331 = vcombine.high %v5306, %v5322
    %v5333 = vunpack.c.l.s4 1934713408
    %v5334 = vunpack.c.0.s8 %v5333
    %v5335 = vlaneseq
    %v5336 = vshrl.u32 %v5335, 7
    %v5337 = vsub.s32 %v5334, %v5336
    %v5338 = vrot.slane %v5330, %v5337
    %v5340 = vunpack.c.l.s4 1934713408
    %v5341 = vunpack.c.0.s8 %v5340
    %v5342 = vlaneseq
    %v5343 = vshrl.u32 %v5342, 7
    %v5344 = vsub.s32 %v5341, %v5343
    %v5345 = vrot.slane %v5331, %v5344
    %v5346 = vcombine.low %v5313, %v5329
    %v5347 = vcombine.high %v5313, %v5329
    %v5349 = vunpack.c.l.s4 1934713408
    %v5350 = vunpack.c.0.s8 %v5349
    %v5351 = vlaneseq
    %v5352 = vshrl.u32 %v5351, 7
    %v5353 = vsub.s32 %v5350, %v5352
    %v5354 = vrot.slane %v5346, %v5353
    %v5356 = vunpack.c.l.s4 1934713408
    %v5357 = vunpack.c.0.s8 %v5356
    %v5358 = vlaneseq
    %v5359 = vshrl.u32 %v5358, 7
    %v5360 = vsub.s32 %v5357, %v5359
    %v5361 = vrot.slane %v5347, %v5360
    %v5362 = vcombine.high %v5338, 0.0
    %v5363 = vcombine.high %v5345, 0.0
    %v5364 = vcombine.high %v5354, 0.0
    %v5365 = vcombine.high %v5361, 0.0
    %v5366 = vcombine.low %v5294, %v5296
    %v5367 = vcombine.high %v5294, %v5296
    %v5369 = vunpack.c.l.s4 1983009808
    %v5370 = vunpack.c.0.s8 %v5369
    %v5371 = vlaneseq
    %v5372 = vshrl.u32 %v5371, 7
    %v5373 = vsub.s32 %v5370, %v5372
    %v5374 = vrot.slane %v5366, %v5373
    %v5376 = vunpack.c.l.s4 1983009808
    %v5377 = vunpack.c.0.s8 %v5376
    %v5378 = vlaneseq
    %v5379 = vshrl.u32 %v5378, 7
    %v5380 = vsub.s32 %v5377, %v5379
    %v5381 = vrot.slane %v5367, %v5380
    %v5382 = vcombine.low %v5295, %v5297
    %v5383 = vcombine.high %v5295, %v5297
    %v5385 = vunpack.c.l.s4 1983009808
    %v5386 = vunpack.c.0.s8 %v5385
    %v5387 = vlaneseq
    %v5388 = vshrl.u32 %v5387, 7
    %v5389 = vsub.s32 %v5386, %v5388
    %v5390 = vrot.slane %v5382, %v5389
    %v5392 = vunpack.c.l.s4 1983009808
    %v5393 = vunpack.c.0.s8 %v5392
    %v5394 = vlaneseq
    %v5395 = vshrl.u32 %v5394, 7
    %v5396 = vsub.s32 %v5393, %v5395
    %v5397 = vrot.slane %v5383, %v5396
    %v5398 = vcombine.low %v5374, %v5390
    %v5399 = vcombine.high %v5374, %v5390
    %v5401 = vunpack.c.l.s4 1934713408
    %v5402 = vunpack.c.0.s8 %v5401
    %v5403 = vlaneseq
    %v5404 = vshrl.u32 %v5403, 7
    %v5405 = vsub.s32 %v5402, %v5404
    %v5406 = vrot.slane %v5398, %v5405
    %v5408 = vunpack.c.l.s4 1934713408
    %v5409 = vunpack.c.0.s8 %v5408
    %v5410 = vlaneseq
    %v5411 = vshrl.u32 %v5410, 7
    %v5412 = vsub.s32 %v5409, %v5411
    %v5413 = vrot.slane %v5399, %v5412
    %v5414 = vcombine.low %v5381, %v5397
    %v5415 = vcombine.high %v5381, %v5397
    %v5417 = vunpack.c.l.s4 1934713408
    %v5418 = vunpack.c.0.s8 %v5417
    %v5419 = vlaneseq
    %v5420 = vshrl.u32 %v5419, 7
    %v5421 = vsub.s32 %v5418, %v5420
    %v5422 = vrot.slane %v5414, %v5421
    %v5424 = vunpack.c.l.s4 1934713408
    %v5425 = vunpack.c.0.s8 %v5424
    %v5426 = vlaneseq
    %v5427 = vshrl.u32 %v5426, 7
    %v5428 = vsub.s32 %v5425, %v5427
    %v5429 = vrot.slane %v5415, %v5428
    %v5430 = vcombine.high %v5406, 0.0
    %v5431 = vcombine.high %v5413, 0.0
    %v5432 = vcombine.high %v5422, 0.0
    %v5433 = vcombine.high %v5429, 0.0
    %v5434 = vcombine.low %v5338, %v5345
    %v5436 = vunpack.c.l.s4 1983009808
    %v5437 = vunpack.c.0.s8 %v5436
    %v5438 = vlaneseq
    %v5439 = vshrl.u32 %v5438, 7
    %v5440 = vsub.s32 %v5437, %v5439
    %v5441 = vrot.slane %v5434, %v5440
    %v5442 = vcombine.low %v5362, %v5363
    %v5444 = vunpack.c.l.s4 1983009808
    %v5445 = vunpack.c.0.s8 %v5444
    %v5446 = vlaneseq
    %v5447 = vshrl.u32 %v5446, 7
    %v5448 = vsub.s32 %v5445, %v5447
    %v5449 = vrot.slane %v5442, %v5448
    %v5450 = vcombine.low %v5354, %v5361
    %v5452 = vunpack.c.l.s4 1983009808
    %v5453 = vunpack.c.0.s8 %v5452
    %v5454 = vlaneseq
    %v5455 = vshrl.u32 %v5454, 7
    %v5456 = vsub.s32 %v5453, %v5455
    %v5457 = vrot.slane %v5450, %v5456
    %v5458 = vcombine.low %v5364, %v5365
    %v5460 = vunpack.c.l.s4 1983009808
    %v5461 = vunpack.c.0.s8 %v5460
    %v5462 = vlaneseq
    %v5463 = vshrl.u32 %v5462, 7
    %v5464 = vsub.s32 %v5461, %v5463
    %v5465 = vrot.slane %v5458, %v5464
    %v5466 = vcombine.low %v5441, %v5449
    %v5467 = vcombine.high %v5441, %v5449
    %v5469 = vunpack.c.l.s4 1934713408
    %v5470 = vunpack.c.0.s8 %v5469
    %v5471 = vlaneseq
    %v5472 = vshrl.u32 %v5471, 7
    %v5473 = vsub.s32 %v5470, %v5472
    %v5474 = vrot.slane %v5466, %v5473
    %v5476 = vunpack.c.l.s4 1934713408
    %v5477 = vunpack.c.0.s8 %v5476
    %v5478 = vlaneseq
    %v5479 = vshrl.u32 %v5478, 7
    %v5480 = vsub.s32 %v5477, %v5479
    %v5481 = vrot.slane %v5467, %v5480
    %v5482 = vcombine.low %v5457, %v5465
    %v5483 = vcombine.high %v5457, %v5465
    %v5485 = vunpack.c.l.s4 1934713408
    %v5486 = vunpack.c.0.s8 %v5485
    %v5487 = vlaneseq
    %v5488 = vshrl.u32 %v5487, 7
    %v5489 = vsub.s32 %v5486, %v5488
    %v5490 = vrot.slane %v5482, %v5489
    %v5492 = vunpack.c.l.s4 1934713408
    %v5493 = vunpack.c.0.s8 %v5492
    %v5494 = vlaneseq
    %v5495 = vshrl.u32 %v5494, 7
    %v5496 = vsub.s32 %v5493, %v5495
    %v5497 = vrot.slane %v5483, %v5496
    %v5498 = vcombine.low %v5474, %v5490
    %v5499 = vcombine.high %v5474, %v5490
    %v5500 = vcombine.low %v5481, %v5497
    %v5501 = vcombine.high %v5481, %v5497
    %v5502 = vcombine.low %v5406, %v5413
    %v5504 = vunpack.c.l.s4 1983009808
    %v5505 = vunpack.c.0.s8 %v5504
    %v5506 = vlaneseq
    %v5507 = vshrl.u32 %v5506, 7
    %v5508 = vsub.s32 %v5505, %v5507
    %v5509 = vrot.slane %v5502, %v5508
    %v5510 = vcombine.low %v5430, %v5431
    %v5512 = vunpack.c.l.s4 1983009808
    %v5513 = vunpack.c.0.s8 %v5512
    %v5514 = vlaneseq
    %v5515 = vshrl.u32 %v5514, 7
    %v5516 = vsub.s32 %v5513, %v5515
    %v5517 = vrot.slane %v5510, %v5516
    %v5518 = vcombine.low %v5422, %v5429
    %v5520 = vunpack.c.l.s4 1983009808
    %v5521 = vunpack.c.0.s8 %v5520
    %v5522 = vlaneseq
    %v5523 = vshrl.u32 %v5522, 7
    %v5524 = vsub.s32 %v5521, %v5523
    %v5525 = vrot.slane %v5518, %v5524
    %v5526 = vcombine.low %v5432, %v5433
    %v5528 = vunpack.c.l.s4 1983009808
    %v5529 = vunpack.c.0.s8 %v5528
    %v5530 = vlaneseq
    %v5531 = vshrl.u32 %v5530, 7
    %v5532 = vsub.s32 %v5529, %v5531
    %v5533 = vrot.slane %v5526, %v5532
    %v5534 = vcombine.low %v5509, %v5517
    %v5535 = vcombine.high %v5509, %v5517
    %v5537 = vunpack.c.l.s4 1934713408
    %v5538 = vunpack.c.0.s8 %v5537
    %v5539 = vlaneseq
    %v5540 = vshrl.u32 %v5539, 7
    %v5541 = vsub.s32 %v5538, %v5540
    %v5542 = vrot.slane %v5534, %v5541
    %v5544 = vunpack.c.l.s4 1934713408
    %v5545 = vunpack.c.0.s8 %v5544
    %v5546 = vlaneseq
    %v5547 = vshrl.u32 %v5546, 7
    %v5548 = vsub.s32 %v5545, %v5547
    %v5549 = vrot.slane %v5535, %v5548
    %v5550 = vcombine.low %v5525, %v5533
    %v5551 = vcombine.high %v5525, %v5533
    %v5553 = vunpack.c.l.s4 1934713408
    %v5554 = vunpack.c.0.s8 %v5553
    %v5555 = vlaneseq
    %v5556 = vshrl.u32 %v5555, 7
    %v5557 = vsub.s32 %v5554, %v5556
    %v5558 = vrot.slane %v5550, %v5557
    %v5560 = vunpack.c.l.s4 1934713408
    %v5561 = vunpack.c.0.s8 %v5560
    %v5562 = vlaneseq
    %v5563 = vshrl.u32 %v5562, 7
    %v5564 = vsub.s32 %v5561, %v5563
    %v5565 = vrot.slane %v5551, %v5564
    %v5566 = vcombine.low %v5542, %v5558
    %v5567 = vcombine.high %v5542, %v5558
    %v5568 = vcombine.low %v5549, %v5565
    %v5569 = vcombine.high %v5549, %v5565
    %5572 = vrot.lane.b32.xlu0 %v5499, 8
    %v5573 = vpop.permute.xlu0 %5572
    %5574 = vrot.lane.b32.xlu0 %v5567, 8
    %v5575 = vpop.permute.xlu0 %5574
    %5580 = vrot.lane.b32.xlu0 %v5500, 16
    %v5581 = vpop.permute.xlu0 %5580
    %5582 = vrot.lane.b32.xlu0 %v5568, 16
    %v5583 = vpop.permute.xlu0 %5582
    %5588 = vrot.lane.b32.xlu0 %v5501, 24
    %v5589 = vpop.permute.xlu0 %5588
    %5590 = vrot.lane.b32.xlu0 %v5569, 24
    %v5591 = vpop.permute.xlu0 %5590
    %v5594 = vsel %vm1193, %v5498, %v5573
    %v5595 = vsel %vm1193, %v5566, %v5575
    %v5596 = vsel %vm2780, %v5594, %v5581
    %v5597 = vsel %vm2780, %v5595, %v5583
    %v5598 = vsel %vm2783, %v5596, %v5589
    %v5599 = vsel %vm2783, %v5597, %v5591
    %v5600 = vlaneseq
    %v5601 = vshrl.u32 %v5600, 7
    %v5602 = vsub.s32 0, %v5601
    %v5603 = vrot.slane %v2890, %v5602
    %v5605 = vsel %vm65, %v5598, 0
    %v5608 = vsel %vm65, %v5599, 0
    %5610 = vmatprep.subr.mxu0 0.0
    %5611 = vmatpush1.msra.mxu0 %v2883
    %5612 = vmatprep.subr.mxu0 0.0
    %5613 = vmatpush1.msra.mxu0 %v2884
    %5614 = vmatprep.subr.mxu0 0.0
    %5615 = vmatpush1.msra.mxu0 %v2885
    %5616 = vmatprep.subr.mxu0 0.0
    %5617 = vmatpush1.msra.mxu0 %v2886
    %5618 = vmatprep.subr.mxu0 0.0
    %5619 = vmatpush1.msra.mxu0 0.0
    %5620 = vmatprep.subr.mxu0 0.0
    %5621 = vmatpush1.msra.mxu0 0.0
    %5622 = vmatprep.subr.mxu0 0.0
    %5623 = vmatpush1.msra.mxu0 0.0
    %5624 = vmatprep.subr.mxu0 0.0
    %5625 = vmatpush1.msra.mxu0 0.0
    %5626 = vmatprep.subr.mxu0 0.0
    %5627 = vmatpush1.msra.mxu0 0.0
    %5628 = vmatprep.subr.mxu0 0.0
    %5629 = vmatpush1.msra.mxu0 0.0
    %5630 = vmatprep.subr.mxu0 0.0
    %5631 = vmatpush1.msra.mxu0 0.0
    %5632 = vmatprep.subr.mxu0 0.0
    %5633 = vmatpush1.msra.mxu0 0.0
    %5634 = vmatprep.subr.mxu0 0.0
    %5635 = vmatpush1.msra.mxu0 0.0
    %5636 = vmatprep.subr.mxu0 0.0
    %5637 = vmatpush1.msra.mxu0 0.0
    %5638 = vmatprep.subr.mxu0 0.0
    %5639 = vmatpush1.msra.mxu0 0.0
    %5640 = vmatprep.subr.mxu0 0.0
    %5641 = vmatpush1.msra.mxu0 0.0
    %5642 = vmatprep.subr.mxu0 0.0
    %5643 = vmatpush1.msra.mxu0 0.0
    %5644 = vmatprep.subr.mxu0 0.0
    %5645 = vmatpush1.msra.mxu0 0.0
    %5646 = vmatprep.subr.mxu0 0.0
    %5647 = vmatpush1.msra.mxu0 0.0
    %5648 = vmatprep.subr.mxu0 0.0
    %5649 = vmatpush1.msra.mxu0 0.0
    %5650 = vmatprep.subr.mxu0 0.0
    %5651 = vmatpush1.msra.mxu0 0.0
    %5652 = vmatprep.subr.mxu0 0.0
    %5653 = vmatpush1.msra.mxu0 0.0
    %5654 = vmatprep.subr.mxu0 0.0
    %5655 = vmatpush1.msra.mxu0 0.0
    %5656 = vmatprep.subr.mxu0 0.0
    %5657 = vmatpush1.msra.mxu0 0.0
    %5658 = vmatprep.subr.mxu0 0.0
    %5659 = vmatpush1.msra.mxu0 0.0
    %5660 = vmatprep.subr.mxu0 0.0
    %5661 = vmatpush1.msra.mxu0 0.0
    %5662 = vmatprep.subr.mxu0 0.0
    %5663 = vmatpush1.msra.mxu0 0.0
    %5664 = vmatprep.subr.mxu0 0.0
    %5665 = vmatpush1.msra.mxu0 0.0
    %5666 = vmatprep.subr.mxu0 0.0
    %5667 = vmatpush1.msra.mxu0 0.0
    %5668 = vmatprep.subr.mxu0 0.0
    %5669 = vmatpush1.msra.mxu0 0.0
    %5670 = vmatprep.subr.mxu0 0.0
    %5671 = vmatpush1.msra.mxu0 0.0
    %5672 = vmatprep.subr.mxu0 0.0
    %5673 = vmatpush1.msra.mxu0 0.0
    %5674 = vmatprep.mubr.f32.mxu0 0.0
    %5675 = vmatmul.mubr.f32.gmra.mrb[0].mxu0 %v5605
    %v5676 = vpop.f32.mrb[0].mxu0
    %v5677 = vadd.f32 %v5603, %v5676
    %v5678 = vpop.f32.mrb[0].mxu0
    %5679 = vmatprep.mubr.f32.mxu0 0.0
    %5680 = vmatmul.mubr.f32.gmra.mrb[0].mxu0 %v5608
    %v5681 = vpop.f32.mrb[0].mxu0
    %v5682 = vadd.f32 %v5603, %v5681
    %v5683 = vpop.f32.mrb[0].mxu0
    %5684 = vdwg.mxu0
    %v5685 = vld [vmem:[%s7] sm:$0x1]
    %v5687 = vlaneseq
    %v5688 = vshrl.u32 %v5687, 7
    %v5689 = vsub.s32 0, %v5688
    %v5690 = vrot.slane %v5685, %v5689
    %v5692 = vmul.f32 %v5677, %v5690
    %v5693 = vmul.f32 %v5682, %v5690
    %v5694 = vsel %vm65, %v5692, 0.0
    %5695 = vadd.xlane.f32.xlu0 %v5694
    %v5696 = vpop.xlane.xlu0 %5695
    %v5697 = vsel %vm65, %v5693, 0.0
    %5698 = vadd.xlane.f32.xlu0 %v5697
    %v5699 = vpop.xlane.xlu0 %5698
    %v5700 = vld [vmem:[#allocation2] sm:$0x1]
    %v5702 = vlaneseq
    %v5703 = vshrl.u32 %v5702, 7
    %v5704 = vsub.s32 0, %v5703
    %v5705 = vrot.slane %v5700, %v5704
    %5706 = vset.pattern.permute.xlu0 0
    %5707 = vperm.xlu0 %5706, %v5705
    %v5708 = vpop.permute.xlu0 %5707
    %v5710 = vadd.f32 %v5696, %v5708
    %v5711 = vadd.f32 %v5699, %v5708
    %v5714 = vlaneseq
    %v5715 = vand.u32 %v5714, 127
    %v5716 = vlaneseq
    %v5717 = vshrl.u32 %v5716, 7
    %v5718 = vsub.s32 %v5715, %v5717
    %v5719 = vrot.slane %v5710, %v5718
    %v5720 = vlaneseq
    %v5721 = vshrl.u32 %v5720, 7
    %v5722 = vsub.s32 %v5715, %v5721
    %v5723 = vrot.slane %v5711, %v5722
    %vm5724 = vcmask 1041409
    %v5725 = vsel %vm5724, %v5723, %v5719
    %vm5727 = vcmask 58368
    %5728 = vst.msk [vmem:[#allocation3] sm:$0x3] %vm5727, %v5725
    // Predicated region
    $region38: #{tpu_custom_call.1} parent=1 // pred_check
      _
    $region39: #{tpu_custom_call.1} parent=1 // pred_check_branch
      %5730 = sbr.rel (0) target = $region41
    $region40: #{tpu_custom_call.1} parent=1 // pred_region
      %s5732 = ssub.s32 32, 32
      %5733 = vsyncadd [#allocation4], %s5732
      %s5735 = sshll.u32 [#allocation3], 4
      %s5736 = int_to_ptr.vmem [resolvable:$true] %s5735
      %5738 = dma.vmem_to_hbm [thread:$0]  %s5736, 32, %s9, [#allocation4]
    $region41: #{tpu_custom_call.1} parent=1 // pred_fallthru
      _
    // Predicated region
    $region42: #{tpu_custom_call.1} parent=1 // pred_check
      _
    $region43: #{tpu_custom_call.1} parent=1 // pred_check_branch
      %5740 = sbr.rel (0) target = $region45
    $region44: #{tpu_custom_call.1} parent=1 // pred_region
      %5741 = dma.done [#allocation4], 32
    $region45: #{tpu_custom_call.1} parent=1 // pred_fallthru
      _
    %5742 = vsyncpa [#allocation4], 1

</llo_original>
